<compile_context>
chip_gen: v7x
topology: tpu7x:2x2x1
jax: 0.10.0
libtpu: 0.0.40
codegen_flags: <defaults>
</compile_context>

<pallas_src>
import functools

import jax
import jax.numpy as jnp
from jax.experimental import pallas as pl
from jax.experimental.pallas import tpu as pltpu


# --------------------------------------------------------------------------- #
# Kernel A: fused pointwise stack  (ConvT1x1 -> ConvT1x1 -> ReLU -> ConvT1x1 -> ReLU)
# --------------------------------------------------------------------------- #
def _pointwise_stack_kernel(x_ref, w0_ref, b0_ref, w1_ref, b1_ref, w2_ref, b2_ref,
                            o_ref):
    # x_ref: (1, c_in, tile_s)   weights: (F_out, F_in)   biases: (F_out, 1)
    x = x_ref[0]                                                   # (c_in, tile_s)
    y = jnp.dot(w0_ref[...], x, preferred_element_type=jnp.float32) + b0_ref[...]
    y = jnp.dot(w1_ref[...], y, preferred_element_type=jnp.float32) + b1_ref[...]
    y = jnp.maximum(y, 0.0)
    y = jnp.dot(w2_ref[...], y, preferred_element_type=jnp.float32) + b2_ref[...]
    y = jnp.maximum(y, 0.0)
    o_ref[0] = y.astype(o_ref.dtype)


# --------------------------------------------------------------------------- #
# Kernel B: 3x3 "same" transposed conv as 9 shifted MXU matmuls over flat spatial
# --------------------------------------------------------------------------- #
def _conv3x3_kernel(zp_ref, w_ref, b_ref, nf_ref, nl_ref, o_ref, *, W2, S, P):
    # zp_ref: (1, oc, S + 2P) flat-padded spatial, w_ref: (3, 3, F2, oc)
    # b_ref: (F2, 1), nf_ref/nl_ref: (1, S) column-edge masks, o_ref: (1, F2, S)
    f2 = o_ref.shape[1]
    acc = jnp.zeros((f2, S), jnp.float32)
    for di in range(3):
        for dj in range(3):
            start = P + (di - 1) * W2 + (dj - 1)          # always >= 0, end <= S+2P
            zs = zp_ref[0, :, pl.ds(start, S)]            # (oc, S) contiguous slice
            term = jnp.dot(w_ref[di, dj], zs,
                           preferred_element_type=jnp.float32)     # (F2, S) on MXU
            # Row over/underflow reads the zero flat-padding (correct); column
            # wrap-around across row boundaries must be masked out.
            if dj == 0:
                term = term * nf_ref[...]
            elif dj == 2:
                term = term * nl_ref[...]
            acc = acc + term
    o_ref[0] = (acc + b_ref[...]).astype(o_ref.dtype)


# --------------------------------------------------------------------------- #
# Wrapper: full h_synthesisTransformModel.forward
# --------------------------------------------------------------------------- #
def h_synthesis_transform(x, params):
    """x: (b, in_dim, h, w) NCHW.  params: PyTorch-layout weights (see __main__)."""
    b, c_in, h, w = x.shape
    F0 = params["w0"].shape[1]
    F1 = params["w1"].shape[1]
    F2 = params["w3"].shape[1]
    oc = F1 // 4
    hw = h * w

    # ---- stage 1: fused pointwise stack ------------------------------------
    # ConvTranspose2d weight is (in, out, 1, 1): y = W^T @ x  (channels-major matmul)
    w0t = params["w0"][:, :, 0, 0].T.astype(jnp.float32)           # (F0, c_in)
    w1t = params["w1"][:, :, 0, 0].T.astype(jnp.float32)           # (F1, F0)
    w2t = params["w2"][:, :, 0, 0].T.astype(jnp.float32)           # (F1, F1)
    b0c = params["b0"].reshape(F0, 1).astype(jnp.float32)
    b1c = params["b1"].reshape(F1, 1).astype(jnp.float32)
    b2c = params["b2"].reshape(F1, 1).astype(jnp.float32)

    x_flat = x.reshape(b, c_in, hw).astype(jnp.float32)            # free reshape

    tile_s = hw
    for cand in (2048, 1024, 512, 256):                            # keep VMEM bounded
        if hw >= cand and hw % cand == 0:
            tile_s = cand
            break

    y2 = pl.pallas_call(
        _pointwise_stack_kernel,
        out_shape=jax.ShapeDtypeStruct((b, F1, hw), jnp.float32),
        grid_spec=pltpu.PrefetchScalarGridSpec(
            num_scalar_prefetch=0,
            grid=(b, hw // tile_s),
            in_specs=[
                pl.BlockSpec((1, c_in, tile_s), lambda i, s: (i, 0, s)),
                pl.BlockSpec((F0, c_in), lambda i, s: (0, 0)),
                pl.BlockSpec((F0, 1), lambda i, s: (0, 0)),
                pl.BlockSpec((F1, F0), lambda i, s: (0, 0)),
                pl.BlockSpec((F1, 1), lambda i, s: (0, 0)),
                pl.BlockSpec((F1, F1), lambda i, s: (0, 0)),
                pl.BlockSpec((F1, 1), lambda i, s: (0, 0)),
            ],
            out_specs=pl.BlockSpec((1, F1, tile_s), lambda i, s: (i, 0, s)),
        ),
        compiler_params=pltpu.CompilerParams(
            dimension_semantics=("parallel", "parallel")),
    )(x_flat, w0t, b0c, w1t, b1c, w2t, b2c)

    # ---- stage 2: Depth2Space(2) + flat spatial zero-pad (XLA glue) ---------
    H2, W2 = 2 * h, 2 * w
    S = H2 * W2
    P = W2 + 1
    z = (y2.reshape(b, 2, 2, oc, h, w)
            .transpose(0, 3, 4, 1, 5, 2)                           # (b, oc, h, 2, w, 2)
            .reshape(b, oc, S))                                    # flat (row-major) H2*W2
    z_pad = jnp.pad(z, ((0, 0), (0, 0), (P, P)))                   # (b, oc, S + 2P)

    # ---- stage 3: 3x3 transposed conv (stride 1, padding 1) -----------------
    # Equivalent regular conv weight: Weff[f, c, di, dj] = W[c, f, 2-di, 2-dj]
    warr = (jnp.flip(params["w3"], axis=(2, 3))
               .transpose(2, 3, 1, 0).astype(jnp.float32))         # (3, 3, F2, oc)
    b3c = params["b3"].reshape(F2, 1).astype(jnp.float32)

    col = jnp.arange(S, dtype=jnp.int32) % W2
    not_first = (col != 0).astype(jnp.float32).reshape(1, S)
    not_last = (col != (W2 - 1)).astype(jnp.float32).reshape(1, S)

    out_flat = pl.pallas_call(
        functools.partial(_conv3x3_kernel, W2=W2, S=S, P=P),
        out_shape=jax.ShapeDtypeStruct((b, F2, S), jnp.float32),
        grid_spec=pltpu.PrefetchScalarGridSpec(
            num_scalar_prefetch=0,
            grid=(b,),
            in_specs=[
                pl.BlockSpec((1, oc, S + 2 * P), lambda i: (i, 0, 0)),
                pl.BlockSpec((3, 3, F2, oc), lambda i: (0, 0, 0, 0)),
                pl.BlockSpec((F2, 1), lambda i: (0, 0)),
                pl.BlockSpec((1, S), lambda i: (0, 0)),
                pl.BlockSpec((1, S), lambda i: (0, 0)),
            ],
            out_specs=pl.BlockSpec((1, F2, S), lambda i: (i, 0, 0)),
        ),
        compiler_params=pltpu.CompilerParams(
            dimension_semantics=("parallel",)),
    )(z_pad, warr, b3c, not_first, not_last)

    return out_flat.reshape(b, F2, H2, W2)


# --------------------------------------------------------------------------- #
# Pure-JAX reference (replicates PyTorch semantics)
# --------------------------------------------------------------------------- #
def _reference_forward(x, params):
    hp = jax.lax.Precision.HIGHEST

    def convt1x1(t, wgt, bias):
        return (jnp.einsum("bchw,co->bohw", t, wgt[:, :, 0, 0], precision=hp)
                + bias[None, :, None, None])

    y = convt1x1(x, params["w0"], params["b0"])
    y = jax.nn.relu(convt1x1(y, params["w1"], params["b1"]))
    y = jax.nn.relu(convt1x1(y, params["w2"], params["b2"]))

    bb, c, h, w = y.shape
    oc = c // 4
    z = (y.reshape(bb, 2, 2, oc, h, w)
           .transpose(0, 3, 4, 1, 5, 2)
           .reshape(bb, oc, 2 * h, 2 * w))

    weff = jnp.flip(params["w3"], axis=(2, 3)).transpose(1, 0, 2, 3)   # (F2, oc, 3, 3)
    out = jax.lax.conv_general_dilated(
        z, weff, window_strides=(1, 1), padding=((1, 1), (1, 1)),
        dimension_numbers=("NCHW", "OIHW", "NCHW"), precision=hp)
    return out + params["b3"][None, :, None, None]


if __name__ == "__main__":
    key = jax.random.PRNGKey(0)
    ks = jax.random.split(key, 9)

    in_dim = 16
    num_filters = [32, 64, 8]          # F1 must be divisible by 4 (Depth2Space(2))
    # strides_list = [1, 1, 1]  (assumed; see TODO at top)
    b, h, w = 2, 16, 16
    sc = 0.1

    params = {
        "w0": sc * jax.random.normal(ks[0], (in_dim, num_filters[0], 1, 1), jnp.float32),
        "b0": sc * jax.random.normal(ks[1], (num_filters[0],), jnp.float32),
        "w1": sc * jax.random.normal(ks[2], (num_filters[0], num_filters[1], 1, 1), jnp.float32),
        "b1": sc * jax.random.normal(ks[3], (num_filters[1],), jnp.float32),
        "w2": sc * jax.random.normal(ks[4], (num_filters[1], num_filters[1], 1, 1), jnp.float32),
        "b2": sc * jax.random.normal(ks[5], (num_filters[1],), jnp.float32),
        "w3": sc * jax.random.normal(ks[6], (num_filters[1] // 4, num_filters[2], 3, 3), jnp.float32),
        "b3": sc * jax.random.normal(ks[7], (num_filters[2],), jnp.float32),
    }
    x = jax.random.normal(ks[8], (b, in_dim, h, w), jnp.float32)

    fwd = jax.jit(h_synthesis_transform)
    out = jax.block_until_ready(fwd(x, params))

    ref = _reference_forward(x, params)
    assert out.shape == (b, num_filters[2], 2 * h, 2 * w), out.shape
    assert jnp.allclose(out, ref, atol=1e-3, rtol=1e-3), \
        float(jnp.max(jnp.abs(out - ref)))

    print("KERNEL_OK")
</pallas_src>

<mosaic_0001>
module attributes {stable_mosaic.version = 11 : i64} {
  func.func @_pointwise_stack_kernel(%arg0: i32, %arg1: i32, %arg2: memref<1x16x256xf32, #tpu.memory_space<vmem>>, %arg3: memref<32x16xf32, #tpu.memory_space<vmem>>, %arg4: memref<32x1xf32, #tpu.memory_space<vmem>>, %arg5: memref<64x32xf32, #tpu.memory_space<vmem>>, %arg6: memref<64x1xf32, #tpu.memory_space<vmem>>, %arg7: memref<64x64xf32, #tpu.memory_space<vmem>>, %arg8: memref<64x1xf32, #tpu.memory_space<vmem>>, %arg9: memref<1x64x256xf32, #tpu.memory_space<vmem>>) attributes {dimension_semantics = [#tpu.dimension_semantics<parallel>, #tpu.dimension_semantics<parallel>], iteration_bounds = array<i64: 2, 1>, scalar_prefetch = 0 : i64, scratch_operands = 0 : i64, tpu.core_type = #tpu.core_type<tc>, window_params = [{transform_indices = @transform_0, window_bounds = array<i64: 1, 16, 256>}, {pipeline_mode = #tpu.pipeline_mode<synchronous>, transform_indices = @transform_1, window_bounds = array<i64: 32, 16>}, {pipeline_mode = #tpu.pipeline_mode<synchronous>, transform_indices = @transform_2, window_bounds = array<i64: 32, 1>}, {pipeline_mode = #tpu.pipeline_mode<synchronous>, transform_indices = @transform_3, window_bounds = array<i64: 64, 32>}, {pipeline_mode = #tpu.pipeline_mode<synchronous>, transform_indices = @transform_4, window_bounds = array<i64: 64, 1>}, {pipeline_mode = #tpu.pipeline_mode<synchronous>, transform_indices = @transform_5, window_bounds = array<i64: 64, 64>}, {pipeline_mode = #tpu.pipeline_mode<synchronous>, transform_indices = @transform_6, window_bounds = array<i64: 64, 1>}, {transform_indices = @transform_7, window_bounds = array<i64: 1, 64, 256>}]} {
    %c0 = arith.constant 0 : index
    %c0_0 = arith.constant 0 : index
    %c0_1 = arith.constant 0 : index
    %0 = vector.load %arg2[%c0, %c0_0, %c0_1] : memref<1x16x256xf32, #tpu.memory_space<vmem>>, vector<1x16x256xf32>
    %1 = vector.shape_cast %0 : vector<1x16x256xf32> to vector<16x256xf32>
    %c0_2 = arith.constant 0 : index
    %c0_3 = arith.constant 0 : index
    %2 = vector.load %arg3[%c0_2, %c0_3] : memref<32x16xf32, #tpu.memory_space<vmem>>, vector<32x16xf32>
    %cst = arith.constant dense<0.000000e+00> : vector<32x256xf32>
    %3 = tpu.matmul %2, %1, %cst {dimension_numbers = #tpu.dot_dimension_numbers<[1], [0], [0], [1], [0, 0, 1, 1], [], []>} : vector<32x16xf32>, vector<16x256xf32>, vector<32x256xf32> -> vector<32x256xf32>
    %c0_4 = arith.constant 0 : index
    %c0_5 = arith.constant 0 : index
    %4 = vector.load %arg4[%c0_4, %c0_5] : memref<32x1xf32, #tpu.memory_space<vmem>>, vector<32x1xf32>
    %5 = vector.broadcast %4 : vector<32x1xf32> to vector<32x256xf32>
    %6 = arith.addf %3, %5 : vector<32x256xf32>
    %c0_6 = arith.constant 0 : index
    %c0_7 = arith.constant 0 : index
    %7 = vector.load %arg5[%c0_6, %c0_7] : memref<64x32xf32, #tpu.memory_space<vmem>>, vector<64x32xf32>
    %cst_8 = arith.constant dense<0.000000e+00> : vector<64x256xf32>
    %8 = tpu.matmul %7, %6, %cst_8 {dimension_numbers = #tpu.dot_dimension_numbers<[1], [0], [0], [1], [0, 0, 1, 1], [], []>} : vector<64x32xf32>, vector<32x256xf32>, vector<64x256xf32> -> vector<64x256xf32>
    %c0_9 = arith.constant 0 : index
    %c0_10 = arith.constant 0 : index
    %9 = vector.load %arg6[%c0_9, %c0_10] : memref<64x1xf32, #tpu.memory_space<vmem>>, vector<64x1xf32>
    %10 = vector.broadcast %9 : vector<64x1xf32> to vector<64x256xf32>
    %11 = arith.addf %8, %10 : vector<64x256xf32>
    %cst_11 = arith.constant 0.000000e+00 : f32
    %12 = vector.broadcast %cst_11 : f32 to vector<64x256xf32>
    %13 = arith.maximumf %11, %12 : vector<64x256xf32>
    %c0_12 = arith.constant 0 : index
    %c0_13 = arith.constant 0 : index
    %14 = vector.load %arg7[%c0_12, %c0_13] : memref<64x64xf32, #tpu.memory_space<vmem>>, vector<64x64xf32>
    %cst_14 = arith.constant dense<0.000000e+00> : vector<64x256xf32>
    %15 = tpu.matmul %14, %13, %cst_14 {dimension_numbers = #tpu.dot_dimension_numbers<[1], [0], [0], [1], [0, 0, 1, 1], [], []>} : vector<64x64xf32>, vector<64x256xf32>, vector<64x256xf32> -> vector<64x256xf32>
    %c0_15 = arith.constant 0 : index
    %c0_16 = arith.constant 0 : index
    %16 = vector.load %arg8[%c0_15, %c0_16] : memref<64x1xf32, #tpu.memory_space<vmem>>, vector<64x1xf32>
    %17 = vector.broadcast %16 : vector<64x1xf32> to vector<64x256xf32>
    %18 = arith.addf %15, %17 : vector<64x256xf32>
    %cst_17 = arith.constant 0.000000e+00 : f32
    %19 = vector.broadcast %cst_17 : f32 to vector<64x256xf32>
    %20 = arith.maximumf %18, %19 : vector<64x256xf32>
    %c0_18 = arith.constant 0 : index
    %c0_19 = arith.constant 0 : index
    %c0_20 = arith.constant 0 : index
    %21 = vector.load %arg9[%c0_18, %c0_19, %c0_20] : memref<1x64x256xf32, #tpu.memory_space<vmem>>, vector<1x64x256xf32>
    %22 = vector.shape_cast %21 : vector<1x64x256xf32> to vector<64x256xf32>
    %23 = vector.shape_cast %20 : vector<64x256xf32> to vector<1x64x256xf32>
    tpu.vector_store %arg9[%c0_18, %c0_19, %c0_20], %23 {strides = array<i32>} : memref<1x64x256xf32, #tpu.memory_space<vmem>>, vector<1x64x256xf32>,
    return
  }
  func.func @transform_0(%arg0: i32, %arg1: i32) -> (i32, i32, i32) {
    %c0_i32 = arith.constant 0 : i32
    %c0_i32_0 = arith.constant 0 : i32
    return %arg0, %c0_i32, %arg1 : i32, i32, i32
  }
  func.func @transform_1(%arg0: i32, %arg1: i32) -> (i32, i32) {
    %c0_i32 = arith.constant 0 : i32
    %c0_i32_0 = arith.constant 0 : i32
    %c0_i32_1 = arith.constant 0 : i32
    return %c0_i32, %c0_i32_0 : i32, i32
  }
  func.func @transform_2(%arg0: i32, %arg1: i32) -> (i32, i32) {
    %c0_i32 = arith.constant 0 : i32
    %c0_i32_0 = arith.constant 0 : i32
    %c0_i32_1 = arith.constant 0 : i32
    return %c0_i32, %c0_i32_0 : i32, i32
  }
  func.func @transform_3(%arg0: i32, %arg1: i32) -> (i32, i32) {
    %c0_i32 = arith.constant 0 : i32
    %c0_i32_0 = arith.constant 0 : i32
    %c0_i32_1 = arith.constant 0 : i32
    return %c0_i32, %c0_i32_0 : i32, i32
  }
  func.func @transform_4(%arg0: i32, %arg1: i32) -> (i32, i32) {
    %c0_i32 = arith.constant 0 : i32
    %c0_i32_0 = arith.constant 0 : i32
    %c0_i32_1 = arith.constant 0 : i32
    return %c0_i32, %c0_i32_0 : i32, i32
  }
  func.func @transform_5(%arg0: i32, %arg1: i32) -> (i32, i32) {
    %c0_i32 = arith.constant 0 : i32
    %c0_i32_0 = arith.constant 0 : i32
    %c0_i32_1 = arith.constant 0 : i32
    return %c0_i32, %c0_i32_0 : i32, i32
  }
  func.func @transform_6(%arg0: i32, %arg1: i32) -> (i32, i32) {
    %c0_i32 = arith.constant 0 : i32
    %c0_i32_0 = arith.constant 0 : i32
    %c0_i32_1 = arith.constant 0 : i32
    return %c0_i32, %c0_i32_0 : i32, i32
  }
  func.func @transform_7(%arg0: i32, %arg1: i32) -> (i32, i32, i32) {
    %c0_i32 = arith.constant 0 : i32
    %c0_i32_0 = arith.constant 0 : i32
    return %arg0, %c0_i32, %arg1 : i32, i32, i32
  }
}

module attributes {stable_mosaic.version = 11 : i64} {
  func.func @_conv3x3_kernel(%arg0: i32, %arg1: memref<1x16x1090xf32, #tpu.memory_space<vmem>>, %arg2: memref<3x3x8x16xf32, #tpu.memory_space<vmem>>, %arg3: memref<8x1xf32, #tpu.memory_space<vmem>>, %arg4: memref<1x1024xf32, #tpu.memory_space<vmem>>, %arg5: memref<1x1024xf32, #tpu.memory_space<vmem>>, %arg6: memref<1x8x1024xf32, #tpu.memory_space<vmem>>) attributes {dimension_semantics = [#tpu.dimension_semantics<parallel>], iteration_bounds = array<i64: 2>, scalar_prefetch = 0 : i64, scratch_operands = 0 : i64, tpu.core_type = #tpu.core_type<tc>, window_params = [{transform_indices = @transform_0, window_bounds = array<i64: 1, 16, 1090>}, {pipeline_mode = #tpu.pipeline_mode<synchronous>, transform_indices = @transform_1, window_bounds = array<i64: 3, 3, 8, 16>}, {pipeline_mode = #tpu.pipeline_mode<synchronous>, transform_indices = @transform_2, window_bounds = array<i64: 8, 1>}, {pipeline_mode = #tpu.pipeline_mode<synchronous>, transform_indices = @transform_3, window_bounds = array<i64: 1, 1024>}, {pipeline_mode = #tpu.pipeline_mode<synchronous>, transform_indices = @transform_4, window_bounds = array<i64: 1, 1024>}, {transform_indices = @transform_5, window_bounds = array<i64: 1, 8, 1024>}]} {
    %cst = arith.constant 0.000000e+00 : f32
    %0 = vector.broadcast %cst : f32 to vector<8x1024xf32>
    %c0 = arith.constant 0 : index
    %c0_0 = arith.constant 0 : index
    %c0_1 = arith.constant 0 : index
    %1 = vector.load %arg1[%c0, %c0_0, %c0_1] : memref<1x16x1090xf32, #tpu.memory_space<vmem>>, vector<1x16x1024xf32>
    %2 = vector.shape_cast %1 : vector<1x16x1024xf32> to vector<16x1024xf32>
    %c0_2 = arith.constant 0 : index
    %c0_3 = arith.constant 0 : index
    %c0_4 = arith.constant 0 : index
    %c0_5 = arith.constant 0 : index
    %3 = vector.load %arg2[%c0_2, %c0_3, %c0_4, %c0_5] : memref<3x3x8x16xf32, #tpu.memory_space<vmem>>, vector<1x1x8x16xf32>
    %4 = vector.shape_cast %3 : vector<1x1x8x16xf32> to vector<8x16xf32>
    %cst_6 = arith.constant dense<0.000000e+00> : vector<8x1024xf32>
    %5 = tpu.matmul %4, %2, %cst_6 {dimension_numbers = #tpu.dot_dimension_numbers<[1], [0], [0], [1], [0, 0, 1, 1], [], []>} : vector<8x16xf32>, vector<16x1024xf32>, vector<8x1024xf32> -> vector<8x1024xf32>
    %c0_7 = arith.constant 0 : index
    %c0_8 = arith.constant 0 : index
    %6 = vector.load %arg4[%c0_7, %c0_8] : memref<1x1024xf32, #tpu.memory_space<vmem>>, vector<1x1024xf32>
    %7 = vector.broadcast %6 : vector<1x1024xf32> to vector<8x1024xf32>
    %8 = arith.mulf %5, %7 : vector<8x1024xf32>
    %9 = arith.addf %0, %8 : vector<8x1024xf32>
    %c0_9 = arith.constant 0 : index
    %c0_10 = arith.constant 0 : index
    %c1 = arith.constant 1 : index
    %10 = vector.load %arg1[%c0_9, %c0_10, %c1] : memref<1x16x1090xf32, #tpu.memory_space<vmem>>, vector<1x16x1024xf32>
    %11 = vector.shape_cast %10 : vector<1x16x1024xf32> to vector<16x1024xf32>
    %c0_11 = arith.constant 0 : index
    %c1_12 = arith.constant 1 : index
    %c0_13 = arith.constant 0 : index
    %c0_14 = arith.constant 0 : index
    %12 = vector.load %arg2[%c0_11, %c1_12, %c0_13, %c0_14] : memref<3x3x8x16xf32, #tpu.memory_space<vmem>>, vector<1x1x8x16xf32>
    %13 = vector.shape_cast %12 : vector<1x1x8x16xf32> to vector<8x16xf32>
    %cst_15 = arith.constant dense<0.000000e+00> : vector<8x1024xf32>
    %14 = tpu.matmul %13, %11, %cst_15 {dimension_numbers = #tpu.dot_dimension_numbers<[1], [0], [0], [1], [0, 0, 1, 1], [], []>} : vector<8x16xf32>, vector<16x1024xf32>, vector<8x1024xf32> -> vector<8x1024xf32>
    %15 = arith.addf %9, %14 : vector<8x1024xf32>
    %c0_16 = arith.constant 0 : index
    %c0_17 = arith.constant 0 : index
    %c2 = arith.constant 2 : index
    %16 = vector.load %arg1[%c0_16, %c0_17, %c2] : memref<1x16x1090xf32, #tpu.memory_space<vmem>>, vector<1x16x1024xf32>
    %17 = vector.shape_cast %16 : vector<1x16x1024xf32> to vector<16x1024xf32>
    %c0_18 = arith.constant 0 : index
    %c2_19 = arith.constant 2 : index
    %c0_20 = arith.constant 0 : index
    %c0_21 = arith.constant 0 : index
    %18 = vector.load %arg2[%c0_18, %c2_19, %c0_20, %c0_21] : memref<3x3x8x16xf32, #tpu.memory_space<vmem>>, vector<1x1x8x16xf32>
    %19 = vector.shape_cast %18 : vector<1x1x8x16xf32> to vector<8x16xf32>
    %cst_22 = arith.constant dense<0.000000e+00> : vector<8x1024xf32>
    %20 = tpu.matmul %19, %17, %cst_22 {dimension_numbers = #tpu.dot_dimension_numbers<[1], [0], [0], [1], [0, 0, 1, 1], [], []>} : vector<8x16xf32>, vector<16x1024xf32>, vector<8x1024xf32> -> vector<8x1024xf32>
    %c0_23 = arith.constant 0 : index
    %c0_24 = arith.constant 0 : index
    %21 = vector.load %arg5[%c0_23, %c0_24] : memref<1x1024xf32, #tpu.memory_space<vmem>>, vector<1x1024xf32>
    %22 = vector.broadcast %21 : vector<1x1024xf32> to vector<8x1024xf32>
    %23 = arith.mulf %20, %22 : vector<8x1024xf32>
    %24 = arith.addf %15, %23 : vector<8x1024xf32>
    %c0_25 = arith.constant 0 : index
    %c0_26 = arith.constant 0 : index
    %c32 = arith.constant 32 : index
    %25 = vector.load %arg1[%c0_25, %c0_26, %c32] : memref<1x16x1090xf32, #tpu.memory_space<vmem>>, vector<1x16x1024xf32>
    %26 = vector.shape_cast %25 : vector<1x16x1024xf32> to vector<16x1024xf32>
    %c1_27 = arith.constant 1 : index
    %c0_28 = arith.constant 0 : index
    %c0_29 = arith.constant 0 : index
    %c0_30 = arith.constant 0 : index
    %27 = vector.load %arg2[%c1_27, %c0_28, %c0_29, %c0_30] : memref<3x3x8x16xf32, #tpu.memory_space<vmem>>, vector<1x1x8x16xf32>
    %28 = vector.shape_cast %27 : vector<1x1x8x16xf32> to vector<8x16xf32>
    %cst_31 = arith.constant dense<0.000000e+00> : vector<8x1024xf32>
    %29 = tpu.matmul %28, %26, %cst_31 {dimension_numbers = #tpu.dot_dimension_numbers<[1], [0], [0], [1], [0, 0, 1, 1], [], []>} : vector<8x16xf32>, vector<16x1024xf32>, vector<8x1024xf32> -> vector<8x1024xf32>
    %c0_32 = arith.constant 0 : index
    %c0_33 = arith.constant 0 : index
    %30 = vector.load %arg4[%c0_32, %c0_33] : memref<1x1024xf32, #tpu.memory_space<vmem>>, vector<1x1024xf32>
    %31 = vector.broadcast %30 : vector<1x1024xf32> to vector<8x1024xf32>
    %32 = arith.mulf %29, %31 : vector<8x1024xf32>
    %33 = arith.addf %24, %32 : vector<8x1024xf32>
    %c0_34 = arith.constant 0 : index
    %c0_35 = arith.constant 0 : index
    %c33 = arith.constant 33 : index
    %34 = vector.load %arg1[%c0_34, %c0_35, %c33] : memref<1x16x1090xf32, #tpu.memory_space<vmem>>, vector<1x16x1024xf32>
    %35 = vector.shape_cast %34 : vector<1x16x1024xf32> to vector<16x1024xf32>
    %c1_36 = arith.constant 1 : index
    %c1_37 = arith.constant 1 : index
    %c0_38 = arith.constant 0 : index
    %c0_39 = arith.constant 0 : index
    %36 = vector.load %arg2[%c1_36, %c1_37, %c0_38, %c0_39] : memref<3x3x8x16xf32, #tpu.memory_space<vmem>>, vector<1x1x8x16xf32>
    %37 = vector.shape_cast %36 : vector<1x1x8x16xf32> to vector<8x16xf32>
    %cst_40 = arith.constant dense<0.000000e+00> : vector<8x1024xf32>
    %38 = tpu.matmul %37, %35, %cst_40 {dimension_numbers = #tpu.dot_dimension_numbers<[1], [0], [0], [1], [0, 0, 1, 1], [], []>} : vector<8x16xf32>, vector<16x1024xf32>, vector<8x1024xf32> -> vector<8x1024xf32>
    %39 = arith.addf %33, %38 : vector<8x1024xf32>
    %c0_41 = arith.constant 0 : index
    %c0_42 = arith.constant 0 : index
    %c34 = arith.constant 34 : index
    %40 = vector.load %arg1[%c0_41, %c0_42, %c34] : memref<1x16x1090xf32, #tpu.memory_space<vmem>>, vector<1x16x1024xf32>
    %41 = vector.shape_cast %40 : vector<1x16x1024xf32> to vector<16x1024xf32>
    %c1_43 = arith.constant 1 : index
    %c2_44 = arith.constant 2 : index
    %c0_45 = arith.constant 0 : index
    %c0_46 = arith.constant 0 : index
    %42 = vector.load %arg2[%c1_43, %c2_44, %c0_45, %c0_46] : memref<3x3x8x16xf32, #tpu.memory_space<vmem>>, vector<1x1x8x16xf32>
    %43 = vector.shape_cast %42 : vector<1x1x8x16xf32> to vector<8x16xf32>
    %cst_47 = arith.constant dense<0.000000e+00> : vector<8x1024xf32>
    %44 = tpu.matmul %43, %41, %cst_47 {dimension_numbers = #tpu.dot_dimension_numbers<[1], [0], [0], [1], [0, 0, 1, 1], [], []>} : vector<8x16xf32>, vector<16x1024xf32>, vector<8x1024xf32> -> vector<8x1024xf32>
    %c0_48 = arith.constant 0 : index
    %c0_49 = arith.constant 0 : index
    %45 = vector.load %arg5[%c0_48, %c0_49] : memref<1x1024xf32, #tpu.memory_space<vmem>>, vector<1x1024xf32>
    %46 = vector.broadcast %45 : vector<1x1024xf32> to vector<8x1024xf32>
    %47 = arith.mulf %44, %46 : vector<8x1024xf32>
    %48 = arith.addf %39, %47 : vector<8x1024xf32>
    %c0_50 = arith.constant 0 : index
    %c0_51 = arith.constant 0 : index
    %c64 = arith.constant 64 : index
    %49 = vector.load %arg1[%c0_50, %c0_51, %c64] : memref<1x16x1090xf32, #tpu.memory_space<vmem>>, vector<1x16x1024xf32>
    %50 = vector.shape_cast %49 : vector<1x16x1024xf32> to vector<16x1024xf32>
    %c2_52 = arith.constant 2 : index
    %c0_53 = arith.constant 0 : index
    %c0_54 = arith.constant 0 : index
    %c0_55 = arith.constant 0 : index
    %51 = vector.load %arg2[%c2_52, %c0_53, %c0_54, %c0_55] : memref<3x3x8x16xf32, #tpu.memory_space<vmem>>, vector<1x1x8x16xf32>
    %52 = vector.shape_cast %51 : vector<1x1x8x16xf32> to vector<8x16xf32>
    %cst_56 = arith.constant dense<0.000000e+00> : vector<8x1024xf32>
    %53 = tpu.matmul %52, %50, %cst_56 {dimension_numbers = #tpu.dot_dimension_numbers<[1], [0], [0], [1], [0, 0, 1, 1], [], []>} : vector<8x16xf32>, vector<16x1024xf32>, vector<8x1024xf32> -> vector<8x1024xf32>
    %c0_57 = arith.constant 0 : index
    %c0_58 = arith.constant 0 : index
    %54 = vector.load %arg4[%c0_57, %c0_58] : memref<1x1024xf32, #tpu.memory_space<vmem>>, vector<1x1024xf32>
    %55 = vector.broadcast %54 : vector<1x1024xf32> to vector<8x1024xf32>
    %56 = arith.mulf %53, %55 : vector<8x1024xf32>
    %57 = arith.addf %48, %56 : vector<8x1024xf32>
    %c0_59 = arith.constant 0 : index
    %c0_60 = arith.constant 0 : index
    %c65 = arith.constant 65 : index
    %58 = vector.load %arg1[%c0_59, %c0_60, %c65] : memref<1x16x1090xf32, #tpu.memory_space<vmem>>, vector<1x16x1024xf32>
    %59 = vector.shape_cast %58 : vector<1x16x1024xf32> to vector<16x1024xf32>
    %c2_61 = arith.constant 2 : index
    %c1_62 = arith.constant 1 : index
    %c0_63 = arith.constant 0 : index
    %c0_64 = arith.constant 0 : index
    %60 = vector.load %arg2[%c2_61, %c1_62, %c0_63, %c0_64] : memref<3x3x8x16xf32, #tpu.memory_space<vmem>>, vector<1x1x8x16xf32>
    %61 = vector.shape_cast %60 : vector<1x1x8x16xf32> to vector<8x16xf32>
    %cst_65 = arith.constant dense<0.000000e+00> : vector<8x1024xf32>
    %62 = tpu.matmul %61, %59, %cst_65 {dimension_numbers = #tpu.dot_dimension_numbers<[1], [0], [0], [1], [0, 0, 1, 1], [], []>} : vector<8x16xf32>, vector<16x1024xf32>, vector<8x1024xf32> -> vector<8x1024xf32>
    %63 = arith.addf %57, %62 : vector<8x1024xf32>
    %c0_66 = arith.constant 0 : index
    %c0_67 = arith.constant 0 : index
    %c66 = arith.constant 66 : index
    %64 = vector.load %arg1[%c0_66, %c0_67, %c66] : memref<1x16x1090xf32, #tpu.memory_space<vmem>>, vector<1x16x1024xf32>
    %65 = vector.shape_cast %64 : vector<1x16x1024xf32> to vector<16x1024xf32>
    %c2_68 = arith.constant 2 : index
    %c2_69 = arith.constant 2 : index
    %c0_70 = arith.constant 0 : index
    %c0_71 = arith.constant 0 : index
    %66 = vector.load %arg2[%c2_68, %c2_69, %c0_70, %c0_71] : memref<3x3x8x16xf32, #tpu.memory_space<vmem>>, vector<1x1x8x16xf32>
    %67 = vector.shape_cast %66 : vector<1x1x8x16xf32> to vector<8x16xf32>
    %cst_72 = arith.constant dense<0.000000e+00> : vector<8x1024xf32>
    %68 = tpu.matmul %67, %65, %cst_72 {dimension_numbers = #tpu.dot_dimension_numbers<[1], [0], [0], [1], [0, 0, 1, 1], [], []>} : vector<8x16xf32>, vector<16x1024xf32>, vector<8x1024xf32> -> vector<8x1024xf32>
    %c0_73 = arith.constant 0 : index
    %c0_74 = arith.constant 0 : index
    %69 = vector.load %arg5[%c0_73, %c0_74] : memref<1x1024xf32, #tpu.memory_space<vmem>>, vector<1x1024xf32>
    %70 = vector.broadcast %69 : vector<1x1024xf32> to vector<8x1024xf32>
    %71 = arith.mulf %68, %70 : vector<8x1024xf32>
    %72 = arith.addf %63, %71 : vector<8x1024xf32>
    %c0_75 = arith.constant 0 : index
    %c0_76 = arith.constant 0 : index
    %73 = vector.load %arg3[%c0_75, %c0_76] : memref<8x1xf32, #tpu.memory_space<vmem>>, vector<8x1xf32>
    %74 = vector.broadcast %73 : vector<8x1xf32> to vector<8x1024xf32>
    %75 = arith.addf %72, %74 : vector<8x1024xf32>
    %c0_77 = arith.constant 0 : index
    %c0_78 = arith.constant 0 : index
    %c0_79 = arith.constant 0 : index
    %76 = vector.load %arg6[%c0_77, %c0_78, %c0_79] : memref<1x8x1024xf32, #tpu.memory_space<vmem>>, vector<1x8x1024xf32>
    %77 = vector.shape_cast %76 : vector<1x8x1024xf32> to vector<8x1024xf32>
    %78 = vector.shape_cast %75 : vector<8x1024xf32> to vector<1x8x1024xf32>
    tpu.vector_store %arg6[%c0_77, %c0_78, %c0_79], %78 {strides = array<i32>} : memref<1x8x1024xf32, #tpu.memory_space<vmem>>, vector<1x8x1024xf32>,
    return
  }
  func.func @transform_0(%arg0: i32) -> (i32, i32, i32) {
    %c0_i32 = arith.constant 0 : i32
    %c0_i32_0 = arith.constant 0 : i32
    %c0_i32_1 = arith.constant 0 : i32
    return %arg0, %c0_i32, %c0_i32_0 : i32, i32, i32
  }
  func.func @transform_1(%arg0: i32) -> (i32, i32, i32, i32) {
    %c0_i32 = arith.constant 0 : i32
    %c0_i32_0 = arith.constant 0 : i32
    %c0_i32_1 = arith.constant 0 : i32
    %c0_i32_2 = arith.constant 0 : i32
    %c0_i32_3 = arith.constant 0 : i32
    return %c0_i32, %c0_i32_0, %c0_i32_1, %c0_i32_2 : i32, i32, i32, i32
  }
  func.func @transform_2(%arg0: i32) -> (i32, i32) {
    %c0_i32 = arith.constant 0 : i32
    %c0_i32_0 = arith.constant 0 : i32
    %c0_i32_1 = arith.constant 0 : i32
    return %c0_i32, %c0_i32_0 : i32, i32
  }
  func.func @transform_3(%arg0: i32) -> (i32, i32) {
    %c0_i32 = arith.constant 0 : i32
    %c0_i32_0 = arith.constant 0 : i32
    %c0_i32_1 = arith.constant 0 : i32
    return %c0_i32, %c0_i32_0 : i32, i32
  }
  func.func @transform_4(%arg0: i32) -> (i32, i32) {
    %c0_i32 = arith.constant 0 : i32
    %c0_i32_0 = arith.constant 0 : i32
    %c0_i32_1 = arith.constant 0 : i32
    return %c0_i32, %c0_i32_0 : i32, i32
  }
  func.func @transform_5(%arg0: i32) -> (i32, i32, i32) {
    %c0_i32 = arith.constant 0 : i32
    %c0_i32_0 = arith.constant 0 : i32
    %c0_i32_1 = arith.constant 0 : i32
    return %arg0, %c0_i32, %c0_i32_0 : i32, i32, i32
  }
}

</mosaic_0001>

<llo_original>
// kernel: h_synthesis_transform.2
$region0: #{h_synthesis_transform.2}
  #allocation0 [shape = 'u32[]', space=smem, size = 0x4, offset = 0x4, fixed_abs, tag = 'smem constant byte address 0x4 - core index']
  #allocation1 [shape = 'u32[144,128]{1,0:T(1,128)}', space=vmem, size = 0x12000, scoped, tag = 'internal scratch']
  %s0 = inlined_call_operand.vmem [shape: f32[2,16,256], index: 0, kind: input, shape index: {}]
  %s1 = inlined_call_operand.vmem [shape: f32[32,16], index: 1, kind: input, shape index: {}]
  %s2 = inlined_call_operand.vmem [shape: f32[32,1], index: 2, kind: input, shape index: {}]
  %s3 = inlined_call_operand.vmem [shape: f32[64,32], index: 3, kind: input, shape index: {}]
  %s4 = inlined_call_operand.vmem [shape: f32[64,1], index: 4, kind: input, shape index: {}]
  %s5 = inlined_call_operand.vmem [shape: f32[64,64], index: 5, kind: input, shape index: {}]
  %s6 = inlined_call_operand.vmem [shape: f32[64,1], index: 6, kind: input, shape index: {}]
  %s7 = inlined_call_operand.vmem [shape: f32[2,64,256], index: 7, kind: output, shape index: {}]
  %s8 = sld [smem:[#allocation0]]
  $region61: #{h_synthesis_transform.2} parent=0
    _
  %s10 = ssub.s32 1, %s8
  %s11 = scalar_select 0, %s10, %s8
  loop: start=0, step=1, limit=4
  $region2: #{h_synthesis_transform.2} parent=0 // loop_pre_header
    _
  $region3: #{h_synthesis_transform.2} parent=0 // loop_header
    %s13 = sphi 0, %s17
    %p14 = scmp.ge.s32.totalorder %s13, 4
    %s20 = sphi 0, %s32
    %s21 = sphi 0, %s28
    %s22 = sphi 0, %s20
    %s23 = sphi 0, %s21
    %s24 = sphi 0, %s22
    %s25 = sphi 0, %s23
    %s37 = sphi 0, %s39
    %s40 = sphi 0, %s37
    %s41 = sphi 0, %s40
    %s57 = sphi 0, %s41
    %s61 = sphi 0, %s61
    %s63 = sphi 0, %s61
    %s64 = sphi 0, %s63
    %s78 = sphi 0, %s64
    %s82 = sphi 0, %s82
    %s84 = sphi 0, %s82
    %s85 = sphi 0, %s84
    %s99 = sphi 0, %s85
    %s103 = sphi 0, %s103
    %s105 = sphi 0, %s103
    %s106 = sphi 0, %s105
    %s120 = sphi 0, %s106
    %s124 = sphi 0, %s124
    %s126 = sphi 0, %s124
    %s127 = sphi 0, %s126
    %s141 = sphi 0, %s127
    %s145 = sphi 0, %s145
    %s147 = sphi 0, %s145
    %s148 = sphi 0, %s147
    %s162 = sphi 0, %s148
    %s166 = sphi 0, %s166
    %s168 = sphi 0, %s166
    %s169 = sphi 0, %s168
    %s183 = sphi 0, %s169
    %s191 = sphi 0, %s193
    %s194 = sphi 0, %s191
    %s195 = sphi 0, %s194
    %s211 = sphi 0, %s195
  $region4: #{h_synthesis_transform.2} parent=0 // loop_header_branch
    %16 = sbr.rel (%p14) target = $region8
  $region5: #{h_synthesis_transform.2} parent=0 // loop_body
    %s18 = ssub.s32 %s13, 1
    %s19 = ssub.s32 %s13, 2
    %s26 = sadd.s32 1, %s21
    %p27 = scmp.ge.s32.totalorder %s26, 1
    %s28 = scalar_select %p27, 0, %s26
    %s29 = sadd.s32 1, %s20
    %s30 = scalar_select %p27, %s29, %s20
    %p31 = scmp.ge.s32.totalorder %s30, 2
    %s32 = scalar_select %p31, 0, %s30
    %s33 = ssub.s32 %s20, %s32
    %s34 = ssub.s32 %s21, %s28
    %s35 = sor.u32 %s33, %s34
    %p36 = scmp.eq.s32.totalorder %s35, 0
    %s38 = sadd.s32 %s37, 1
    %s39 = scalar_select %p36, %s37, %s38
    %p42 = pneg %p36
    %p43 = scmp.eq.s32.totalorder %s13, 1
    %p44 = por %p42, %p43
    %p45 = scmp.ne.s32.totalorder %s37, %s40
    %p46 = scmp.eq.s32.totalorder %s13, 0
    %p47 = por %p45, %p46
    %p48 = scmp.ne.s32.totalorder %s37, %s40
    %p49 = scmp.eq.s32.totalorder %s18, 1
    %p50 = por %p48, %p49
    %p51 = scmp.ne.s32.totalorder %s40, %s41
    %p52 = scmp.eq.s32.totalorder %s18, 0
    %p53 = por %p51, %p52
    %p54 = scmp.ne.s32.totalorder %s40, %s41
    %p55 = scmp.eq.s32.totalorder %s19, 1
    %p56 = por %p54, %p55
    %p58 = scmp.ne.s32.totalorder %s41, %s57
    %p59 = scmp.eq.s32.totalorder %s19, 0
    %p60 = por %p58, %p59
    %s62 = sadd.s32 %s61, 1
    %p65 = scmp.eq.s32.totalorder %s13, 1
    %p66 = scmp.ne.s32.totalorder %s61, %s63
    %p67 = scmp.eq.s32.totalorder %s13, 0
    %p68 = por %p66, %p67
    %p69 = scmp.ne.s32.totalorder %s61, %s63
    %p70 = scmp.eq.s32.totalorder %s18, 1
    %p71 = por %p69, %p70
    %p72 = scmp.ne.s32.totalorder %s63, %s64
    %p73 = scmp.eq.s32.totalorder %s18, 0
    %p74 = por %p72, %p73
    %p75 = scmp.ne.s32.totalorder %s63, %s64
    %p76 = scmp.eq.s32.totalorder %s19, 1
    %p77 = por %p75, %p76
    %p79 = scmp.ne.s32.totalorder %s64, %s78
    %p80 = scmp.eq.s32.totalorder %s19, 0
    %p81 = por %p79, %p80
    %s83 = sadd.s32 %s82, 1
    %p86 = scmp.eq.s32.totalorder %s13, 1
    %p87 = scmp.ne.s32.totalorder %s82, %s84
    %p88 = scmp.eq.s32.totalorder %s13, 0
    %p89 = por %p87, %p88
    %p90 = scmp.ne.s32.totalorder %s82, %s84
    %p91 = scmp.eq.s32.totalorder %s18, 1
    %p92 = por %p90, %p91
    %p93 = scmp.ne.s32.totalorder %s84, %s85
    %p94 = scmp.eq.s32.totalorder %s18, 0
    %p95 = por %p93, %p94
    %p96 = scmp.ne.s32.totalorder %s84, %s85
    %p97 = scmp.eq.s32.totalorder %s19, 1
    %p98 = por %p96, %p97
    %p100 = scmp.ne.s32.totalorder %s85, %s99
    %p101 = scmp.eq.s32.totalorder %s19, 0
    %p102 = por %p100, %p101
    %s104 = sadd.s32 %s103, 1
    %p107 = scmp.eq.s32.totalorder %s13, 1
    %p108 = scmp.ne.s32.totalorder %s103, %s105
    %p109 = scmp.eq.s32.totalorder %s13, 0
    %p110 = por %p108, %p109
    %p111 = scmp.ne.s32.totalorder %s103, %s105
    %p112 = scmp.eq.s32.totalorder %s18, 1
    %p113 = por %p111, %p112
    %p114 = scmp.ne.s32.totalorder %s105, %s106
    %p115 = scmp.eq.s32.totalorder %s18, 0
    %p116 = por %p114, %p115
    %p117 = scmp.ne.s32.totalorder %s105, %s106
    %p118 = scmp.eq.s32.totalorder %s19, 1
    %p119 = por %p117, %p118
    %p121 = scmp.ne.s32.totalorder %s106, %s120
    %p122 = scmp.eq.s32.totalorder %s19, 0
    %p123 = por %p121, %p122
    %s125 = sadd.s32 %s124, 1
    %p128 = scmp.eq.s32.totalorder %s13, 1
    %p129 = scmp.ne.s32.totalorder %s124, %s126
    %p130 = scmp.eq.s32.totalorder %s13, 0
    %p131 = por %p129, %p130
    %p132 = scmp.ne.s32.totalorder %s124, %s126
    %p133 = scmp.eq.s32.totalorder %s18, 1
    %p134 = por %p132, %p133
    %p135 = scmp.ne.s32.totalorder %s126, %s127
    %p136 = scmp.eq.s32.totalorder %s18, 0
    %p137 = por %p135, %p136
    %p138 = scmp.ne.s32.totalorder %s126, %s127
    %p139 = scmp.eq.s32.totalorder %s19, 1
    %p140 = por %p138, %p139
    %p142 = scmp.ne.s32.totalorder %s127, %s141
    %p143 = scmp.eq.s32.totalorder %s19, 0
    %p144 = por %p142, %p143
    %s146 = sadd.s32 %s145, 1
    %p149 = scmp.eq.s32.totalorder %s13, 1
    %p150 = scmp.ne.s32.totalorder %s145, %s147
    %p151 = scmp.eq.s32.totalorder %s13, 0
    %p152 = por %p150, %p151
    %p153 = scmp.ne.s32.totalorder %s145, %s147
    %p154 = scmp.eq.s32.totalorder %s18, 1
    %p155 = por %p153, %p154
    %p156 = scmp.ne.s32.totalorder %s147, %s148
    %p157 = scmp.eq.s32.totalorder %s18, 0
    %p158 = por %p156, %p157
    %p159 = scmp.ne.s32.totalorder %s147, %s148
    %p160 = scmp.eq.s32.totalorder %s19, 1
    %p161 = por %p159, %p160
    %p163 = scmp.ne.s32.totalorder %s148, %s162
    %p164 = scmp.eq.s32.totalorder %s19, 0
    %p165 = por %p163, %p164
    %s167 = sadd.s32 %s166, 1
    %p170 = scmp.eq.s32.totalorder %s13, 1
    %p171 = scmp.ne.s32.totalorder %s166, %s168
    %p172 = scmp.eq.s32.totalorder %s13, 0
    %p173 = por %p171, %p172
    %p174 = scmp.ne.s32.totalorder %s166, %s168
    %p175 = scmp.eq.s32.totalorder %s18, 1
    %p176 = por %p174, %p175
    %p177 = scmp.ne.s32.totalorder %s168, %s169
    %p178 = scmp.eq.s32.totalorder %s18, 0
    %p179 = por %p177, %p178
    %p180 = scmp.ne.s32.totalorder %s168, %s169
    %p181 = scmp.eq.s32.totalorder %s19, 1
    %p182 = por %p180, %p181
    %p184 = scmp.ne.s32.totalorder %s169, %s183
    %p185 = scmp.eq.s32.totalorder %s19, 0
    %p186 = por %p184, %p185
    %s187 = ssub.s32 %s20, %s32
    %s188 = ssub.s32 %s21, %s28
    %s189 = sor.u32 %s187, %s188
    %p190 = scmp.eq.s32.totalorder %s189, 0
    %s192 = sadd.s32 %s191, 1
    %s193 = scalar_select %p190, %s191, %s192
    %p196 = pneg %p190
    %p197 = scmp.eq.s32.totalorder %s13, 1
    %p198 = por %p196, %p197
    %p199 = scmp.ne.s32.totalorder %s191, %s194
    %p200 = scmp.eq.s32.totalorder %s13, 0
    %p201 = por %p199, %p200
    %p202 = scmp.ne.s32.totalorder %s191, %s194
    %p203 = scmp.eq.s32.totalorder %s18, 1
    %p204 = por %p202, %p203
    %p205 = scmp.ne.s32.totalorder %s194, %s195
    %p206 = scmp.eq.s32.totalorder %s18, 0
    %p207 = por %p205, %p206
    %p208 = scmp.ne.s32.totalorder %s194, %s195
    %p209 = scmp.eq.s32.totalorder %s19, 1
    %p210 = por %p208, %p209
    %p212 = scmp.ne.s32.totalorder %s195, %s211
    %p213 = scmp.eq.s32.totalorder %s19, 0
    %p214 = por %p212, %p213
    %p215 = scmp.le.s32.totalorder 1, %s13
    %p216 = scmp.lt.s32.totalorder %s13, 3
    %p217 = pnand %p215, %p216
    %p218 = pneg %p217
    // Predicated region
    $region9: #{h_synthesis_transform.2} parent=5 // pred_check
      _
    $region10: #{h_synthesis_transform.2} parent=5 // pred_check_branch
      %220 = sbr.rel (%p217) target = $region12
    $region11: #{h_synthesis_transform.2} parent=5 // pred_region
      %s221 = ssub.s32 %s13, 1
      // Predicated region
      $region13: #{h_synthesis_transform.2} parent=11 // pred_check
        %p222 = pneg %p74
      $region14: #{h_synthesis_transform.2} parent=11 // pred_check_branch
        %224 = sbr.rel (%p222) target = $region16
      $region15: #{h_synthesis_transform.2} parent=11 // pred_region
        _
      $region16: #{h_synthesis_transform.2} parent=11 // pred_fallthru
        _
      // Predicated region
      $region17: #{h_synthesis_transform.2} parent=11 // pred_check
        %p225 = pneg %p95
      $region18: #{h_synthesis_transform.2} parent=11 // pred_check_branch
        %227 = sbr.rel (%p225) target = $region20
      $region19: #{h_synthesis_transform.2} parent=11 // pred_region
        _
      $region20: #{h_synthesis_transform.2} parent=11 // pred_fallthru
        _
      // Predicated region
      $region21: #{h_synthesis_transform.2} parent=11 // pred_check
        %p228 = pneg %p116
      $region22: #{h_synthesis_transform.2} parent=11 // pred_check_branch
        %230 = sbr.rel (%p228) target = $region24
      $region23: #{h_synthesis_transform.2} parent=11 // pred_region
        _
      $region24: #{h_synthesis_transform.2} parent=11 // pred_fallthru
        _
      // Predicated region
      $region25: #{h_synthesis_transform.2} parent=11 // pred_check
        %p231 = pneg %p137
      $region26: #{h_synthesis_transform.2} parent=11 // pred_check_branch
        %233 = sbr.rel (%p231) target = $region28
      $region27: #{h_synthesis_transform.2} parent=11 // pred_region
        _
      $region28: #{h_synthesis_transform.2} parent=11 // pred_fallthru
        _
      // Predicated region
      $region29: #{h_synthesis_transform.2} parent=11 // pred_check
        %p234 = pneg %p158
      $region30: #{h_synthesis_transform.2} parent=11 // pred_check_branch
        %236 = sbr.rel (%p234) target = $region32
      $region31: #{h_synthesis_transform.2} parent=11 // pred_region
        _
      $region32: #{h_synthesis_transform.2} parent=11 // pred_fallthru
        _
      // Predicated region
      $region33: #{h_synthesis_transform.2} parent=11 // pred_check
        %p237 = pneg %p179
      $region34: #{h_synthesis_transform.2} parent=11 // pred_check_branch
        %239 = sbr.rel (%p237) target = $region36
      $region35: #{h_synthesis_transform.2} parent=11 // pred_region
        _
      $region36: #{h_synthesis_transform.2} parent=11 // pred_fallthru
        _
    $region12: #{h_synthesis_transform.2} parent=5 // pred_fallthru
      _
    %p240 = scmp.lt.s32.totalorder %s13, 2
    // Predicated region
    $region37: #{h_synthesis_transform.2} parent=5 // pred_check
      %p241 = pneg %p240
    $region38: #{h_synthesis_transform.2} parent=5 // pred_check_branch
      %243 = sbr.rel (%p241) target = $region40
    $region39: #{h_synthesis_transform.2} parent=5 // pred_region
      // Predicated region
      $region41: #{h_synthesis_transform.2} parent=39 // pred_check
        %p244 = pneg %p47
      $region42: #{h_synthesis_transform.2} parent=39 // pred_check_branch
        %246 = sbr.rel (%p244) target = $region44
      $region43: #{h_synthesis_transform.2} parent=39 // pred_region
        %s247 = smul.u32 2, %s21
        %p248 = scmp.lt.s32.totalorder %s20, 1
        %s249 = scalar_select %p248, %s20, 1
        %p250 = scmp.lt.s32.totalorder %s247, 1
        %s251 = scalar_select %p250, %s247, 1
        %s252 = smul.addr %s249, 4
        %s253 = sadd.s32 %s251, %s252
        %s254 = smul.addr %s253, 8
        %s255 = scalar_lea.vmem %s0, %s254
        %s256 = smul.u32 2, %s21
      $region44: #{h_synthesis_transform.2} parent=39 // pred_fallthru
        _
    $region40: #{h_synthesis_transform.2} parent=5 // pred_fallthru
      _
    %p257 = scmp.le.s32.totalorder 1, %s13
    %p258 = scmp.lt.s32.totalorder %s13, 3
    %p259 = pnand %p257, %p258
    %p260 = pneg %p259
    // Predicated region
    $region45: #{h_synthesis_transform.2} parent=5 // pred_check
      _
    $region46: #{h_synthesis_transform.2} parent=5 // pred_check_branch
      %262 = sbr.rel (%p259) target = $region48
    $region47: #{h_synthesis_transform.2} parent=5 // pred_region
      %s263 = ssub.s32 %s13, 1
      %s264 = smul.u32 2, %s23
      %p265 = scmp.lt.s32.totalorder %s22, 1
      %s266 = scalar_select %p265, %s22, 1
      %p267 = scmp.lt.s32.totalorder %s264, 1
      %s268 = scalar_select %p267, %s264, 1
      %s269 = smul.addr %s266, 4
      %s270 = sadd.s32 %s268, %s269
      %s271 = smul.addr %s270, 8
      %s272 = scalar_lea.vmem %s0, %s271
      %p273 = pneg %p53
      %p274 = pneg %p50
      %p275 = pneg %p74
      %p276 = pneg %p71
      %p277 = pneg %p95
      %p278 = pneg %p92
      %p279 = pneg %p116
      %p280 = pneg %p113
      %p281 = pneg %p137
      %p282 = pneg %p134
      %p283 = pneg %p158
      %p284 = pneg %p155
      %p285 = pneg %p179
      %p286 = pneg %p176
      %p287 = pneg %p207
      %p288 = pneg %p204
      %s289 = smul.u32 2, %s23
      %p290 = scmp.lt.s32.totalorder %s22, 1
      %s291 = scalar_select %p290, %s22, 1
      %p292 = scmp.lt.s32.totalorder %s289, 1
      %s293 = scalar_select %p292, %s289, 1
      %s294 = smul.addr %s291, 16
      %s295 = sadd.s32 %s293, %s294
      %s296 = smul.addr %s295, 8
      %s297 = scalar_lea.vmem %s7, %s296
      %s298 = smul.u32 2, %s23
      %p299 = scmp.lt.s32.totalorder %s22, 1
      %s300 = scalar_select %p299, %s22, 1
      %p301 = scmp.lt.s32.totalorder %s298, 1
      %s302 = scalar_select %p301, %s298, 1
      %s303 = smul.addr %s300, 4
      %s304 = sadd.s32 %s302, %s303
      %s305 = smul.addr %s304, 8
      %s306 = scalar_lea.vmem %s0, %s305
      %s307 = smul.u32 2, %s23
      %s308 = smul.u32 2, %s23
      %p309 = scmp.lt.s32.totalorder %s22, 1
      %s310 = scalar_select %p309, %s22, 1
      %p311 = scmp.lt.s32.totalorder %s308, 1
      %s312 = scalar_select %p311, %s308, 1
      %s313 = smul.addr %s310, 16
      %s314 = sadd.s32 %s312, %s313
      %s315 = smul.addr %s314, 8
      %s316 = scalar_lea.vmem %s7, %s315
      %s317 = smul.u32 2, %s23
      %v318 = vld [vmem:[%s306] sm:$0xff]
      %v319 = vld [vmem:[%s306 + $0x8] sm:$0xff]
      %v320 = vld [vmem:[%s306 + $0x10] sm:$0xff]
      %v321 = vld [vmem:[%s306 + $0x18] sm:$0xff]
      %v322 = vld [vmem:[%s1] sm:$0xff]
      %v323 = vld [vmem:[%s1 + $0x8] sm:$0xff]
      %v324 = vld [vmem:[%s1 + $0x10] sm:$0xff]
      %v325 = vld [vmem:[%s1 + $0x18] sm:$0xff]
      %v326 = vld [vmem:[%s2] sm:$0xff]
      %v327 = vld [vmem:[%s2 + $0x8] sm:$0xff]
      %v328 = vld [vmem:[%s2 + $0x10] sm:$0xff]
      %v329 = vld [vmem:[%s2 + $0x18] sm:$0xff]
      %331 = vset.pattern.permute.xlu0 0
      %332 = vperm.xlu0 %331, %v326
      %v333 = vpop.permute.xlu0 %332
      %336 = vset.pattern.permute.xlu0 0
      %337 = vperm.xlu0 %336, %v327
      %v338 = vpop.permute.xlu0 %337
      %341 = vset.pattern.permute.xlu0 0
      %342 = vperm.xlu0 %341, %v328
      %v343 = vpop.permute.xlu0 %342
      %346 = vset.pattern.permute.xlu0 0
      %347 = vperm.xlu0 %346, %v329
      %v348 = vpop.permute.xlu0 %347
      %vm350 = vcmask 130048
      %v352 = vsel %vm350, %v322, 0
      %v355 = vsel %vm350, %v323, 0
      %v358 = vsel %vm350, %v324, 0
      %v361 = vsel %vm350, %v325, 0
      %363 = vmatprep.subr.mxu0 %v319
      %364 = vmatpush1.msra.mxu0 %v318
      %365 = vmatprep.subr.mxu0 %v321
      %366 = vmatpush1.msra.mxu0 %v320
      %367 = vmatprep.subr.mxu0 0.0
      %368 = vmatpush1.msra.mxu0 0.0
      %369 = vmatprep.subr.mxu0 0.0
      %370 = vmatpush1.msra.mxu0 0.0
      %371 = vmatprep.subr.mxu0 0.0
      %372 = vmatpush1.msra.mxu0 0.0
      %373 = vmatprep.subr.mxu0 0.0
      %374 = vmatpush1.msra.mxu0 0.0
      %375 = vmatprep.subr.mxu0 0.0
      %376 = vmatpush1.msra.mxu0 0.0
      %377 = vmatprep.subr.mxu0 0.0
      %378 = vmatpush1.msra.mxu0 0.0
      %379 = vmatprep.subr.mxu0 0.0
      %380 = vmatpush1.msra.mxu0 0.0
      %381 = vmatprep.subr.mxu0 0.0
      %382 = vmatpush1.msra.mxu0 0.0
      %383 = vmatprep.subr.mxu0 0.0
      %384 = vmatpush1.msra.mxu0 0.0
      %385 = vmatprep.subr.mxu0 0.0
      %386 = vmatpush1.msra.mxu0 0.0
      %387 = vmatprep.subr.mxu0 0.0
      %388 = vmatpush1.msra.mxu0 0.0
      %389 = vmatprep.subr.mxu0 0.0
      %390 = vmatpush1.msra.mxu0 0.0
      %391 = vmatprep.subr.mxu0 0.0
      %392 = vmatpush1.msra.mxu0 0.0
      %393 = vmatprep.subr.mxu0 0.0
      %394 = vmatpush1.msra.mxu0 0.0
      %395 = vmatprep.subr.mxu0 0.0
      %396 = vmatpush1.msra.mxu0 0.0
      %397 = vmatprep.subr.mxu0 0.0
      %398 = vmatpush1.msra.mxu0 0.0
      %399 = vmatprep.subr.mxu0 0.0
      %400 = vmatpush1.msra.mxu0 0.0
      %401 = vmatprep.subr.mxu0 0.0
      %402 = vmatpush1.msra.mxu0 0.0
      %403 = vmatprep.subr.mxu0 0.0
      %404 = vmatpush1.msra.mxu0 0.0
      %405 = vmatprep.subr.mxu0 0.0
      %406 = vmatpush1.msra.mxu0 0.0
      %407 = vmatprep.subr.mxu0 0.0
      %408 = vmatpush1.msra.mxu0 0.0
      %409 = vmatprep.subr.mxu0 0.0
      %410 = vmatpush1.msra.mxu0 0.0
      %411 = vmatprep.subr.mxu0 0.0
      %412 = vmatpush1.msra.mxu0 0.0
      %413 = vmatprep.subr.mxu0 0.0
      %414 = vmatpush1.msra.mxu0 0.0
      %415 = vmatprep.subr.mxu0 0.0
      %416 = vmatpush1.msra.mxu0 0.0
      %417 = vmatprep.subr.mxu0 0.0
      %418 = vmatpush1.msra.mxu0 0.0
      %419 = vmatprep.subr.mxu0 0.0
      %420 = vmatpush1.msra.mxu0 0.0
      %421 = vmatprep.subr.mxu0 0.0
      %422 = vmatpush1.msra.mxu0 0.0
      %423 = vmatprep.subr.mxu0 0.0
      %424 = vmatpush1.msra.mxu0 0.0
      %425 = vmatprep.subr.mxu0 0.0
      %426 = vmatpush1.msra.mxu0 0.0
      %427 = vmatprep.mubr.f32.mxu0 0.0
      %428 = vmatmul.mubr.f32.gmra.mrb[0].mxu0 %v352
      %v429 = vpop.f32.mrb[0].mxu0
      %v430 = vadd.f32 %v333, %v429
      %v431 = vpop.f32.mrb[0].mxu0
      %v432 = vadd.f32 %v333, %v431
      %433 = vmatprep.mubr.f32.mxu0 0.0
      %434 = vmatmul.mubr.f32.gmra.mrb[0].mxu0 %v355
      %v435 = vpop.f32.mrb[0].mxu0
      %v436 = vadd.f32 %v338, %v435
      %v437 = vpop.f32.mrb[0].mxu0
      %v438 = vadd.f32 %v338, %v437
      %439 = vmatprep.mubr.f32.mxu0 0.0
      %440 = vmatmul.mubr.f32.gmra.mrb[0].mxu0 %v358
      %v441 = vpop.f32.mrb[0].mxu0
      %v442 = vadd.f32 %v343, %v441
      %v443 = vpop.f32.mrb[0].mxu0
      %v444 = vadd.f32 %v343, %v443
      %445 = vmatprep.mubr.f32.mxu0 0.0
      %446 = vmatmul.mubr.f32.gmra.mrb[0].mxu0 %v361
      %v447 = vpop.f32.mrb[0].mxu0
      %v448 = vadd.f32 %v348, %v447
      %v449 = vpop.f32.mrb[0].mxu0
      %v450 = vadd.f32 %v348, %v449
      %451 = vdwg.mxu0
      %v452 = vld [vmem:[%s3] sm:$0xff]
      %v453 = vld [vmem:[%s3 + $0x8] sm:$0xff]
      %v454 = vld [vmem:[%s3 + $0x10] sm:$0xff]
      %v455 = vld [vmem:[%s3 + $0x18] sm:$0xff]
      %v456 = vld [vmem:[%s3 + $0x20] sm:$0xff]
      %v457 = vld [vmem:[%s3 + $0x28] sm:$0xff]
      %v458 = vld [vmem:[%s3 + $0x30] sm:$0xff]
      %v459 = vld [vmem:[%s3 + $0x38] sm:$0xff]
      %v460 = vld [vmem:[%s4] sm:$0xff]
      %v461 = vld [vmem:[%s4 + $0x8] sm:$0xff]
      %v462 = vld [vmem:[%s4 + $0x10] sm:$0xff]
      %v463 = vld [vmem:[%s4 + $0x18] sm:$0xff]
      %v464 = vld [vmem:[%s4 + $0x20] sm:$0xff]
      %v465 = vld [vmem:[%s4 + $0x28] sm:$0xff]
      %v466 = vld [vmem:[%s4 + $0x30] sm:$0xff]
      %v467 = vld [vmem:[%s4 + $0x38] sm:$0xff]
      %469 = vset.pattern.permute.xlu0 0
      %470 = vperm.xlu0 %469, %v460
      %v471 = vpop.permute.xlu0 %470
      %474 = vset.pattern.permute.xlu0 0
      %475 = vperm.xlu0 %474, %v461
      %v476 = vpop.permute.xlu0 %475
      %479 = vset.pattern.permute.xlu0 0
      %480 = vperm.xlu0 %479, %v462
      %v481 = vpop.permute.xlu0 %480
      %484 = vset.pattern.permute.xlu0 0
      %485 = vperm.xlu0 %484, %v463
      %v486 = vpop.permute.xlu0 %485
      %489 = vset.pattern.permute.xlu0 0
      %490 = vperm.xlu0 %489, %v464
      %v491 = vpop.permute.xlu0 %490
      %494 = vset.pattern.permute.xlu0 0
      %495 = vperm.xlu0 %494, %v465
      %v496 = vpop.permute.xlu0 %495
      %499 = vset.pattern.permute.xlu0 0
      %500 = vperm.xlu0 %499, %v466
      %v501 = vpop.permute.xlu0 %500
      %504 = vset.pattern.permute.xlu0 0
      %505 = vperm.xlu0 %504, %v467
      %v506 = vpop.permute.xlu0 %505
      %vm508 = vcmask 261120
      %v510 = vsel %vm508, %v452, 0
      %v513 = vsel %vm508, %v453, 0
      %v516 = vsel %vm508, %v454, 0
      %v519 = vsel %vm508, %v455, 0
      %v522 = vsel %vm508, %v456, 0
      %v525 = vsel %vm508, %v457, 0
      %v528 = vsel %vm508, %v458, 0
      %v531 = vsel %vm508, %v459, 0
      %533 = vmatprep.subr.mxu0 %v432
      %534 = vmatpush1.msra.mxu0 %v430
      %535 = vmatprep.subr.mxu0 %v438
      %536 = vmatpush1.msra.mxu0 %v436
      %537 = vmatprep.subr.mxu0 %v444
      %538 = vmatpush1.msra.mxu0 %v442
      %539 = vmatprep.subr.mxu0 %v450
      %540 = vmatpush1.msra.mxu0 %v448
      %541 = vmatprep.subr.mxu0 0.0
      %542 = vmatpush1.msra.mxu0 0.0
      %543 = vmatprep.subr.mxu0 0.0
      %544 = vmatpush1.msra.mxu0 0.0
      %545 = vmatprep.subr.mxu0 0.0
      %546 = vmatpush1.msra.mxu0 0.0
      %547 = vmatprep.subr.mxu0 0.0
      %548 = vmatpush1.msra.mxu0 0.0
      %549 = vmatprep.subr.mxu0 0.0
      %550 = vmatpush1.msra.mxu0 0.0
      %551 = vmatprep.subr.mxu0 0.0
      %552 = vmatpush1.msra.mxu0 0.0
      %553 = vmatprep.subr.mxu0 0.0
      %554 = vmatpush1.msra.mxu0 0.0
      %555 = vmatprep.subr.mxu0 0.0
      %556 = vmatpush1.msra.mxu0 0.0
      %557 = vmatprep.subr.mxu0 0.0
      %558 = vmatpush1.msra.mxu0 0.0
      %559 = vmatprep.subr.mxu0 0.0
      %560 = vmatpush1.msra.mxu0 0.0
      %561 = vmatprep.subr.mxu0 0.0
      %562 = vmatpush1.msra.mxu0 0.0
      %563 = vmatprep.subr.mxu0 0.0
      %564 = vmatpush1.msra.mxu0 0.0
      %565 = vmatprep.subr.mxu0 0.0
      %566 = vmatpush1.msra.mxu0 0.0
      %567 = vmatprep.subr.mxu0 0.0
      %568 = vmatpush1.msra.mxu0 0.0
      %569 = vmatprep.subr.mxu0 0.0
      %570 = vmatpush1.msra.mxu0 0.0
      %571 = vmatprep.subr.mxu0 0.0
      %572 = vmatpush1.msra.mxu0 0.0
      %573 = vmatprep.subr.mxu0 0.0
      %574 = vmatpush1.msra.mxu0 0.0
      %575 = vmatprep.subr.mxu0 0.0
      %576 = vmatpush1.msra.mxu0 0.0
      %577 = vmatprep.subr.mxu0 0.0
      %578 = vmatpush1.msra.mxu0 0.0
      %579 = vmatprep.subr.mxu0 0.0
      %580 = vmatpush1.msra.mxu0 0.0
      %581 = vmatprep.subr.mxu0 0.0
      %582 = vmatpush1.msra.mxu0 0.0
      %583 = vmatprep.subr.mxu0 0.0
      %584 = vmatpush1.msra.mxu0 0.0
      %585 = vmatprep.subr.mxu0 0.0
      %586 = vmatpush1.msra.mxu0 0.0
      %587 = vmatprep.subr.mxu0 0.0
      %588 = vmatpush1.msra.mxu0 0.0
      %589 = vmatprep.subr.mxu0 0.0
      %590 = vmatpush1.msra.mxu0 0.0
      %591 = vmatprep.subr.mxu0 0.0
      %592 = vmatpush1.msra.mxu0 0.0
      %593 = vmatprep.subr.mxu0 0.0
      %594 = vmatpush1.msra.mxu0 0.0
      %595 = vmatprep.subr.mxu0 0.0
      %596 = vmatpush1.msra.mxu0 0.0
      %597 = vmatprep.mubr.f32.mxu0 0.0
      %598 = vmatmul.mubr.f32.gmra.mrb[0].mxu0 %v510
      %v599 = vpop.f32.mrb[0].mxu0
      %v600 = vadd.f32 %v471, %v599
      %v601 = vpop.f32.mrb[0].mxu0
      %v602 = vadd.f32 %v471, %v601
      %603 = vmatprep.mubr.f32.mxu0 0.0
      %604 = vmatmul.mubr.f32.gmra.mrb[0].mxu0 %v513
      %v605 = vpop.f32.mrb[0].mxu0
      %v606 = vadd.f32 %v476, %v605
      %v607 = vpop.f32.mrb[0].mxu0
      %v608 = vadd.f32 %v476, %v607
      %609 = vmatprep.mubr.f32.mxu0 0.0
      %610 = vmatmul.mubr.f32.gmra.mrb[0].mxu0 %v516
      %v611 = vpop.f32.mrb[0].mxu0
      %v612 = vadd.f32 %v481, %v611
      %v613 = vpop.f32.mrb[0].mxu0
      %v614 = vadd.f32 %v481, %v613
      %615 = vmatprep.mubr.f32.mxu0 0.0
      %616 = vmatmul.mubr.f32.gmra.mrb[0].mxu0 %v519
      %v617 = vpop.f32.mrb[0].mxu0
      %v618 = vadd.f32 %v486, %v617
      %v619 = vpop.f32.mrb[0].mxu0
      %v620 = vadd.f32 %v486, %v619
      %621 = vmatprep.mubr.f32.mxu0 0.0
      %622 = vmatmul.mubr.f32.gmra.mrb[0].mxu0 %v522
      %v623 = vpop.f32.mrb[0].mxu0
      %v624 = vadd.f32 %v491, %v623
      %v625 = vpop.f32.mrb[0].mxu0
      %v626 = vadd.f32 %v491, %v625
      %627 = vmatprep.mubr.f32.mxu0 0.0
      %628 = vmatmul.mubr.f32.gmra.mrb[0].mxu0 %v525
      %v629 = vpop.f32.mrb[0].mxu0
      %v630 = vadd.f32 %v496, %v629
      %v631 = vpop.f32.mrb[0].mxu0
      %v632 = vadd.f32 %v496, %v631
      %633 = vmatprep.mubr.f32.mxu0 0.0
      %634 = vmatmul.mubr.f32.gmra.mrb[0].mxu0 %v528
      %v635 = vpop.f32.mrb[0].mxu0
      %v636 = vadd.f32 %v501, %v635
      %v637 = vpop.f32.mrb[0].mxu0
      %v638 = vadd.f32 %v501, %v637
      %639 = vmatprep.mubr.f32.mxu0 0.0
      %640 = vmatmul.mubr.f32.gmra.mrb[0].mxu0 %v531
      %v641 = vpop.f32.mrb[0].mxu0
      %v642 = vadd.f32 %v506, %v641
      %v643 = vpop.f32.mrb[0].mxu0
      %v644 = vadd.f32 %v506, %v643
      %645 = vdwg.mxu0
      %v646 = vmax.f32 %v600, 0.0
      %v647 = vmax.f32 %v602, 0.0
      %v648 = vmax.f32 %v606, 0.0
      %v649 = vmax.f32 %v608, 0.0
      %v650 = vmax.f32 %v612, 0.0
      %v651 = vmax.f32 %v614, 0.0
      %v652 = vmax.f32 %v618, 0.0
      %v653 = vmax.f32 %v620, 0.0
      %v654 = vmax.f32 %v624, 0.0
      %v655 = vmax.f32 %v626, 0.0
      %v656 = vmax.f32 %v630, 0.0
      %v657 = vmax.f32 %v632, 0.0
      %v658 = vmax.f32 %v636, 0.0
      %v659 = vmax.f32 %v638, 0.0
      %v660 = vmax.f32 %v642, 0.0
      %v661 = vmax.f32 %v644, 0.0
      %v662 = vld [vmem:[%s5] sm:$0xff]
      %v663 = vld [vmem:[%s5 + $0x8] sm:$0xff]
      %v664 = vld [vmem:[%s5 + $0x10] sm:$0xff]
      %v665 = vld [vmem:[%s5 + $0x18] sm:$0xff]
      %v666 = vld [vmem:[%s5 + $0x20] sm:$0xff]
      %v667 = vld [vmem:[%s5 + $0x28] sm:$0xff]
      %v668 = vld [vmem:[%s5 + $0x30] sm:$0xff]
      %v669 = vld [vmem:[%s5 + $0x38] sm:$0xff]
      %v670 = vld [vmem:[%s6] sm:$0xff]
      %v671 = vld [vmem:[%s6 + $0x8] sm:$0xff]
      %v672 = vld [vmem:[%s6 + $0x10] sm:$0xff]
      %v673 = vld [vmem:[%s6 + $0x18] sm:$0xff]
      %v674 = vld [vmem:[%s6 + $0x20] sm:$0xff]
      %v675 = vld [vmem:[%s6 + $0x28] sm:$0xff]
      %v676 = vld [vmem:[%s6 + $0x30] sm:$0xff]
      %v677 = vld [vmem:[%s6 + $0x38] sm:$0xff]
      %679 = vset.pattern.permute.xlu0 0
      %680 = vperm.xlu0 %679, %v670
      %v681 = vpop.permute.xlu0 %680
      %684 = vset.pattern.permute.xlu0 0
      %685 = vperm.xlu0 %684, %v671
      %v686 = vpop.permute.xlu0 %685
      %689 = vset.pattern.permute.xlu0 0
      %690 = vperm.xlu0 %689, %v672
      %v691 = vpop.permute.xlu0 %690
      %694 = vset.pattern.permute.xlu0 0
      %695 = vperm.xlu0 %694, %v673
      %v696 = vpop.permute.xlu0 %695
      %699 = vset.pattern.permute.xlu0 0
      %700 = vperm.xlu0 %699, %v674
      %v701 = vpop.permute.xlu0 %700
      %704 = vset.pattern.permute.xlu0 0
      %705 = vperm.xlu0 %704, %v675
      %v706 = vpop.permute.xlu0 %705
      %709 = vset.pattern.permute.xlu0 0
      %710 = vperm.xlu0 %709, %v676
      %v711 = vpop.permute.xlu0 %710
      %714 = vset.pattern.permute.xlu0 0
      %715 = vperm.xlu0 %714, %v677
      %v716 = vpop.permute.xlu0 %715
      %vm718 = vcmask 523264
      %v720 = vsel %vm718, %v662, 0
      %v723 = vsel %vm718, %v663, 0
      %v726 = vsel %vm718, %v664, 0
      %v729 = vsel %vm718, %v665, 0
      %v732 = vsel %vm718, %v666, 0
      %v735 = vsel %vm718, %v667, 0
      %v738 = vsel %vm718, %v668, 0
      %v741 = vsel %vm718, %v669, 0
      %743 = vmatprep.subr.mxu0 %v647
      %744 = vmatpush1.msra.mxu0 %v646
      %745 = vmatprep.subr.mxu0 %v649
      %746 = vmatpush1.msra.mxu0 %v648
      %747 = vmatprep.subr.mxu0 %v651
      %748 = vmatpush1.msra.mxu0 %v650
      %749 = vmatprep.subr.mxu0 %v653
      %750 = vmatpush1.msra.mxu0 %v652
      %751 = vmatprep.subr.mxu0 %v655
      %752 = vmatpush1.msra.mxu0 %v654
      %753 = vmatprep.subr.mxu0 %v657
      %754 = vmatpush1.msra.mxu0 %v656
      %755 = vmatprep.subr.mxu0 %v659
      %756 = vmatpush1.msra.mxu0 %v658
      %757 = vmatprep.subr.mxu0 %v661
      %758 = vmatpush1.msra.mxu0 %v660
      %759 = vmatprep.subr.mxu0 0.0
      %760 = vmatpush1.msra.mxu0 0.0
      %761 = vmatprep.subr.mxu0 0.0
      %762 = vmatpush1.msra.mxu0 0.0
      %763 = vmatprep.subr.mxu0 0.0
      %764 = vmatpush1.msra.mxu0 0.0
      %765 = vmatprep.subr.mxu0 0.0
      %766 = vmatpush1.msra.mxu0 0.0
      %767 = vmatprep.subr.mxu0 0.0
      %768 = vmatpush1.msra.mxu0 0.0
      %769 = vmatprep.subr.mxu0 0.0
      %770 = vmatpush1.msra.mxu0 0.0
      %771 = vmatprep.subr.mxu0 0.0
      %772 = vmatpush1.msra.mxu0 0.0
      %773 = vmatprep.subr.mxu0 0.0
      %774 = vmatpush1.msra.mxu0 0.0
      %775 = vmatprep.subr.mxu0 0.0
      %776 = vmatpush1.msra.mxu0 0.0
      %777 = vmatprep.subr.mxu0 0.0
      %778 = vmatpush1.msra.mxu0 0.0
      %779 = vmatprep.subr.mxu0 0.0
      %780 = vmatpush1.msra.mxu0 0.0
      %781 = vmatprep.subr.mxu0 0.0
      %782 = vmatpush1.msra.mxu0 0.0
      %783 = vmatprep.subr.mxu0 0.0
      %784 = vmatpush1.msra.mxu0 0.0
      %785 = vmatprep.subr.mxu0 0.0
      %786 = vmatpush1.msra.mxu0 0.0
      %787 = vmatprep.subr.mxu0 0.0
      %788 = vmatpush1.msra.mxu0 0.0
      %789 = vmatprep.subr.mxu0 0.0
      %790 = vmatpush1.msra.mxu0 0.0
      %791 = vmatprep.subr.mxu0 0.0
      %792 = vmatpush1.msra.mxu0 0.0
      %793 = vmatprep.subr.mxu0 0.0
      %794 = vmatpush1.msra.mxu0 0.0
      %795 = vmatprep.subr.mxu0 0.0
      %796 = vmatpush1.msra.mxu0 0.0
      %797 = vmatprep.subr.mxu0 0.0
      %798 = vmatpush1.msra.mxu0 0.0
      %799 = vmatprep.subr.mxu0 0.0
      %800 = vmatpush1.msra.mxu0 0.0
      %801 = vmatprep.subr.mxu0 0.0
      %802 = vmatpush1.msra.mxu0 0.0
      %803 = vmatprep.subr.mxu0 0.0
      %804 = vmatpush1.msra.mxu0 0.0
      %805 = vmatprep.subr.mxu0 0.0
      %806 = vmatpush1.msra.mxu0 0.0
      %807 = vmatprep.mubr.f32.mxu0 0.0
      %808 = vmatmul.mubr.f32.gmra.mrb[0].mxu0 %v720
      %v809 = vpop.f32.mrb[0].mxu0
      %v810 = vadd.f32 %v681, %v809
      %v811 = vpop.f32.mrb[0].mxu0
      %v812 = vadd.f32 %v681, %v811
      %813 = vmatprep.mubr.f32.mxu0 0.0
      %814 = vmatmul.mubr.f32.gmra.mrb[0].mxu0 %v723
      %v815 = vpop.f32.mrb[0].mxu0
      %v816 = vadd.f32 %v686, %v815
      %v817 = vpop.f32.mrb[0].mxu0
      %v818 = vadd.f32 %v686, %v817
      %819 = vmatprep.mubr.f32.mxu0 0.0
      %820 = vmatmul.mubr.f32.gmra.mrb[0].mxu0 %v726
      %v821 = vpop.f32.mrb[0].mxu0
      %v822 = vadd.f32 %v691, %v821
      %v823 = vpop.f32.mrb[0].mxu0
      %v824 = vadd.f32 %v691, %v823
      %825 = vmatprep.mubr.f32.mxu0 0.0
      %826 = vmatmul.mubr.f32.gmra.mrb[0].mxu0 %v729
      %v827 = vpop.f32.mrb[0].mxu0
      %v828 = vadd.f32 %v696, %v827
      %v829 = vpop.f32.mrb[0].mxu0
      %v830 = vadd.f32 %v696, %v829
      %831 = vmatprep.mubr.f32.mxu0 0.0
      %832 = vmatmul.mubr.f32.gmra.mrb[0].mxu0 %v732
      %v833 = vpop.f32.mrb[0].mxu0
      %v834 = vadd.f32 %v701, %v833
      %v835 = vpop.f32.mrb[0].mxu0
      %v836 = vadd.f32 %v701, %v835
      %837 = vmatprep.mubr.f32.mxu0 0.0
      %838 = vmatmul.mubr.f32.gmra.mrb[0].mxu0 %v735
      %v839 = vpop.f32.mrb[0].mxu0
      %v840 = vadd.f32 %v706, %v839
      %v841 = vpop.f32.mrb[0].mxu0
      %v842 = vadd.f32 %v706, %v841
      %843 = vmatprep.mubr.f32.mxu0 0.0
      %844 = vmatmul.mubr.f32.gmra.mrb[0].mxu0 %v738
      %v845 = vpop.f32.mrb[0].mxu0
      %v846 = vadd.f32 %v711, %v845
      %v847 = vpop.f32.mrb[0].mxu0
      %v848 = vadd.f32 %v711, %v847
      %849 = vmatprep.mubr.f32.mxu0 0.0
      %850 = vmatmul.mubr.f32.gmra.mrb[0].mxu0 %v741
      %v851 = vpop.f32.mrb[0].mxu0
      %v852 = vadd.f32 %v716, %v851
      %v853 = vpop.f32.mrb[0].mxu0
      %v854 = vadd.f32 %v716, %v853
      %855 = vdwg.mxu0
      %v856 = vmax.f32 %v810, 0.0
      %v857 = vmax.f32 %v812, 0.0
      %v858 = vmax.f32 %v816, 0.0
      %v859 = vmax.f32 %v818, 0.0
      %v860 = vmax.f32 %v822, 0.0
      %v861 = vmax.f32 %v824, 0.0
      %v862 = vmax.f32 %v828, 0.0
      %v863 = vmax.f32 %v830, 0.0
      %v864 = vmax.f32 %v834, 0.0
      %v865 = vmax.f32 %v836, 0.0
      %v866 = vmax.f32 %v840, 0.0
      %v867 = vmax.f32 %v842, 0.0
      %v868 = vmax.f32 %v846, 0.0
      %v869 = vmax.f32 %v848, 0.0
      %v870 = vmax.f32 %v852, 0.0
      %v871 = vmax.f32 %v854, 0.0
      %872 = vst [vmem:[%s316] sm:$0xff] %v856
      %873 = vst [vmem:[%s316 + $0x8] sm:$0xff] %v857
      %874 = vst [vmem:[%s316 + $0x10] sm:$0xff] %v858
      %875 = vst [vmem:[%s316 + $0x18] sm:$0xff] %v859
      %876 = vst [vmem:[%s316 + $0x20] sm:$0xff] %v860
      %877 = vst [vmem:[%s316 + $0x28] sm:$0xff] %v861
      %878 = vst [vmem:[%s316 + $0x30] sm:$0xff] %v862
      %879 = vst [vmem:[%s316 + $0x38] sm:$0xff] %v863
      %880 = vst [vmem:[%s316 + $0x40] sm:$0xff] %v864
      %881 = vst [vmem:[%s316 + $0x48] sm:$0xff] %v865
      %882 = vst [vmem:[%s316 + $0x50] sm:$0xff] %v866
      %883 = vst [vmem:[%s316 + $0x58] sm:$0xff] %v867
      %884 = vst [vmem:[%s316 + $0x60] sm:$0xff] %v868
      %885 = vst [vmem:[%s316 + $0x68] sm:$0xff] %v869
      %886 = vst [vmem:[%s316 + $0x70] sm:$0xff] %v870
      %887 = vst [vmem:[%s316 + $0x78] sm:$0xff] %v871
      %s888 = smul.u32 2, %s23
      %p889 = scmp.lt.s32.totalorder %s22, 1
      %s890 = scalar_select %p889, %s22, 1
      %p891 = scmp.lt.s32.totalorder %s888, 1
      %s892 = scalar_select %p891, %s888, 1
      %s893 = smul.addr %s890, 16
      %s894 = sadd.s32 %s892, %s893
      %s895 = smul.addr %s894, 8
      %s896 = scalar_lea.vmem %s7, %s895
      // Predicated region
      $region49: #{h_synthesis_transform.2} parent=47 // pred_check
        %p897 = pneg %p204
      $region50: #{h_synthesis_transform.2} parent=47 // pred_check_branch
        %899 = sbr.rel (%p897) target = $region52
      $region51: #{h_synthesis_transform.2} parent=47 // pred_region
        %s900 = smul.u32 2, %s23
      $region52: #{h_synthesis_transform.2} parent=47 // pred_fallthru
        _
    $region48: #{h_synthesis_transform.2} parent=5 // pred_fallthru
      _
    %p901 = scmp.le.s32.totalorder 2, %s13
    // Predicated region
    $region53: #{h_synthesis_transform.2} parent=5 // pred_check
      %p902 = pneg %p901
    $region54: #{h_synthesis_transform.2} parent=5 // pred_check_branch
      %904 = sbr.rel (%p902) target = $region56
    $region55: #{h_synthesis_transform.2} parent=5 // pred_region
      %s905 = ssub.s32 %s13, 2
      // Predicated region
      $region57: #{h_synthesis_transform.2} parent=55 // pred_check
        %p906 = pneg %p210
      $region58: #{h_synthesis_transform.2} parent=55 // pred_check_branch
        %908 = sbr.rel (%p906) target = $region60
      $region59: #{h_synthesis_transform.2} parent=55 // pred_region
        %s909 = smul.u32 2, %s25
        %p910 = scmp.lt.s32.totalorder %s24, 1
        %s911 = scalar_select %p910, %s24, 1
        %p912 = scmp.lt.s32.totalorder %s909, 1
        %s913 = scalar_select %p912, %s909, 1
        %s914 = smul.addr %s911, 16
        %s915 = sadd.s32 %s913, %s914
        %s916 = smul.addr %s915, 8
        %s917 = scalar_lea.vmem %s7, %s916
      $region60: #{h_synthesis_transform.2} parent=55 // pred_fallthru
        _
    $region56: #{h_synthesis_transform.2} parent=5 // pred_fallthru
      _
  $region6: #{h_synthesis_transform.2} parent=0 // loop_footer
    %s17 = sadd.s32 1, %s13
  $region7: #{h_synthesis_transform.2} parent=0 // loop_footer_branch
    %12 = sbr.rel target = $region3
  $region8: #{h_synthesis_transform.2} parent=0 // loop_exit
    _

// kernel: h_synthesis_transform.3
$region0: #{h_synthesis_transform.3}
  #allocation0 [shape = 'u32[]', space=smem, size = 0x4, offset = 0x4, fixed_abs, tag = 'smem constant byte address 0x4 - core index']
  #allocation1 [shape = 'u32[144,128]{1,0:T(1,128)}', space=vmem, size = 0x12000, scoped, tag = 'internal scratch']
  %s0 = inlined_call_operand.vmem [shape: f32[2,16,1090], index: 0, kind: input, shape index: {}]
  %s1 = inlined_call_operand.vmem [shape: f32[3,3,8,16], index: 1, kind: input, shape index: {}]
  %s2 = inlined_call_operand.vmem [shape: f32[8,1], index: 2, kind: input, shape index: {}]
  %s3 = inlined_call_operand.vmem [shape: f32[1,1024], index: 3, kind: input, shape index: {}]
  %s4 = inlined_call_operand.vmem [shape: f32[1,1024], index: 4, kind: input, shape index: {}]
  %s5 = inlined_call_operand.vmem [shape: f32[2,8,1024], index: 5, kind: output, shape index: {}]
  %s6 = sld [smem:[#allocation0]]
  $region53: #{h_synthesis_transform.3} parent=0
    _
  %s8 = ssub.s32 1, %s6
  %s9 = scalar_select 0, %s8, %s6
  loop: start=0, step=1, limit=4
  $region2: #{h_synthesis_transform.3} parent=0 // loop_pre_header
    _
  $region3: #{h_synthesis_transform.3} parent=0 // loop_header
    %s11 = sphi 0, %s15
    %p12 = scmp.ge.s32.totalorder %s11, 4
    %s21 = sphi 0, %s23
    %s24 = sphi 0, %s21
    %s25 = sphi 0, %s24
    %s41 = sphi 0, %s25
    %s45 = sphi 0, %s45
    %s47 = sphi 0, %s45
    %s48 = sphi 0, %s47
    %s62 = sphi 0, %s48
    %s66 = sphi 0, %s66
    %s68 = sphi 0, %s66
    %s69 = sphi 0, %s68
    %s83 = sphi 0, %s69
    %s87 = sphi 0, %s87
    %s89 = sphi 0, %s87
    %s90 = sphi 0, %s89
    %s104 = sphi 0, %s90
    %s108 = sphi 0, %s108
    %s110 = sphi 0, %s108
    %s111 = sphi 0, %s110
    %s125 = sphi 0, %s111
    %s131 = sphi 0, %s133
    %s134 = sphi 0, %s131
    %s135 = sphi 0, %s134
    %s151 = sphi 0, %s135
  $region4: #{h_synthesis_transform.3} parent=0 // loop_header_branch
    %14 = sbr.rel (%p12) target = $region8
  $region5: #{h_synthesis_transform.3} parent=0 // loop_body
    %s16 = ssub.s32 %s11, 1
    %s17 = ssub.s32 %s11, 2
    %s18 = sadd.s32 %s11, 1
    %s19 = ssub.s32 %s11, %s18
    %p20 = scmp.eq.s32.totalorder %s19, 0
    %s22 = sadd.s32 %s21, 1
    %s23 = scalar_select %p20, %s21, %s22
    %p26 = pneg %p20
    %p27 = scmp.eq.s32.totalorder %s11, 1
    %p28 = por %p26, %p27
    %p29 = scmp.ne.s32.totalorder %s21, %s24
    %p30 = scmp.eq.s32.totalorder %s11, 0
    %p31 = por %p29, %p30
    %p32 = scmp.ne.s32.totalorder %s21, %s24
    %p33 = scmp.eq.s32.totalorder %s16, 1
    %p34 = por %p32, %p33
    %p35 = scmp.ne.s32.totalorder %s24, %s25
    %p36 = scmp.eq.s32.totalorder %s16, 0
    %p37 = por %p35, %p36
    %p38 = scmp.ne.s32.totalorder %s24, %s25
    %p39 = scmp.eq.s32.totalorder %s17, 1
    %p40 = por %p38, %p39
    %p42 = scmp.ne.s32.totalorder %s25, %s41
    %p43 = scmp.eq.s32.totalorder %s17, 0
    %p44 = por %p42, %p43
    %s46 = sadd.s32 %s45, 1
    %p49 = scmp.eq.s32.totalorder %s11, 1
    %p50 = scmp.ne.s32.totalorder %s45, %s47
    %p51 = scmp.eq.s32.totalorder %s11, 0
    %p52 = por %p50, %p51
    %p53 = scmp.ne.s32.totalorder %s45, %s47
    %p54 = scmp.eq.s32.totalorder %s16, 1
    %p55 = por %p53, %p54
    %p56 = scmp.ne.s32.totalorder %s47, %s48
    %p57 = scmp.eq.s32.totalorder %s16, 0
    %p58 = por %p56, %p57
    %p59 = scmp.ne.s32.totalorder %s47, %s48
    %p60 = scmp.eq.s32.totalorder %s17, 1
    %p61 = por %p59, %p60
    %p63 = scmp.ne.s32.totalorder %s48, %s62
    %p64 = scmp.eq.s32.totalorder %s17, 0
    %p65 = por %p63, %p64
    %s67 = sadd.s32 %s66, 1
    %p70 = scmp.eq.s32.totalorder %s11, 1
    %p71 = scmp.ne.s32.totalorder %s66, %s68
    %p72 = scmp.eq.s32.totalorder %s11, 0
    %p73 = por %p71, %p72
    %p74 = scmp.ne.s32.totalorder %s66, %s68
    %p75 = scmp.eq.s32.totalorder %s16, 1
    %p76 = por %p74, %p75
    %p77 = scmp.ne.s32.totalorder %s68, %s69
    %p78 = scmp.eq.s32.totalorder %s16, 0
    %p79 = por %p77, %p78
    %p80 = scmp.ne.s32.totalorder %s68, %s69
    %p81 = scmp.eq.s32.totalorder %s17, 1
    %p82 = por %p80, %p81
    %p84 = scmp.ne.s32.totalorder %s69, %s83
    %p85 = scmp.eq.s32.totalorder %s17, 0
    %p86 = por %p84, %p85
    %s88 = sadd.s32 %s87, 1
    %p91 = scmp.eq.s32.totalorder %s11, 1
    %p92 = scmp.ne.s32.totalorder %s87, %s89
    %p93 = scmp.eq.s32.totalorder %s11, 0
    %p94 = por %p92, %p93
    %p95 = scmp.ne.s32.totalorder %s87, %s89
    %p96 = scmp.eq.s32.totalorder %s16, 1
    %p97 = por %p95, %p96
    %p98 = scmp.ne.s32.totalorder %s89, %s90
    %p99 = scmp.eq.s32.totalorder %s16, 0
    %p100 = por %p98, %p99
    %p101 = scmp.ne.s32.totalorder %s89, %s90
    %p102 = scmp.eq.s32.totalorder %s17, 1
    %p103 = por %p101, %p102
    %p105 = scmp.ne.s32.totalorder %s90, %s104
    %p106 = scmp.eq.s32.totalorder %s17, 0
    %p107 = por %p105, %p106
    %s109 = sadd.s32 %s108, 1
    %p112 = scmp.eq.s32.totalorder %s11, 1
    %p113 = scmp.ne.s32.totalorder %s108, %s110
    %p114 = scmp.eq.s32.totalorder %s11, 0
    %p115 = por %p113, %p114
    %p116 = scmp.ne.s32.totalorder %s108, %s110
    %p117 = scmp.eq.s32.totalorder %s16, 1
    %p118 = por %p116, %p117
    %p119 = scmp.ne.s32.totalorder %s110, %s111
    %p120 = scmp.eq.s32.totalorder %s16, 0
    %p121 = por %p119, %p120
    %p122 = scmp.ne.s32.totalorder %s110, %s111
    %p123 = scmp.eq.s32.totalorder %s17, 1
    %p124 = por %p122, %p123
    %p126 = scmp.ne.s32.totalorder %s111, %s125
    %p127 = scmp.eq.s32.totalorder %s17, 0
    %p128 = por %p126, %p127
    %s129 = ssub.s32 %s11, %s18
    %p130 = scmp.eq.s32.totalorder %s129, 0
    %s132 = sadd.s32 %s131, 1
    %s133 = scalar_select %p130, %s131, %s132
    %p136 = pneg %p130
    %p137 = scmp.eq.s32.totalorder %s11, 1
    %p138 = por %p136, %p137
    %p139 = scmp.ne.s32.totalorder %s131, %s134
    %p140 = scmp.eq.s32.totalorder %s11, 0
    %p141 = por %p139, %p140
    %p142 = scmp.ne.s32.totalorder %s131, %s134
    %p143 = scmp.eq.s32.totalorder %s16, 1
    %p144 = por %p142, %p143
    %p145 = scmp.ne.s32.totalorder %s134, %s135
    %p146 = scmp.eq.s32.totalorder %s16, 0
    %p147 = por %p145, %p146
    %p148 = scmp.ne.s32.totalorder %s134, %s135
    %p149 = scmp.eq.s32.totalorder %s17, 1
    %p150 = por %p148, %p149
    %p152 = scmp.ne.s32.totalorder %s135, %s151
    %p153 = scmp.eq.s32.totalorder %s17, 0
    %p154 = por %p152, %p153
    %p155 = scmp.le.s32.totalorder 1, %s11
    %p156 = scmp.lt.s32.totalorder %s11, 3
    %p157 = pnand %p155, %p156
    %p158 = pneg %p157
    // Predicated region
    $region9: #{h_synthesis_transform.3} parent=5 // pred_check
      _
    $region10: #{h_synthesis_transform.3} parent=5 // pred_check_branch
      %160 = sbr.rel (%p157) target = $region12
    $region11: #{h_synthesis_transform.3} parent=5 // pred_region
      %s161 = ssub.s32 %s11, 1
      // Predicated region
      $region13: #{h_synthesis_transform.3} parent=11 // pred_check
        %p162 = pneg %p58
      $region14: #{h_synthesis_transform.3} parent=11 // pred_check_branch
        %164 = sbr.rel (%p162) target = $region16
      $region15: #{h_synthesis_transform.3} parent=11 // pred_region
        _
      $region16: #{h_synthesis_transform.3} parent=11 // pred_fallthru
        _
      // Predicated region
      $region17: #{h_synthesis_transform.3} parent=11 // pred_check
        %p165 = pneg %p79
      $region18: #{h_synthesis_transform.3} parent=11 // pred_check_branch
        %167 = sbr.rel (%p165) target = $region20
      $region19: #{h_synthesis_transform.3} parent=11 // pred_region
        _
      $region20: #{h_synthesis_transform.3} parent=11 // pred_fallthru
        _
      // Predicated region
      $region21: #{h_synthesis_transform.3} parent=11 // pred_check
        %p168 = pneg %p100
      $region22: #{h_synthesis_transform.3} parent=11 // pred_check_branch
        %170 = sbr.rel (%p168) target = $region24
      $region23: #{h_synthesis_transform.3} parent=11 // pred_region
        _
      $region24: #{h_synthesis_transform.3} parent=11 // pred_fallthru
        _
      // Predicated region
      $region25: #{h_synthesis_transform.3} parent=11 // pred_check
        %p171 = pneg %p121
      $region26: #{h_synthesis_transform.3} parent=11 // pred_check_branch
        %173 = sbr.rel (%p171) target = $region28
      $region27: #{h_synthesis_transform.3} parent=11 // pred_region
        _
      $region28: #{h_synthesis_transform.3} parent=11 // pred_fallthru
        _
    $region12: #{h_synthesis_transform.3} parent=5 // pred_fallthru
      _
    %p174 = scmp.lt.s32.totalorder %s11, 2
    // Predicated region
    $region29: #{h_synthesis_transform.3} parent=5 // pred_check
      %p175 = pneg %p174
    $region30: #{h_synthesis_transform.3} parent=5 // pred_check_branch
      %177 = sbr.rel (%p175) target = $region32
    $region31: #{h_synthesis_transform.3} parent=5 // pred_region
      // Predicated region
      $region33: #{h_synthesis_transform.3} parent=31 // pred_check
        %p178 = pneg %p31
      $region34: #{h_synthesis_transform.3} parent=31 // pred_check_branch
        %180 = sbr.rel (%p178) target = $region36
      $region35: #{h_synthesis_transform.3} parent=31 // pred_region
        %p181 = scmp.lt.s32.totalorder %s11, 1
        %s182 = scalar_select %p181, %s11, 1
        %s183 = smul.addr %s182, 18
        %s184 = smul.addr %s183, 8
        %s185 = scalar_lea.vmem %s0, %s184
      $region36: #{h_synthesis_transform.3} parent=31 // pred_fallthru
        _
    $region32: #{h_synthesis_transform.3} parent=5 // pred_fallthru
      _
    %p186 = scmp.le.s32.totalorder 1, %s11
    %p187 = scmp.lt.s32.totalorder %s11, 3
    %p188 = pnand %p186, %p187
    %p189 = pneg %p188
    // Predicated region
    $region37: #{h_synthesis_transform.3} parent=5 // pred_check
      _
    $region38: #{h_synthesis_transform.3} parent=5 // pred_check_branch
      %191 = sbr.rel (%p188) target = $region40
    $region39: #{h_synthesis_transform.3} parent=5 // pred_region
      %s192 = ssub.s32 %s11, 1
      %p193 = scmp.lt.s32.totalorder %s16, 1
      %s194 = scalar_select %p193, %s16, 1
      %s195 = smul.addr %s194, 18
      %s196 = smul.addr %s195, 8
      %s197 = scalar_lea.vmem %s0, %s196
      %p198 = pneg %p37
      %p199 = pneg %p34
      %p200 = pneg %p58
      %p201 = pneg %p55
      %p202 = pneg %p79
      %p203 = pneg %p76
      %p204 = pneg %p100
      %p205 = pneg %p97
      %p206 = pneg %p121
      %p207 = pneg %p118
      %p208 = pneg %p147
      %p209 = pneg %p144
      %p210 = scmp.lt.s32.totalorder %s16, 1
      %s211 = scalar_select %p210, %s16, 1
      %s212 = smul.addr %s211, 8
      %s213 = smul.addr %s212, 8
      %s214 = scalar_lea.vmem %s5, %s213
      %p215 = scmp.lt.s32.totalorder %s16, 1
      %s216 = scalar_select %p215, %s16, 1
      %s217 = smul.addr %s216, 18
      %s218 = smul.addr %s217, 8
      %s219 = scalar_lea.vmem %s0, %s218
      %p220 = scmp.lt.s32.totalorder %s16, 1
      %s221 = scalar_select %p220, %s16, 1
      %s222 = smul.addr %s221, 8
      %s223 = smul.addr %s222, 8
      %s224 = scalar_lea.vmem %s5, %s223
      %v225 = vld [vmem:[%s219] sm:$0xff]
      %v226 = vld [vmem:[%s219 + $0x8] sm:$0xff]
      %v227 = vld [vmem:[%s219 + $0x10] sm:$0xff]
      %v228 = vld [vmem:[%s219 + $0x18] sm:$0xff]
      %v229 = vld [vmem:[%s219 + $0x20] sm:$0xff]
      %v230 = vld [vmem:[%s219 + $0x28] sm:$0xff]
      %v231 = vld [vmem:[%s219 + $0x30] sm:$0xff]
      %v232 = vld [vmem:[%s219 + $0x38] sm:$0xff]
      %v233 = vld [vmem:[%s219 + $0x48] sm:$0xff]
      %v234 = vld [vmem:[%s219 + $0x50] sm:$0xff]
      %v235 = vld [vmem:[%s219 + $0x58] sm:$0xff]
      %v236 = vld [vmem:[%s219 + $0x60] sm:$0xff]
      %v237 = vld [vmem:[%s219 + $0x68] sm:$0xff]
      %v238 = vld [vmem:[%s219 + $0x70] sm:$0xff]
      %v239 = vld [vmem:[%s219 + $0x78] sm:$0xff]
      %v240 = vld [vmem:[%s219 + $0x80] sm:$0xff]
      %v241 = vld [vmem:[%s1] sm:$0xff]
      %vm242 = vcmask 130048
      %v244 = vsel %vm242, %v241, 0
      %246 = vmatprep.subr.mxu0 %v226
      %247 = vmatpush1.msra.mxu0 %v225
      %248 = vmatprep.subr.mxu0 %v234
      %249 = vmatpush1.msra.mxu0 %v233
      %250 = vmatprep.subr.mxu0 0.0
      %251 = vmatpush1.msra.mxu0 0.0
      %252 = vmatprep.subr.mxu0 0.0
      %253 = vmatpush1.msra.mxu0 0.0
      %254 = vmatprep.subr.mxu0 0.0
      %255 = vmatpush1.msra.mxu0 0.0
      %256 = vmatprep.subr.mxu0 0.0
      %257 = vmatpush1.msra.mxu0 0.0
      %258 = vmatprep.subr.mxu0 0.0
      %259 = vmatpush1.msra.mxu0 0.0
      %260 = vmatprep.subr.mxu0 0.0
      %261 = vmatpush1.msra.mxu0 0.0
      %262 = vmatprep.subr.mxu0 0.0
      %263 = vmatpush1.msra.mxu0 0.0
      %264 = vmatprep.subr.mxu0 0.0
      %265 = vmatpush1.msra.mxu0 0.0
      %266 = vmatprep.subr.mxu0 0.0
      %267 = vmatpush1.msra.mxu0 0.0
      %268 = vmatprep.subr.mxu0 0.0
      %269 = vmatpush1.msra.mxu0 0.0
      %270 = vmatprep.subr.mxu0 0.0
      %271 = vmatpush1.msra.mxu0 0.0
      %272 = vmatprep.subr.mxu0 0.0
      %273 = vmatpush1.msra.mxu0 0.0
      %274 = vmatprep.subr.mxu0 0.0
      %275 = vmatpush1.msra.mxu0 0.0
      %276 = vmatprep.subr.mxu0 0.0
      %277 = vmatpush1.msra.mxu0 0.0
      %278 = vmatprep.subr.mxu0 0.0
      %279 = vmatpush1.msra.mxu0 0.0
      %280 = vmatprep.subr.mxu0 0.0
      %281 = vmatpush1.msra.mxu0 0.0
      %282 = vmatprep.subr.mxu0 0.0
      %283 = vmatpush1.msra.mxu0 0.0
      %284 = vmatprep.subr.mxu0 0.0
      %285 = vmatpush1.msra.mxu0 0.0
      %286 = vmatprep.subr.mxu0 0.0
      %287 = vmatpush1.msra.mxu0 0.0
      %288 = vmatprep.subr.mxu0 0.0
      %289 = vmatpush1.msra.mxu0 0.0
      %290 = vmatprep.subr.mxu0 0.0
      %291 = vmatpush1.msra.mxu0 0.0
      %292 = vmatprep.subr.mxu0 0.0
      %293 = vmatpush1.msra.mxu0 0.0
      %294 = vmatprep.subr.mxu0 0.0
      %295 = vmatpush1.msra.mxu0 0.0
      %296 = vmatprep.subr.mxu0 0.0
      %297 = vmatpush1.msra.mxu0 0.0
      %298 = vmatprep.subr.mxu0 0.0
      %299 = vmatpush1.msra.mxu0 0.0
      %300 = vmatprep.subr.mxu0 0.0
      %301 = vmatpush1.msra.mxu0 0.0
      %302 = vmatprep.subr.mxu0 0.0
      %303 = vmatpush1.msra.mxu0 0.0
      %304 = vmatprep.subr.mxu0 0.0
      %305 = vmatpush1.msra.mxu0 0.0
      %306 = vmatprep.subr.mxu0 0.0
      %307 = vmatpush1.msra.mxu0 0.0
      %308 = vmatprep.subr.mxu0 0.0
      %309 = vmatpush1.msra.mxu0 0.0
      %310 = vmatprep.mubr.f32.mxu0 0.0
      %311 = vmatmul.mubr.f32.gmra.mrb[0].mxu0 %v244
      %v312 = vpop.f32.mrb[0].mxu0
      %v313 = vadd.f32 0.0, %v312
      %v314 = vpop.f32.mrb[0].mxu0
      %v315 = vadd.f32 0.0, %v314
      %316 = vdwg.mxu0
      %317 = vmatprep.subr.mxu0 %v228
      %318 = vmatpush1.msra.mxu0 %v227
      %319 = vmatprep.subr.mxu0 %v236
      %320 = vmatpush1.msra.mxu0 %v235
      %321 = vmatprep.subr.mxu0 0.0
      %322 = vmatpush1.msra.mxu0 0.0
      %323 = vmatprep.subr.mxu0 0.0
      %324 = vmatpush1.msra.mxu0 0.0
      %325 = vmatprep.subr.mxu0 0.0
      %326 = vmatpush1.msra.mxu0 0.0
      %327 = vmatprep.subr.mxu0 0.0
      %328 = vmatpush1.msra.mxu0 0.0
      %329 = vmatprep.subr.mxu0 0.0
      %330 = vmatpush1.msra.mxu0 0.0
      %331 = vmatprep.subr.mxu0 0.0
      %332 = vmatpush1.msra.mxu0 0.0
      %333 = vmatprep.subr.mxu0 0.0
      %334 = vmatpush1.msra.mxu0 0.0
      %335 = vmatprep.subr.mxu0 0.0
      %336 = vmatpush1.msra.mxu0 0.0
      %337 = vmatprep.subr.mxu0 0.0
      %338 = vmatpush1.msra.mxu0 0.0
      %339 = vmatprep.subr.mxu0 0.0
      %340 = vmatpush1.msra.mxu0 0.0
      %341 = vmatprep.subr.mxu0 0.0
      %342 = vmatpush1.msra.mxu0 0.0
      %343 = vmatprep.subr.mxu0 0.0
      %344 = vmatpush1.msra.mxu0 0.0
      %345 = vmatprep.subr.mxu0 0.0
      %346 = vmatpush1.msra.mxu0 0.0
      %347 = vmatprep.subr.mxu0 0.0
      %348 = vmatpush1.msra.mxu0 0.0
      %349 = vmatprep.subr.mxu0 0.0
      %350 = vmatpush1.msra.mxu0 0.0
      %351 = vmatprep.subr.mxu0 0.0
      %352 = vmatpush1.msra.mxu0 0.0
      %353 = vmatprep.subr.mxu0 0.0
      %354 = vmatpush1.msra.mxu0 0.0
      %355 = vmatprep.subr.mxu0 0.0
      %356 = vmatpush1.msra.mxu0 0.0
      %357 = vmatprep.subr.mxu0 0.0
      %358 = vmatpush1.msra.mxu0 0.0
      %359 = vmatprep.subr.mxu0 0.0
      %360 = vmatpush1.msra.mxu0 0.0
      %361 = vmatprep.subr.mxu0 0.0
      %362 = vmatpush1.msra.mxu0 0.0
      %363 = vmatprep.subr.mxu0 0.0
      %364 = vmatpush1.msra.mxu0 0.0
      %365 = vmatprep.subr.mxu0 0.0
      %366 = vmatpush1.msra.mxu0 0.0
      %367 = vmatprep.subr.mxu0 0.0
      %368 = vmatpush1.msra.mxu0 0.0
      %369 = vmatprep.subr.mxu0 0.0
      %370 = vmatpush1.msra.mxu0 0.0
      %371 = vmatprep.subr.mxu0 0.0
      %372 = vmatpush1.msra.mxu0 0.0
      %373 = vmatprep.subr.mxu0 0.0
      %374 = vmatpush1.msra.mxu0 0.0
      %375 = vmatprep.subr.mxu0 0.0
      %376 = vmatpush1.msra.mxu0 0.0
      %377 = vmatprep.subr.mxu0 0.0
      %378 = vmatpush1.msra.mxu0 0.0
      %379 = vmatprep.subr.mxu0 0.0
      %380 = vmatpush1.msra.mxu0 0.0
      %381 = vmatprep.mubr.f32.mxu0 0.0
      %382 = vmatmul.mubr.f32.gmra.mrb[0].mxu0 %v244
      %v383 = vpop.f32.mrb[0].mxu0
      %v384 = vadd.f32 0.0, %v383
      %v385 = vpop.f32.mrb[0].mxu0
      %v386 = vadd.f32 0.0, %v385
      %387 = vdwg.mxu0
      %388 = vmatprep.subr.mxu0 %v230
      %389 = vmatpush1.msra.mxu0 %v229
      %390 = vmatprep.subr.mxu0 %v238
      %391 = vmatpush1.msra.mxu0 %v237
      %392 = vmatprep.subr.mxu0 0.0
      %393 = vmatpush1.msra.mxu0 0.0
      %394 = vmatprep.subr.mxu0 0.0
      %395 = vmatpush1.msra.mxu0 0.0
      %396 = vmatprep.subr.mxu0 0.0
      %397 = vmatpush1.msra.mxu0 0.0
      %398 = vmatprep.subr.mxu0 0.0
      %399 = vmatpush1.msra.mxu0 0.0
      %400 = vmatprep.subr.mxu0 0.0
      %401 = vmatpush1.msra.mxu0 0.0
      %402 = vmatprep.subr.mxu0 0.0
      %403 = vmatpush1.msra.mxu0 0.0
      %404 = vmatprep.subr.mxu0 0.0
      %405 = vmatpush1.msra.mxu0 0.0
      %406 = vmatprep.subr.mxu0 0.0
      %407 = vmatpush1.msra.mxu0 0.0
      %408 = vmatprep.subr.mxu0 0.0
      %409 = vmatpush1.msra.mxu0 0.0
      %410 = vmatprep.subr.mxu0 0.0
      %411 = vmatpush1.msra.mxu0 0.0
      %412 = vmatprep.subr.mxu0 0.0
      %413 = vmatpush1.msra.mxu0 0.0
      %414 = vmatprep.subr.mxu0 0.0
      %415 = vmatpush1.msra.mxu0 0.0
      %416 = vmatprep.subr.mxu0 0.0
      %417 = vmatpush1.msra.mxu0 0.0
      %418 = vmatprep.subr.mxu0 0.0
      %419 = vmatpush1.msra.mxu0 0.0
      %420 = vmatprep.subr.mxu0 0.0
      %421 = vmatpush1.msra.mxu0 0.0
      %422 = vmatprep.subr.mxu0 0.0
      %423 = vmatpush1.msra.mxu0 0.0
      %424 = vmatprep.subr.mxu0 0.0
      %425 = vmatpush1.msra.mxu0 0.0
      %426 = vmatprep.subr.mxu0 0.0
      %427 = vmatpush1.msra.mxu0 0.0
      %428 = vmatprep.subr.mxu0 0.0
      %429 = vmatpush1.msra.mxu0 0.0
      %430 = vmatprep.subr.mxu0 0.0
      %431 = vmatpush1.msra.mxu0 0.0
      %432 = vmatprep.subr.mxu0 0.0
      %433 = vmatpush1.msra.mxu0 0.0
      %434 = vmatprep.subr.mxu0 0.0
      %435 = vmatpush1.msra.mxu0 0.0
      %436 = vmatprep.subr.mxu0 0.0
      %437 = vmatpush1.msra.mxu0 0.0
      %438 = vmatprep.subr.mxu0 0.0
      %439 = vmatpush1.msra.mxu0 0.0
      %440 = vmatprep.subr.mxu0 0.0
      %441 = vmatpush1.msra.mxu0 0.0
      %442 = vmatprep.subr.mxu0 0.0
      %443 = vmatpush1.msra.mxu0 0.0
      %444 = vmatprep.subr.mxu0 0.0
      %445 = vmatpush1.msra.mxu0 0.0
      %446 = vmatprep.subr.mxu0 0.0
      %447 = vmatpush1.msra.mxu0 0.0
      %448 = vmatprep.subr.mxu0 0.0
      %449 = vmatpush1.msra.mxu0 0.0
      %450 = vmatprep.subr.mxu0 0.0
      %451 = vmatpush1.msra.mxu0 0.0
      %452 = vmatprep.mubr.f32.mxu0 0.0
      %453 = vmatmul.mubr.f32.gmra.mrb[0].mxu0 %v244
      %v454 = vpop.f32.mrb[0].mxu0
      %v455 = vadd.f32 0.0, %v454
      %v456 = vpop.f32.mrb[0].mxu0
      %v457 = vadd.f32 0.0, %v456
      %458 = vdwg.mxu0
      %459 = vmatprep.subr.mxu0 %v232
      %460 = vmatpush1.msra.mxu0 %v231
      %461 = vmatprep.subr.mxu0 %v240
      %462 = vmatpush1.msra.mxu0 %v239
      %463 = vmatprep.subr.mxu0 0.0
      %464 = vmatpush1.msra.mxu0 0.0
      %465 = vmatprep.subr.mxu0 0.0
      %466 = vmatpush1.msra.mxu0 0.0
      %467 = vmatprep.subr.mxu0 0.0
      %468 = vmatpush1.msra.mxu0 0.0
      %469 = vmatprep.subr.mxu0 0.0
      %470 = vmatpush1.msra.mxu0 0.0
      %471 = vmatprep.subr.mxu0 0.0
      %472 = vmatpush1.msra.mxu0 0.0
      %473 = vmatprep.subr.mxu0 0.0
      %474 = vmatpush1.msra.mxu0 0.0
      %475 = vmatprep.subr.mxu0 0.0
      %476 = vmatpush1.msra.mxu0 0.0
      %477 = vmatprep.subr.mxu0 0.0
      %478 = vmatpush1.msra.mxu0 0.0
      %479 = vmatprep.subr.mxu0 0.0
      %480 = vmatpush1.msra.mxu0 0.0
      %481 = vmatprep.subr.mxu0 0.0
      %482 = vmatpush1.msra.mxu0 0.0
      %483 = vmatprep.subr.mxu0 0.0
      %484 = vmatpush1.msra.mxu0 0.0
      %485 = vmatprep.subr.mxu0 0.0
      %486 = vmatpush1.msra.mxu0 0.0
      %487 = vmatprep.subr.mxu0 0.0
      %488 = vmatpush1.msra.mxu0 0.0
      %489 = vmatprep.subr.mxu0 0.0
      %490 = vmatpush1.msra.mxu0 0.0
      %491 = vmatprep.subr.mxu0 0.0
      %492 = vmatpush1.msra.mxu0 0.0
      %493 = vmatprep.subr.mxu0 0.0
      %494 = vmatpush1.msra.mxu0 0.0
      %495 = vmatprep.subr.mxu0 0.0
      %496 = vmatpush1.msra.mxu0 0.0
      %497 = vmatprep.subr.mxu0 0.0
      %498 = vmatpush1.msra.mxu0 0.0
      %499 = vmatprep.subr.mxu0 0.0
      %500 = vmatpush1.msra.mxu0 0.0
      %501 = vmatprep.subr.mxu0 0.0
      %502 = vmatpush1.msra.mxu0 0.0
      %503 = vmatprep.subr.mxu0 0.0
      %504 = vmatpush1.msra.mxu0 0.0
      %505 = vmatprep.subr.mxu0 0.0
      %506 = vmatpush1.msra.mxu0 0.0
      %507 = vmatprep.subr.mxu0 0.0
      %508 = vmatpush1.msra.mxu0 0.0
      %509 = vmatprep.subr.mxu0 0.0
      %510 = vmatpush1.msra.mxu0 0.0
      %511 = vmatprep.subr.mxu0 0.0
      %512 = vmatpush1.msra.mxu0 0.0
      %513 = vmatprep.subr.mxu0 0.0
      %514 = vmatpush1.msra.mxu0 0.0
      %515 = vmatprep.subr.mxu0 0.0
      %516 = vmatpush1.msra.mxu0 0.0
      %517 = vmatprep.subr.mxu0 0.0
      %518 = vmatpush1.msra.mxu0 0.0
      %519 = vmatprep.subr.mxu0 0.0
      %520 = vmatpush1.msra.mxu0 0.0
      %521 = vmatprep.subr.mxu0 0.0
      %522 = vmatpush1.msra.mxu0 0.0
      %523 = vmatprep.mubr.f32.mxu0 0.0
      %524 = vmatmul.mubr.f32.gmra.mrb[0].mxu0 %v244
      %v525 = vpop.f32.mrb[0].mxu0
      %v526 = vadd.f32 0.0, %v525
      %v527 = vpop.f32.mrb[0].mxu0
      %v528 = vadd.f32 0.0, %v527
      %529 = vdwg.mxu0
      %v530 = vld [vmem:[%s3] sm:$0xff]
      %v532 = vlaneseq
      %v533 = vshrl.u32 %v532, 7
      %v534 = vsub.s32 0, %v533
      %v535 = vrot.slane %v530, %v534
      %v536 = vlaneseq
      %v537 = vshrl.u32 %v536, 7
      %v538 = vsub.s32 1, %v537
      %v539 = vrot.slane %v530, %v538
      %v540 = vlaneseq
      %v541 = vshrl.u32 %v540, 7
      %v542 = vsub.s32 2, %v541
      %v543 = vrot.slane %v530, %v542
      %v544 = vlaneseq
      %v545 = vshrl.u32 %v544, 7
      %v546 = vsub.s32 3, %v545
      %v547 = vrot.slane %v530, %v546
      %v548 = vlaneseq
      %v549 = vshrl.u32 %v548, 7
      %v550 = vsub.s32 4, %v549
      %v551 = vrot.slane %v530, %v550
      %v552 = vlaneseq
      %v553 = vshrl.u32 %v552, 7
      %v554 = vsub.s32 5, %v553
      %v555 = vrot.slane %v530, %v554
      %v556 = vlaneseq
      %v557 = vshrl.u32 %v556, 7
      %v558 = vsub.s32 6, %v557
      %v559 = vrot.slane %v530, %v558
      %v560 = vlaneseq
      %v561 = vshrl.u32 %v560, 7
      %v562 = vsub.s32 7, %v561
      %v563 = vrot.slane %v530, %v562
      %v572 = vmul.f32 %v313, %v535
      %v573 = vmul.f32 %v315, %v539
      %v574 = vmul.f32 %v384, %v543
      %v575 = vmul.f32 %v386, %v547
      %v576 = vmul.f32 %v455, %v551
      %v577 = vmul.f32 %v457, %v555
      %v578 = vmul.f32 %v526, %v559
      %v579 = vmul.f32 %v528, %v563
      %v580 = vadd.f32 %v572, 0.0
      %v581 = vadd.f32 %v573, 0.0
      %v582 = vadd.f32 %v574, 0.0
      %v583 = vadd.f32 %v575, 0.0
      %v584 = vadd.f32 %v576, 0.0
      %v585 = vadd.f32 %v577, 0.0
      %v586 = vadd.f32 %v578, 0.0
      %v587 = vadd.f32 %v579, 0.0
      %v588 = vld [vmem:[%s219] sm:$0xff]
      %v589 = vld [vmem:[%s219 + $0x8] sm:$0xff]
      %v590 = vld [vmem:[%s219 + $0x10] sm:$0xff]
      %v591 = vld [vmem:[%s219 + $0x18] sm:$0xff]
      %v592 = vld [vmem:[%s219 + $0x20] sm:$0xff]
      %v593 = vld [vmem:[%s219 + $0x28] sm:$0xff]
      %v594 = vld [vmem:[%s219 + $0x30] sm:$0xff]
      %v595 = vld [vmem:[%s219 + $0x38] sm:$0xff]
      %v596 = vld [vmem:[%s219 + $0x40] sm:$0xff]
      %v597 = vld [vmem:[%s219 + $0x48] sm:$0xff]
      %v598 = vld [vmem:[%s219 + $0x50] sm:$0xff]
      %v599 = vld [vmem:[%s219 + $0x58] sm:$0xff]
      %v600 = vld [vmem:[%s219 + $0x60] sm:$0xff]
      %v601 = vld [vmem:[%s219 + $0x68] sm:$0xff]
      %v602 = vld [vmem:[%s219 + $0x70] sm:$0xff]
      %v603 = vld [vmem:[%s219 + $0x78] sm:$0xff]
      %v604 = vld [vmem:[%s219 + $0x80] sm:$0xff]
      %v605 = vld [vmem:[%s219 + $0x88] sm:$0xff]
      %s606 = scalar_lea.vmem %s1, 8
      %v607 = vld [vmem:[%s606] sm:$0xff]
      %626 = vrot.lane.b32.xlu0 %v588, 127
      %v627 = vpop.permute.xlu0 %626
      %628 = vrot.lane.b32.xlu0 %v589, 127
      %v629 = vpop.permute.xlu0 %628
      %630 = vrot.lane.b32.xlu0 %v590, 127
      %v631 = vpop.permute.xlu0 %630
      %632 = vrot.lane.b32.xlu0 %v591, 127
      %v633 = vpop.permute.xlu0 %632
      %634 = vrot.lane.b32.xlu0 %v592, 127
      %v635 = vpop.permute.xlu0 %634
      %636 = vrot.lane.b32.xlu0 %v593, 127
      %v637 = vpop.permute.xlu0 %636
      %638 = vrot.lane.b32.xlu0 %v594, 127
      %v639 = vpop.permute.xlu0 %638
      %640 = vrot.lane.b32.xlu0 %v595, 127
      %v641 = vpop.permute.xlu0 %640
      %642 = vrot.lane.b32.xlu0 %v596, 127
      %v643 = vpop.permute.xlu0 %642
      %644 = vrot.lane.b32.xlu0 %v597, 127
      %v645 = vpop.permute.xlu0 %644
      %646 = vrot.lane.b32.xlu0 %v598, 127
      %v647 = vpop.permute.xlu0 %646
      %648 = vrot.lane.b32.xlu0 %v599, 127
      %v649 = vpop.permute.xlu0 %648
      %650 = vrot.lane.b32.xlu0 %v600, 127
      %v651 = vpop.permute.xlu0 %650
      %652 = vrot.lane.b32.xlu0 %v601, 127
      %v653 = vpop.permute.xlu0 %652
      %654 = vrot.lane.b32.xlu0 %v602, 127
      %v655 = vpop.permute.xlu0 %654
      %656 = vrot.lane.b32.xlu0 %v603, 127
      %v657 = vpop.permute.xlu0 %656
      %658 = vrot.lane.b32.xlu0 %v604, 127
      %v659 = vpop.permute.xlu0 %658
      %660 = vrot.lane.b32.xlu0 %v605, 127
      %v661 = vpop.permute.xlu0 %660
      %vm662 = vcmask 1039360
      %v663 = vsel %vm662, %v627, %v629
      %v664 = vsel %vm662, %v629, %v631
      %v665 = vsel %vm662, %v631, %v633
      %v666 = vsel %vm662, %v633, %v635
      %v667 = vsel %vm662, %v635, %v637
      %v668 = vsel %vm662, %v637, %v639
      %v669 = vsel %vm662, %v639, %v641
      %v670 = vsel %vm662, %v641, %v643
      %v671 = vsel %vm662, %v645, %v647
      %v672 = vsel %vm662, %v647, %v649
      %v673 = vsel %vm662, %v649, %v651
      %v674 = vsel %vm662, %v651, %v653
      %v675 = vsel %vm662, %v653, %v655
      %v676 = vsel %vm662, %v655, %v657
      %v677 = vsel %vm662, %v657, %v659
      %v678 = vsel %vm662, %v659, %v661
      %v696 = vsel %vm242, %v607, 0
      %698 = vmatprep.subr.mxu0 %v664
      %699 = vmatpush1.msra.mxu0 %v663
      %700 = vmatprep.subr.mxu0 %v672
      %701 = vmatpush1.msra.mxu0 %v671
      %702 = vmatprep.subr.mxu0 0.0
      %703 = vmatpush1.msra.mxu0 0.0
      %704 = vmatprep.subr.mxu0 0.0
      %705 = vmatpush1.msra.mxu0 0.0
      %706 = vmatprep.subr.mxu0 0.0
      %707 = vmatpush1.msra.mxu0 0.0
      %708 = vmatprep.subr.mxu0 0.0
      %709 = vmatpush1.msra.mxu0 0.0
      %710 = vmatprep.subr.mxu0 0.0
      %711 = vmatpush1.msra.mxu0 0.0
      %712 = vmatprep.subr.mxu0 0.0
      %713 = vmatpush1.msra.mxu0 0.0
      %714 = vmatprep.subr.mxu0 0.0
      %715 = vmatpush1.msra.mxu0 0.0
      %716 = vmatprep.subr.mxu0 0.0
      %717 = vmatpush1.msra.mxu0 0.0
      %718 = vmatprep.subr.mxu0 0.0
      %719 = vmatpush1.msra.mxu0 0.0
      %720 = vmatprep.subr.mxu0 0.0
      %721 = vmatpush1.msra.mxu0 0.0
      %722 = vmatprep.subr.mxu0 0.0
      %723 = vmatpush1.msra.mxu0 0.0
      %724 = vmatprep.subr.mxu0 0.0
      %725 = vmatpush1.msra.mxu0 0.0
      %726 = vmatprep.subr.mxu0 0.0
      %727 = vmatpush1.msra.mxu0 0.0
      %728 = vmatprep.subr.mxu0 0.0
      %729 = vmatpush1.msra.mxu0 0.0
      %730 = vmatprep.subr.mxu0 0.0
      %731 = vmatpush1.msra.mxu0 0.0
      %732 = vmatprep.subr.mxu0 0.0
      %733 = vmatpush1.msra.mxu0 0.0
      %734 = vmatprep.subr.mxu0 0.0
      %735 = vmatpush1.msra.mxu0 0.0
      %736 = vmatprep.subr.mxu0 0.0
      %737 = vmatpush1.msra.mxu0 0.0
      %738 = vmatprep.subr.mxu0 0.0
      %739 = vmatpush1.msra.mxu0 0.0
      %740 = vmatprep.subr.mxu0 0.0
      %741 = vmatpush1.msra.mxu0 0.0
      %742 = vmatprep.subr.mxu0 0.0
      %743 = vmatpush1.msra.mxu0 0.0
      %744 = vmatprep.subr.mxu0 0.0
      %745 = vmatpush1.msra.mxu0 0.0
      %746 = vmatprep.subr.mxu0 0.0
      %747 = vmatpush1.msra.mxu0 0.0
      %748 = vmatprep.subr.mxu0 0.0
      %749 = vmatpush1.msra.mxu0 0.0
      %750 = vmatprep.subr.mxu0 0.0
      %751 = vmatpush1.msra.mxu0 0.0
      %752 = vmatprep.subr.mxu0 0.0
      %753 = vmatpush1.msra.mxu0 0.0
      %754 = vmatprep.subr.mxu0 0.0
      %755 = vmatpush1.msra.mxu0 0.0
      %756 = vmatprep.subr.mxu0 0.0
      %757 = vmatpush1.msra.mxu0 0.0
      %758 = vmatprep.subr.mxu0 0.0
      %759 = vmatpush1.msra.mxu0 0.0
      %760 = vmatprep.subr.mxu0 0.0
      %761 = vmatpush1.msra.mxu0 0.0
      %762 = vmatprep.mubr.f32.mxu0 0.0
      %763 = vmatmul.mubr.f32.gmra.mrb[0].mxu0 %v696
      %v764 = vpop.f32.mrb[0].mxu0
      %v765 = vadd.f32 0.0, %v764
      %v766 = vpop.f32.mrb[0].mxu0
      %v767 = vadd.f32 0.0, %v766
      %768 = vdwg.mxu0
      %769 = vmatprep.subr.mxu0 %v666
      %770 = vmatpush1.msra.mxu0 %v665
      %771 = vmatprep.subr.mxu0 %v674
      %772 = vmatpush1.msra.mxu0 %v673
      %773 = vmatprep.subr.mxu0 0.0
      %774 = vmatpush1.msra.mxu0 0.0
      %775 = vmatprep.subr.mxu0 0.0
      %776 = vmatpush1.msra.mxu0 0.0
      %777 = vmatprep.subr.mxu0 0.0
      %778 = vmatpush1.msra.mxu0 0.0
      %779 = vmatprep.subr.mxu0 0.0
      %780 = vmatpush1.msra.mxu0 0.0
      %781 = vmatprep.subr.mxu0 0.0
      %782 = vmatpush1.msra.mxu0 0.0
      %783 = vmatprep.subr.mxu0 0.0
      %784 = vmatpush1.msra.mxu0 0.0
      %785 = vmatprep.subr.mxu0 0.0
      %786 = vmatpush1.msra.mxu0 0.0
      %787 = vmatprep.subr.mxu0 0.0
      %788 = vmatpush1.msra.mxu0 0.0
      %789 = vmatprep.subr.mxu0 0.0
      %790 = vmatpush1.msra.mxu0 0.0
      %791 = vmatprep.subr.mxu0 0.0
      %792 = vmatpush1.msra.mxu0 0.0
      %793 = vmatprep.subr.mxu0 0.0
      %794 = vmatpush1.msra.mxu0 0.0
      %795 = vmatprep.subr.mxu0 0.0
      %796 = vmatpush1.msra.mxu0 0.0
      %797 = vmatprep.subr.mxu0 0.0
      %798 = vmatpush1.msra.mxu0 0.0
      %799 = vmatprep.subr.mxu0 0.0
      %800 = vmatpush1.msra.mxu0 0.0
      %801 = vmatprep.subr.mxu0 0.0
      %802 = vmatpush1.msra.mxu0 0.0
      %803 = vmatprep.subr.mxu0 0.0
      %804 = vmatpush1.msra.mxu0 0.0
      %805 = vmatprep.subr.mxu0 0.0
      %806 = vmatpush1.msra.mxu0 0.0
      %807 = vmatprep.subr.mxu0 0.0
      %808 = vmatpush1.msra.mxu0 0.0
      %809 = vmatprep.subr.mxu0 0.0
      %810 = vmatpush1.msra.mxu0 0.0
      %811 = vmatprep.subr.mxu0 0.0
      %812 = vmatpush1.msra.mxu0 0.0
      %813 = vmatprep.subr.mxu0 0.0
      %814 = vmatpush1.msra.mxu0 0.0
      %815 = vmatprep.subr.mxu0 0.0
      %816 = vmatpush1.msra.mxu0 0.0
      %817 = vmatprep.subr.mxu0 0.0
      %818 = vmatpush1.msra.mxu0 0.0
      %819 = vmatprep.subr.mxu0 0.0
      %820 = vmatpush1.msra.mxu0 0.0
      %821 = vmatprep.subr.mxu0 0.0
      %822 = vmatpush1.msra.mxu0 0.0
      %823 = vmatprep.subr.mxu0 0.0
      %824 = vmatpush1.msra.mxu0 0.0
      %825 = vmatprep.subr.mxu0 0.0
      %826 = vmatpush1.msra.mxu0 0.0
      %827 = vmatprep.subr.mxu0 0.0
      %828 = vmatpush1.msra.mxu0 0.0
      %829 = vmatprep.subr.mxu0 0.0
      %830 = vmatpush1.msra.mxu0 0.0
      %831 = vmatprep.subr.mxu0 0.0
      %832 = vmatpush1.msra.mxu0 0.0
      %833 = vmatprep.mubr.f32.mxu0 0.0
      %834 = vmatmul.mubr.f32.gmra.mrb[0].mxu0 %v696
      %v835 = vpop.f32.mrb[0].mxu0
      %v836 = vadd.f32 0.0, %v835
      %v837 = vpop.f32.mrb[0].mxu0
      %v838 = vadd.f32 0.0, %v837
      %839 = vdwg.mxu0
      %840 = vmatprep.subr.mxu0 %v668
      %841 = vmatpush1.msra.mxu0 %v667
      %842 = vmatprep.subr.mxu0 %v676
      %843 = vmatpush1.msra.mxu0 %v675
      %844 = vmatprep.subr.mxu0 0.0
      %845 = vmatpush1.msra.mxu0 0.0
      %846 = vmatprep.subr.mxu0 0.0
      %847 = vmatpush1.msra.mxu0 0.0
      %848 = vmatprep.subr.mxu0 0.0
      %849 = vmatpush1.msra.mxu0 0.0
      %850 = vmatprep.subr.mxu0 0.0
      %851 = vmatpush1.msra.mxu0 0.0
      %852 = vmatprep.subr.mxu0 0.0
      %853 = vmatpush1.msra.mxu0 0.0
      %854 = vmatprep.subr.mxu0 0.0
      %855 = vmatpush1.msra.mxu0 0.0
      %856 = vmatprep.subr.mxu0 0.0
      %857 = vmatpush1.msra.mxu0 0.0
      %858 = vmatprep.subr.mxu0 0.0
      %859 = vmatpush1.msra.mxu0 0.0
      %860 = vmatprep.subr.mxu0 0.0
      %861 = vmatpush1.msra.mxu0 0.0
      %862 = vmatprep.subr.mxu0 0.0
      %863 = vmatpush1.msra.mxu0 0.0
      %864 = vmatprep.subr.mxu0 0.0
      %865 = vmatpush1.msra.mxu0 0.0
      %866 = vmatprep.subr.mxu0 0.0
      %867 = vmatpush1.msra.mxu0 0.0
      %868 = vmatprep.subr.mxu0 0.0
      %869 = vmatpush1.msra.mxu0 0.0
      %870 = vmatprep.subr.mxu0 0.0
      %871 = vmatpush1.msra.mxu0 0.0
      %872 = vmatprep.subr.mxu0 0.0
      %873 = vmatpush1.msra.mxu0 0.0
      %874 = vmatprep.subr.mxu0 0.0
      %875 = vmatpush1.msra.mxu0 0.0
      %876 = vmatprep.subr.mxu0 0.0
      %877 = vmatpush1.msra.mxu0 0.0
      %878 = vmatprep.subr.mxu0 0.0
      %879 = vmatpush1.msra.mxu0 0.0
      %880 = vmatprep.subr.mxu0 0.0
      %881 = vmatpush1.msra.mxu0 0.0
      %882 = vmatprep.subr.mxu0 0.0
      %883 = vmatpush1.msra.mxu0 0.0
      %884 = vmatprep.subr.mxu0 0.0
      %885 = vmatpush1.msra.mxu0 0.0
      %886 = vmatprep.subr.mxu0 0.0
      %887 = vmatpush1.msra.mxu0 0.0
      %888 = vmatprep.subr.mxu0 0.0
      %889 = vmatpush1.msra.mxu0 0.0
      %890 = vmatprep.subr.mxu0 0.0
      %891 = vmatpush1.msra.mxu0 0.0
      %892 = vmatprep.subr.mxu0 0.0
      %893 = vmatpush1.msra.mxu0 0.0
      %894 = vmatprep.subr.mxu0 0.0
      %895 = vmatpush1.msra.mxu0 0.0
      %896 = vmatprep.subr.mxu0 0.0
      %897 = vmatpush1.msra.mxu0 0.0
      %898 = vmatprep.subr.mxu0 0.0
      %899 = vmatpush1.msra.mxu0 0.0
      %900 = vmatprep.subr.mxu0 0.0
      %901 = vmatpush1.msra.mxu0 0.0
      %902 = vmatprep.subr.mxu0 0.0
      %903 = vmatpush1.msra.mxu0 0.0
      %904 = vmatprep.mubr.f32.mxu0 0.0
      %905 = vmatmul.mubr.f32.gmra.mrb[0].mxu0 %v696
      %v906 = vpop.f32.mrb[0].mxu0
      %v907 = vadd.f32 0.0, %v906
      %v908 = vpop.f32.mrb[0].mxu0
      %v909 = vadd.f32 0.0, %v908
      %910 = vdwg.mxu0
      %911 = vmatprep.subr.mxu0 %v670
      %912 = vmatpush1.msra.mxu0 %v669
      %913 = vmatprep.subr.mxu0 %v678
      %914 = vmatpush1.msra.mxu0 %v677
      %915 = vmatprep.subr.mxu0 0.0
      %916 = vmatpush1.msra.mxu0 0.0
      %917 = vmatprep.subr.mxu0 0.0
      %918 = vmatpush1.msra.mxu0 0.0
      %919 = vmatprep.subr.mxu0 0.0
      %920 = vmatpush1.msra.mxu0 0.0
      %921 = vmatprep.subr.mxu0 0.0
      %922 = vmatpush1.msra.mxu0 0.0
      %923 = vmatprep.subr.mxu0 0.0
      %924 = vmatpush1.msra.mxu0 0.0
      %925 = vmatprep.subr.mxu0 0.0
      %926 = vmatpush1.msra.mxu0 0.0
      %927 = vmatprep.subr.mxu0 0.0
      %928 = vmatpush1.msra.mxu0 0.0
      %929 = vmatprep.subr.mxu0 0.0
      %930 = vmatpush1.msra.mxu0 0.0
      %931 = vmatprep.subr.mxu0 0.0
      %932 = vmatpush1.msra.mxu0 0.0
      %933 = vmatprep.subr.mxu0 0.0
      %934 = vmatpush1.msra.mxu0 0.0
      %935 = vmatprep.subr.mxu0 0.0
      %936 = vmatpush1.msra.mxu0 0.0
      %937 = vmatprep.subr.mxu0 0.0
      %938 = vmatpush1.msra.mxu0 0.0
      %939 = vmatprep.subr.mxu0 0.0
      %940 = vmatpush1.msra.mxu0 0.0
      %941 = vmatprep.subr.mxu0 0.0
      %942 = vmatpush1.msra.mxu0 0.0
      %943 = vmatprep.subr.mxu0 0.0
      %944 = vmatpush1.msra.mxu0 0.0
      %945 = vmatprep.subr.mxu0 0.0
      %946 = vmatpush1.msra.mxu0 0.0
      %947 = vmatprep.subr.mxu0 0.0
      %948 = vmatpush1.msra.mxu0 0.0
      %949 = vmatprep.subr.mxu0 0.0
      %950 = vmatpush1.msra.mxu0 0.0
      %951 = vmatprep.subr.mxu0 0.0
      %952 = vmatpush1.msra.mxu0 0.0
      %953 = vmatprep.subr.mxu0 0.0
      %954 = vmatpush1.msra.mxu0 0.0
      %955 = vmatprep.subr.mxu0 0.0
      %956 = vmatpush1.msra.mxu0 0.0
      %957 = vmatprep.subr.mxu0 0.0
      %958 = vmatpush1.msra.mxu0 0.0
      %959 = vmatprep.subr.mxu0 0.0
      %960 = vmatpush1.msra.mxu0 0.0
      %961 = vmatprep.subr.mxu0 0.0
      %962 = vmatpush1.msra.mxu0 0.0
      %963 = vmatprep.subr.mxu0 0.0
      %964 = vmatpush1.msra.mxu0 0.0
      %965 = vmatprep.subr.mxu0 0.0
      %966 = vmatpush1.msra.mxu0 0.0
      %967 = vmatprep.subr.mxu0 0.0
      %968 = vmatpush1.msra.mxu0 0.0
      %969 = vmatprep.subr.mxu0 0.0
      %970 = vmatpush1.msra.mxu0 0.0
      %971 = vmatprep.subr.mxu0 0.0
      %972 = vmatpush1.msra.mxu0 0.0
      %973 = vmatprep.subr.mxu0 0.0
      %974 = vmatpush1.msra.mxu0 0.0
      %975 = vmatprep.mubr.f32.mxu0 0.0
      %976 = vmatmul.mubr.f32.gmra.mrb[0].mxu0 %v696
      %v977 = vpop.f32.mrb[0].mxu0
      %v978 = vadd.f32 0.0, %v977
      %v979 = vpop.f32.mrb[0].mxu0
      %v980 = vadd.f32 0.0, %v979
      %981 = vdwg.mxu0
      %v982 = vadd.f32 %v580, %v765
      %v983 = vadd.f32 %v581, %v767
      %v984 = vadd.f32 %v582, %v836
      %v985 = vadd.f32 %v583, %v838
      %v986 = vadd.f32 %v584, %v907
      %v987 = vadd.f32 %v585, %v909
      %v988 = vadd.f32 %v586, %v978
      %v989 = vadd.f32 %v587, %v980
      %s990 = scalar_lea.vmem %s1, 16
      %v991 = vld [vmem:[%s990] sm:$0xff]
      %992 = vrot.lane.b32.xlu0 %v588, 126
      %v993 = vpop.permute.xlu0 %992
      %994 = vrot.lane.b32.xlu0 %v589, 126
      %v995 = vpop.permute.xlu0 %994
      %996 = vrot.lane.b32.xlu0 %v590, 126
      %v997 = vpop.permute.xlu0 %996
      %998 = vrot.lane.b32.xlu0 %v591, 126
      %v999 = vpop.permute.xlu0 %998
      %1000 = vrot.lane.b32.xlu0 %v592, 126
      %v1001 = vpop.permute.xlu0 %1000
      %1002 = vrot.lane.b32.xlu0 %v593, 126
      %v1003 = vpop.permute.xlu0 %1002
      %1004 = vrot.lane.b32.xlu0 %v594, 126
      %v1005 = vpop.permute.xlu0 %1004
      %1006 = vrot.lane.b32.xlu0 %v595, 126
      %v1007 = vpop.permute.xlu0 %1006
      %1008 = vrot.lane.b32.xlu0 %v596, 126
      %v1009 = vpop.permute.xlu0 %1008
      %1010 = vrot.lane.b32.xlu0 %v597, 126
      %v1011 = vpop.permute.xlu0 %1010
      %1012 = vrot.lane.b32.xlu0 %v598, 126
      %v1013 = vpop.permute.xlu0 %1012
      %1014 = vrot.lane.b32.xlu0 %v599, 126
      %v1015 = vpop.permute.xlu0 %1014
      %1016 = vrot.lane.b32.xlu0 %v600, 126
      %v1017 = vpop.permute.xlu0 %1016
      %1018 = vrot.lane.b32.xlu0 %v601, 126
      %v1019 = vpop.permute.xlu0 %1018
      %1020 = vrot.lane.b32.xlu0 %v602, 126
      %v1021 = vpop.permute.xlu0 %1020
      %1022 = vrot.lane.b32.xlu0 %v603, 126
      %v1023 = vpop.permute.xlu0 %1022
      %1024 = vrot.lane.b32.xlu0 %v604, 126
      %v1025 = vpop.permute.xlu0 %1024
      %1026 = vrot.lane.b32.xlu0 %v605, 126
      %v1027 = vpop.permute.xlu0 %1026
      %vm1028 = vcmask 1031168
      %v1029 = vsel %vm1028, %v993, %v995
      %v1030 = vsel %vm1028, %v995, %v997
      %v1031 = vsel %vm1028, %v997, %v999
      %v1032 = vsel %vm1028, %v999, %v1001
      %v1033 = vsel %vm1028, %v1001, %v1003
      %v1034 = vsel %vm1028, %v1003, %v1005
      %v1035 = vsel %vm1028, %v1005, %v1007
      %v1036 = vsel %vm1028, %v1007, %v1009
      %v1037 = vsel %vm1028, %v1011, %v1013
      %v1038 = vsel %vm1028, %v1013, %v1015
      %v1039 = vsel %vm1028, %v1015, %v1017
      %v1040 = vsel %vm1028, %v1017, %v1019
      %v1041 = vsel %vm1028, %v1019, %v1021
      %v1042 = vsel %vm1028, %v1021, %v1023
      %v1043 = vsel %vm1028, %v1023, %v1025
      %v1044 = vsel %vm1028, %v1025, %v1027
      %v1062 = vsel %vm242, %v991, 0
      %1064 = vmatprep.subr.mxu0 %v1030
      %1065 = vmatpush1.msra.mxu0 %v1029
      %1066 = vmatprep.subr.mxu0 %v1038
      %1067 = vmatpush1.msra.mxu0 %v1037
      %1068 = vmatprep.subr.mxu0 0.0
      %1069 = vmatpush1.msra.mxu0 0.0
      %1070 = vmatprep.subr.mxu0 0.0
      %1071 = vmatpush1.msra.mxu0 0.0
      %1072 = vmatprep.subr.mxu0 0.0
      %1073 = vmatpush1.msra.mxu0 0.0
      %1074 = vmatprep.subr.mxu0 0.0
      %1075 = vmatpush1.msra.mxu0 0.0
      %1076 = vmatprep.subr.mxu0 0.0
      %1077 = vmatpush1.msra.mxu0 0.0
      %1078 = vmatprep.subr.mxu0 0.0
      %1079 = vmatpush1.msra.mxu0 0.0
      %1080 = vmatprep.subr.mxu0 0.0
      %1081 = vmatpush1.msra.mxu0 0.0
      %1082 = vmatprep.subr.mxu0 0.0
      %1083 = vmatpush1.msra.mxu0 0.0
      %1084 = vmatprep.subr.mxu0 0.0
      %1085 = vmatpush1.msra.mxu0 0.0
      %1086 = vmatprep.subr.mxu0 0.0
      %1087 = vmatpush1.msra.mxu0 0.0
      %1088 = vmatprep.subr.mxu0 0.0
      %1089 = vmatpush1.msra.mxu0 0.0
      %1090 = vmatprep.subr.mxu0 0.0
      %1091 = vmatpush1.msra.mxu0 0.0
      %1092 = vmatprep.subr.mxu0 0.0
      %1093 = vmatpush1.msra.mxu0 0.0
      %1094 = vmatprep.subr.mxu0 0.0
      %1095 = vmatpush1.msra.mxu0 0.0
      %1096 = vmatprep.subr.mxu0 0.0
      %1097 = vmatpush1.msra.mxu0 0.0
      %1098 = vmatprep.subr.mxu0 0.0
      %1099 = vmatpush1.msra.mxu0 0.0
      %1100 = vmatprep.subr.mxu0 0.0
      %1101 = vmatpush1.msra.mxu0 0.0
      %1102 = vmatprep.subr.mxu0 0.0
      %1103 = vmatpush1.msra.mxu0 0.0
      %1104 = vmatprep.subr.mxu0 0.0
      %1105 = vmatpush1.msra.mxu0 0.0
      %1106 = vmatprep.subr.mxu0 0.0
      %1107 = vmatpush1.msra.mxu0 0.0
      %1108 = vmatprep.subr.mxu0 0.0
      %1109 = vmatpush1.msra.mxu0 0.0
      %1110 = vmatprep.subr.mxu0 0.0
      %1111 = vmatpush1.msra.mxu0 0.0
      %1112 = vmatprep.subr.mxu0 0.0
      %1113 = vmatpush1.msra.mxu0 0.0
      %1114 = vmatprep.subr.mxu0 0.0
      %1115 = vmatpush1.msra.mxu0 0.0
      %1116 = vmatprep.subr.mxu0 0.0
      %1117 = vmatpush1.msra.mxu0 0.0
      %1118 = vmatprep.subr.mxu0 0.0
      %1119 = vmatpush1.msra.mxu0 0.0
      %1120 = vmatprep.subr.mxu0 0.0
      %1121 = vmatpush1.msra.mxu0 0.0
      %1122 = vmatprep.subr.mxu0 0.0
      %1123 = vmatpush1.msra.mxu0 0.0
      %1124 = vmatprep.subr.mxu0 0.0
      %1125 = vmatpush1.msra.mxu0 0.0
      %1126 = vmatprep.subr.mxu0 0.0
      %1127 = vmatpush1.msra.mxu0 0.0
      %1128 = vmatprep.mubr.f32.mxu0 0.0
      %1129 = vmatmul.mubr.f32.gmra.mrb[0].mxu0 %v1062
      %v1130 = vpop.f32.mrb[0].mxu0
      %v1131 = vadd.f32 0.0, %v1130
      %v1132 = vpop.f32.mrb[0].mxu0
      %v1133 = vadd.f32 0.0, %v1132
      %1134 = vdwg.mxu0
      %1135 = vmatprep.subr.mxu0 %v1032
      %1136 = vmatpush1.msra.mxu0 %v1031
      %1137 = vmatprep.subr.mxu0 %v1040
      %1138 = vmatpush1.msra.mxu0 %v1039
      %1139 = vmatprep.subr.mxu0 0.0
      %1140 = vmatpush1.msra.mxu0 0.0
      %1141 = vmatprep.subr.mxu0 0.0
      %1142 = vmatpush1.msra.mxu0 0.0
      %1143 = vmatprep.subr.mxu0 0.0
      %1144 = vmatpush1.msra.mxu0 0.0
      %1145 = vmatprep.subr.mxu0 0.0
      %1146 = vmatpush1.msra.mxu0 0.0
      %1147 = vmatprep.subr.mxu0 0.0
      %1148 = vmatpush1.msra.mxu0 0.0
      %1149 = vmatprep.subr.mxu0 0.0
      %1150 = vmatpush1.msra.mxu0 0.0
      %1151 = vmatprep.subr.mxu0 0.0
      %1152 = vmatpush1.msra.mxu0 0.0
      %1153 = vmatprep.subr.mxu0 0.0
      %1154 = vmatpush1.msra.mxu0 0.0
      %1155 = vmatprep.subr.mxu0 0.0
      %1156 = vmatpush1.msra.mxu0 0.0
      %1157 = vmatprep.subr.mxu0 0.0
      %1158 = vmatpush1.msra.mxu0 0.0
      %1159 = vmatprep.subr.mxu0 0.0
      %1160 = vmatpush1.msra.mxu0 0.0
      %1161 = vmatprep.subr.mxu0 0.0
      %1162 = vmatpush1.msra.mxu0 0.0
      %1163 = vmatprep.subr.mxu0 0.0
      %1164 = vmatpush1.msra.mxu0 0.0
      %1165 = vmatprep.subr.mxu0 0.0
      %1166 = vmatpush1.msra.mxu0 0.0
      %1167 = vmatprep.subr.mxu0 0.0
      %1168 = vmatpush1.msra.mxu0 0.0
      %1169 = vmatprep.subr.mxu0 0.0
      %1170 = vmatpush1.msra.mxu0 0.0
      %1171 = vmatprep.subr.mxu0 0.0
      %1172 = vmatpush1.msra.mxu0 0.0
      %1173 = vmatprep.subr.mxu0 0.0
      %1174 = vmatpush1.msra.mxu0 0.0
      %1175 = vmatprep.subr.mxu0 0.0
      %1176 = vmatpush1.msra.mxu0 0.0
      %1177 = vmatprep.subr.mxu0 0.0
      %1178 = vmatpush1.msra.mxu0 0.0
      %1179 = vmatprep.subr.mxu0 0.0
      %1180 = vmatpush1.msra.mxu0 0.0
      %1181 = vmatprep.subr.mxu0 0.0
      %1182 = vmatpush1.msra.mxu0 0.0
      %1183 = vmatprep.subr.mxu0 0.0
      %1184 = vmatpush1.msra.mxu0 0.0
      %1185 = vmatprep.subr.mxu0 0.0
      %1186 = vmatpush1.msra.mxu0 0.0
      %1187 = vmatprep.subr.mxu0 0.0
      %1188 = vmatpush1.msra.mxu0 0.0
      %1189 = vmatprep.subr.mxu0 0.0
      %1190 = vmatpush1.msra.mxu0 0.0
      %1191 = vmatprep.subr.mxu0 0.0
      %1192 = vmatpush1.msra.mxu0 0.0
      %1193 = vmatprep.subr.mxu0 0.0
      %1194 = vmatpush1.msra.mxu0 0.0
      %1195 = vmatprep.subr.mxu0 0.0
      %1196 = vmatpush1.msra.mxu0 0.0
      %1197 = vmatprep.subr.mxu0 0.0
      %1198 = vmatpush1.msra.mxu0 0.0
      %1199 = vmatprep.mubr.f32.mxu0 0.0
      %1200 = vmatmul.mubr.f32.gmra.mrb[0].mxu0 %v1062
      %v1201 = vpop.f32.mrb[0].mxu0
      %v1202 = vadd.f32 0.0, %v1201
      %v1203 = vpop.f32.mrb[0].mxu0
      %v1204 = vadd.f32 0.0, %v1203
      %1205 = vdwg.mxu0
      %1206 = vmatprep.subr.mxu0 %v1034
      %1207 = vmatpush1.msra.mxu0 %v1033
      %1208 = vmatprep.subr.mxu0 %v1042
      %1209 = vmatpush1.msra.mxu0 %v1041
      %1210 = vmatprep.subr.mxu0 0.0
      %1211 = vmatpush1.msra.mxu0 0.0
      %1212 = vmatprep.subr.mxu0 0.0
      %1213 = vmatpush1.msra.mxu0 0.0
      %1214 = vmatprep.subr.mxu0 0.0
      %1215 = vmatpush1.msra.mxu0 0.0
      %1216 = vmatprep.subr.mxu0 0.0
      %1217 = vmatpush1.msra.mxu0 0.0
      %1218 = vmatprep.subr.mxu0 0.0
      %1219 = vmatpush1.msra.mxu0 0.0
      %1220 = vmatprep.subr.mxu0 0.0
      %1221 = vmatpush1.msra.mxu0 0.0
      %1222 = vmatprep.subr.mxu0 0.0
      %1223 = vmatpush1.msra.mxu0 0.0
      %1224 = vmatprep.subr.mxu0 0.0
      %1225 = vmatpush1.msra.mxu0 0.0
      %1226 = vmatprep.subr.mxu0 0.0
      %1227 = vmatpush1.msra.mxu0 0.0
      %1228 = vmatprep.subr.mxu0 0.0
      %1229 = vmatpush1.msra.mxu0 0.0
      %1230 = vmatprep.subr.mxu0 0.0
      %1231 = vmatpush1.msra.mxu0 0.0
      %1232 = vmatprep.subr.mxu0 0.0
      %1233 = vmatpush1.msra.mxu0 0.0
      %1234 = vmatprep.subr.mxu0 0.0
      %1235 = vmatpush1.msra.mxu0 0.0
      %1236 = vmatprep.subr.mxu0 0.0
      %1237 = vmatpush1.msra.mxu0 0.0
      %1238 = vmatprep.subr.mxu0 0.0
      %1239 = vmatpush1.msra.mxu0 0.0
      %1240 = vmatprep.subr.mxu0 0.0
      %1241 = vmatpush1.msra.mxu0 0.0
      %1242 = vmatprep.subr.mxu0 0.0
      %1243 = vmatpush1.msra.mxu0 0.0
      %1244 = vmatprep.subr.mxu0 0.0
      %1245 = vmatpush1.msra.mxu0 0.0
      %1246 = vmatprep.subr.mxu0 0.0
      %1247 = vmatpush1.msra.mxu0 0.0
      %1248 = vmatprep.subr.mxu0 0.0
      %1249 = vmatpush1.msra.mxu0 0.0
      %1250 = vmatprep.subr.mxu0 0.0
      %1251 = vmatpush1.msra.mxu0 0.0
      %1252 = vmatprep.subr.mxu0 0.0
      %1253 = vmatpush1.msra.mxu0 0.0
      %1254 = vmatprep.subr.mxu0 0.0
      %1255 = vmatpush1.msra.mxu0 0.0
      %1256 = vmatprep.subr.mxu0 0.0
      %1257 = vmatpush1.msra.mxu0 0.0
      %1258 = vmatprep.subr.mxu0 0.0
      %1259 = vmatpush1.msra.mxu0 0.0
      %1260 = vmatprep.subr.mxu0 0.0
      %1261 = vmatpush1.msra.mxu0 0.0
      %1262 = vmatprep.subr.mxu0 0.0
      %1263 = vmatpush1.msra.mxu0 0.0
      %1264 = vmatprep.subr.mxu0 0.0
      %1265 = vmatpush1.msra.mxu0 0.0
      %1266 = vmatprep.subr.mxu0 0.0
      %1267 = vmatpush1.msra.mxu0 0.0
      %1268 = vmatprep.subr.mxu0 0.0
      %1269 = vmatpush1.msra.mxu0 0.0
      %1270 = vmatprep.mubr.f32.mxu0 0.0
      %1271 = vmatmul.mubr.f32.gmra.mrb[0].mxu0 %v1062
      %v1272 = vpop.f32.mrb[0].mxu0
      %v1273 = vadd.f32 0.0, %v1272
      %v1274 = vpop.f32.mrb[0].mxu0
      %v1275 = vadd.f32 0.0, %v1274
      %1276 = vdwg.mxu0
      %1277 = vmatprep.subr.mxu0 %v1036
      %1278 = vmatpush1.msra.mxu0 %v1035
      %1279 = vmatprep.subr.mxu0 %v1044
      %1280 = vmatpush1.msra.mxu0 %v1043
      %1281 = vmatprep.subr.mxu0 0.0
      %1282 = vmatpush1.msra.mxu0 0.0
      %1283 = vmatprep.subr.mxu0 0.0
      %1284 = vmatpush1.msra.mxu0 0.0
      %1285 = vmatprep.subr.mxu0 0.0
      %1286 = vmatpush1.msra.mxu0 0.0
      %1287 = vmatprep.subr.mxu0 0.0
      %1288 = vmatpush1.msra.mxu0 0.0
      %1289 = vmatprep.subr.mxu0 0.0
      %1290 = vmatpush1.msra.mxu0 0.0
      %1291 = vmatprep.subr.mxu0 0.0
      %1292 = vmatpush1.msra.mxu0 0.0
      %1293 = vmatprep.subr.mxu0 0.0
      %1294 = vmatpush1.msra.mxu0 0.0
      %1295 = vmatprep.subr.mxu0 0.0
      %1296 = vmatpush1.msra.mxu0 0.0
      %1297 = vmatprep.subr.mxu0 0.0
      %1298 = vmatpush1.msra.mxu0 0.0
      %1299 = vmatprep.subr.mxu0 0.0
      %1300 = vmatpush1.msra.mxu0 0.0
      %1301 = vmatprep.subr.mxu0 0.0
      %1302 = vmatpush1.msra.mxu0 0.0
      %1303 = vmatprep.subr.mxu0 0.0
      %1304 = vmatpush1.msra.mxu0 0.0
      %1305 = vmatprep.subr.mxu0 0.0
      %1306 = vmatpush1.msra.mxu0 0.0
      %1307 = vmatprep.subr.mxu0 0.0
      %1308 = vmatpush1.msra.mxu0 0.0
      %1309 = vmatprep.subr.mxu0 0.0
      %1310 = vmatpush1.msra.mxu0 0.0
      %1311 = vmatprep.subr.mxu0 0.0
      %1312 = vmatpush1.msra.mxu0 0.0
      %1313 = vmatprep.subr.mxu0 0.0
      %1314 = vmatpush1.msra.mxu0 0.0
      %1315 = vmatprep.subr.mxu0 0.0
      %1316 = vmatpush1.msra.mxu0 0.0
      %1317 = vmatprep.subr.mxu0 0.0
      %1318 = vmatpush1.msra.mxu0 0.0
      %1319 = vmatprep.subr.mxu0 0.0
      %1320 = vmatpush1.msra.mxu0 0.0
      %1321 = vmatprep.subr.mxu0 0.0
      %1322 = vmatpush1.msra.mxu0 0.0
      %1323 = vmatprep.subr.mxu0 0.0
      %1324 = vmatpush1.msra.mxu0 0.0
      %1325 = vmatprep.subr.mxu0 0.0
      %1326 = vmatpush1.msra.mxu0 0.0
      %1327 = vmatprep.subr.mxu0 0.0
      %1328 = vmatpush1.msra.mxu0 0.0
      %1329 = vmatprep.subr.mxu0 0.0
      %1330 = vmatpush1.msra.mxu0 0.0
      %1331 = vmatprep.subr.mxu0 0.0
      %1332 = vmatpush1.msra.mxu0 0.0
      %1333 = vmatprep.subr.mxu0 0.0
      %1334 = vmatpush1.msra.mxu0 0.0
      %1335 = vmatprep.subr.mxu0 0.0
      %1336 = vmatpush1.msra.mxu0 0.0
      %1337 = vmatprep.subr.mxu0 0.0
      %1338 = vmatpush1.msra.mxu0 0.0
      %1339 = vmatprep.subr.mxu0 0.0
      %1340 = vmatpush1.msra.mxu0 0.0
      %1341 = vmatprep.mubr.f32.mxu0 0.0
      %1342 = vmatmul.mubr.f32.gmra.mrb[0].mxu0 %v1062
      %v1343 = vpop.f32.mrb[0].mxu0
      %v1344 = vadd.f32 0.0, %v1343
      %v1345 = vpop.f32.mrb[0].mxu0
      %v1346 = vadd.f32 0.0, %v1345
      %1347 = vdwg.mxu0
      %v1348 = vld [vmem:[%s4] sm:$0xff]
      %v1350 = vlaneseq
      %v1351 = vshrl.u32 %v1350, 7
      %v1352 = vsub.s32 0, %v1351
      %v1353 = vrot.slane %v1348, %v1352
      %v1354 = vlaneseq
      %v1355 = vshrl.u32 %v1354, 7
      %v1356 = vsub.s32 1, %v1355
      %v1357 = vrot.slane %v1348, %v1356
      %v1358 = vlaneseq
      %v1359 = vshrl.u32 %v1358, 7
      %v1360 = vsub.s32 2, %v1359
      %v1361 = vrot.slane %v1348, %v1360
      %v1362 = vlaneseq
      %v1363 = vshrl.u32 %v1362, 7
      %v1364 = vsub.s32 3, %v1363
      %v1365 = vrot.slane %v1348, %v1364
      %v1366 = vlaneseq
      %v1367 = vshrl.u32 %v1366, 7
      %v1368 = vsub.s32 4, %v1367
      %v1369 = vrot.slane %v1348, %v1368
      %v1370 = vlaneseq
      %v1371 = vshrl.u32 %v1370, 7
      %v1372 = vsub.s32 5, %v1371
      %v1373 = vrot.slane %v1348, %v1372
      %v1374 = vlaneseq
      %v1375 = vshrl.u32 %v1374, 7
      %v1376 = vsub.s32 6, %v1375
      %v1377 = vrot.slane %v1348, %v1376
      %v1378 = vlaneseq
      %v1379 = vshrl.u32 %v1378, 7
      %v1380 = vsub.s32 7, %v1379
      %v1381 = vrot.slane %v1348, %v1380
      %v1390 = vmul.f32 %v1131, %v1353
      %v1391 = vmul.f32 %v1133, %v1357
      %v1392 = vmul.f32 %v1202, %v1361
      %v1393 = vmul.f32 %v1204, %v1365
      %v1394 = vmul.f32 %v1273, %v1369
      %v1395 = vmul.f32 %v1275, %v1373
      %v1396 = vmul.f32 %v1344, %v1377
      %v1397 = vmul.f32 %v1346, %v1381
      %v1398 = vadd.f32 %v982, %v1390
      %v1399 = vadd.f32 %v983, %v1391
      %v1400 = vadd.f32 %v984, %v1392
      %v1401 = vadd.f32 %v985, %v1393
      %v1402 = vadd.f32 %v986, %v1394
      %v1403 = vadd.f32 %v987, %v1395
      %v1404 = vadd.f32 %v988, %v1396
      %v1405 = vadd.f32 %v989, %v1397
      %s1406 = scalar_lea.vmem %s1, 24
      %v1407 = vld [vmem:[%s1406] sm:$0xff]
      %1408 = vrot.lane.b32.xlu0 %v588, 96
      %v1409 = vpop.permute.xlu0 %1408
      %1410 = vrot.lane.b32.xlu0 %v589, 96
      %v1411 = vpop.permute.xlu0 %1410
      %1412 = vrot.lane.b32.xlu0 %v590, 96
      %v1413 = vpop.permute.xlu0 %1412
      %1414 = vrot.lane.b32.xlu0 %v591, 96
      %v1415 = vpop.permute.xlu0 %1414
      %1416 = vrot.lane.b32.xlu0 %v592, 96
      %v1417 = vpop.permute.xlu0 %1416
      %1418 = vrot.lane.b32.xlu0 %v593, 96
      %v1419 = vpop.permute.xlu0 %1418
      %1420 = vrot.lane.b32.xlu0 %v594, 96
      %v1421 = vpop.permute.xlu0 %1420
      %1422 = vrot.lane.b32.xlu0 %v595, 96
      %v1423 = vpop.permute.xlu0 %1422
      %1424 = vrot.lane.b32.xlu0 %v596, 96
      %v1425 = vpop.permute.xlu0 %1424
      %1426 = vrot.lane.b32.xlu0 %v597, 96
      %v1427 = vpop.permute.xlu0 %1426
      %1428 = vrot.lane.b32.xlu0 %v598, 96
      %v1429 = vpop.permute.xlu0 %1428
      %1430 = vrot.lane.b32.xlu0 %v599, 96
      %v1431 = vpop.permute.xlu0 %1430
      %1432 = vrot.lane.b32.xlu0 %v600, 96
      %v1433 = vpop.permute.xlu0 %1432
      %1434 = vrot.lane.b32.xlu0 %v601, 96
      %v1435 = vpop.permute.xlu0 %1434
      %1436 = vrot.lane.b32.xlu0 %v602, 96
      %v1437 = vpop.permute.xlu0 %1436
      %1438 = vrot.lane.b32.xlu0 %v603, 96
      %v1439 = vpop.permute.xlu0 %1438
      %1440 = vrot.lane.b32.xlu0 %v604, 96
      %v1441 = vpop.permute.xlu0 %1440
      %1442 = vrot.lane.b32.xlu0 %v605, 96
      %v1443 = vpop.permute.xlu0 %1442
      %vm1444 = vcmask 785408
      %v1445 = vsel %vm1444, %v1409, %v1411
      %v1446 = vsel %vm1444, %v1411, %v1413
      %v1447 = vsel %vm1444, %v1413, %v1415
      %v1448 = vsel %vm1444, %v1415, %v1417
      %v1449 = vsel %vm1444, %v1417, %v1419
      %v1450 = vsel %vm1444, %v1419, %v1421
      %v1451 = vsel %vm1444, %v1421, %v1423
      %v1452 = vsel %vm1444, %v1423, %v1425
      %v1453 = vsel %vm1444, %v1427, %v1429
      %v1454 = vsel %vm1444, %v1429, %v1431
      %v1455 = vsel %vm1444, %v1431, %v1433
      %v1456 = vsel %vm1444, %v1433, %v1435
      %v1457 = vsel %vm1444, %v1435, %v1437
      %v1458 = vsel %vm1444, %v1437, %v1439
      %v1459 = vsel %vm1444, %v1439, %v1441
      %v1460 = vsel %vm1444, %v1441, %v1443
      %v1478 = vsel %vm242, %v1407, 0
      %1480 = vmatprep.subr.mxu0 %v1446
      %1481 = vmatpush1.msra.mxu0 %v1445
      %1482 = vmatprep.subr.mxu0 %v1454
      %1483 = vmatpush1.msra.mxu0 %v1453
      %1484 = vmatprep.subr.mxu0 0.0
      %1485 = vmatpush1.msra.mxu0 0.0
      %1486 = vmatprep.subr.mxu0 0.0
      %1487 = vmatpush1.msra.mxu0 0.0
      %1488 = vmatprep.subr.mxu0 0.0
      %1489 = vmatpush1.msra.mxu0 0.0
      %1490 = vmatprep.subr.mxu0 0.0
      %1491 = vmatpush1.msra.mxu0 0.0
      %1492 = vmatprep.subr.mxu0 0.0
      %1493 = vmatpush1.msra.mxu0 0.0
      %1494 = vmatprep.subr.mxu0 0.0
      %1495 = vmatpush1.msra.mxu0 0.0
      %1496 = vmatprep.subr.mxu0 0.0
      %1497 = vmatpush1.msra.mxu0 0.0
      %1498 = vmatprep.subr.mxu0 0.0
      %1499 = vmatpush1.msra.mxu0 0.0
      %1500 = vmatprep.subr.mxu0 0.0
      %1501 = vmatpush1.msra.mxu0 0.0
      %1502 = vmatprep.subr.mxu0 0.0
      %1503 = vmatpush1.msra.mxu0 0.0
      %1504 = vmatprep.subr.mxu0 0.0
      %1505 = vmatpush1.msra.mxu0 0.0
      %1506 = vmatprep.subr.mxu0 0.0
      %1507 = vmatpush1.msra.mxu0 0.0
      %1508 = vmatprep.subr.mxu0 0.0
      %1509 = vmatpush1.msra.mxu0 0.0
      %1510 = vmatprep.subr.mxu0 0.0
      %1511 = vmatpush1.msra.mxu0 0.0
      %1512 = vmatprep.subr.mxu0 0.0
      %1513 = vmatpush1.msra.mxu0 0.0
      %1514 = vmatprep.subr.mxu0 0.0
      %1515 = vmatpush1.msra.mxu0 0.0
      %1516 = vmatprep.subr.mxu0 0.0
      %1517 = vmatpush1.msra.mxu0 0.0
      %1518 = vmatprep.subr.mxu0 0.0
      %1519 = vmatpush1.msra.mxu0 0.0
      %1520 = vmatprep.subr.mxu0 0.0
      %1521 = vmatpush1.msra.mxu0 0.0
      %1522 = vmatprep.subr.mxu0 0.0
      %1523 = vmatpush1.msra.mxu0 0.0
      %1524 = vmatprep.subr.mxu0 0.0
      %1525 = vmatpush1.msra.mxu0 0.0
      %1526 = vmatprep.subr.mxu0 0.0
      %1527 = vmatpush1.msra.mxu0 0.0
      %1528 = vmatprep.subr.mxu0 0.0
      %1529 = vmatpush1.msra.mxu0 0.0
      %1530 = vmatprep.subr.mxu0 0.0
      %1531 = vmatpush1.msra.mxu0 0.0
      %1532 = vmatprep.subr.mxu0 0.0
      %1533 = vmatpush1.msra.mxu0 0.0
      %1534 = vmatprep.subr.mxu0 0.0
      %1535 = vmatpush1.msra.mxu0 0.0
      %1536 = vmatprep.subr.mxu0 0.0
      %1537 = vmatpush1.msra.mxu0 0.0
      %1538 = vmatprep.subr.mxu0 0.0
      %1539 = vmatpush1.msra.mxu0 0.0
      %1540 = vmatprep.subr.mxu0 0.0
      %1541 = vmatpush1.msra.mxu0 0.0
      %1542 = vmatprep.subr.mxu0 0.0
      %1543 = vmatpush1.msra.mxu0 0.0
      %1544 = vmatprep.mubr.f32.mxu0 0.0
      %1545 = vmatmul.mubr.f32.gmra.mrb[0].mxu0 %v1478
      %v1546 = vpop.f32.mrb[0].mxu0
      %v1547 = vadd.f32 0.0, %v1546
      %v1548 = vpop.f32.mrb[0].mxu0
      %v1549 = vadd.f32 0.0, %v1548
      %1550 = vdwg.mxu0
      %1551 = vmatprep.subr.mxu0 %v1448
      %1552 = vmatpush1.msra.mxu0 %v1447
      %1553 = vmatprep.subr.mxu0 %v1456
      %1554 = vmatpush1.msra.mxu0 %v1455
      %1555 = vmatprep.subr.mxu0 0.0
      %1556 = vmatpush1.msra.mxu0 0.0
      %1557 = vmatprep.subr.mxu0 0.0
      %1558 = vmatpush1.msra.mxu0 0.0
      %1559 = vmatprep.subr.mxu0 0.0
      %1560 = vmatpush1.msra.mxu0 0.0
      %1561 = vmatprep.subr.mxu0 0.0
      %1562 = vmatpush1.msra.mxu0 0.0
      %1563 = vmatprep.subr.mxu0 0.0
      %1564 = vmatpush1.msra.mxu0 0.0
      %1565 = vmatprep.subr.mxu0 0.0
      %1566 = vmatpush1.msra.mxu0 0.0
      %1567 = vmatprep.subr.mxu0 0.0
      %1568 = vmatpush1.msra.mxu0 0.0
      %1569 = vmatprep.subr.mxu0 0.0
      %1570 = vmatpush1.msra.mxu0 0.0
      %1571 = vmatprep.subr.mxu0 0.0
      %1572 = vmatpush1.msra.mxu0 0.0
      %1573 = vmatprep.subr.mxu0 0.0
      %1574 = vmatpush1.msra.mxu0 0.0
      %1575 = vmatprep.subr.mxu0 0.0
      %1576 = vmatpush1.msra.mxu0 0.0
      %1577 = vmatprep.subr.mxu0 0.0
      %1578 = vmatpush1.msra.mxu0 0.0
      %1579 = vmatprep.subr.mxu0 0.0
      %1580 = vmatpush1.msra.mxu0 0.0
      %1581 = vmatprep.subr.mxu0 0.0
      %1582 = vmatpush1.msra.mxu0 0.0
      %1583 = vmatprep.subr.mxu0 0.0
      %1584 = vmatpush1.msra.mxu0 0.0
      %1585 = vmatprep.subr.mxu0 0.0
      %1586 = vmatpush1.msra.mxu0 0.0
      %1587 = vmatprep.subr.mxu0 0.0
      %1588 = vmatpush1.msra.mxu0 0.0
      %1589 = vmatprep.subr.mxu0 0.0
      %1590 = vmatpush1.msra.mxu0 0.0
      %1591 = vmatprep.subr.mxu0 0.0
      %1592 = vmatpush1.msra.mxu0 0.0
      %1593 = vmatprep.subr.mxu0 0.0
      %1594 = vmatpush1.msra.mxu0 0.0
      %1595 = vmatprep.subr.mxu0 0.0
      %1596 = vmatpush1.msra.mxu0 0.0
      %1597 = vmatprep.subr.mxu0 0.0
      %1598 = vmatpush1.msra.mxu0 0.0
      %1599 = vmatprep.subr.mxu0 0.0
      %1600 = vmatpush1.msra.mxu0 0.0
      %1601 = vmatprep.subr.mxu0 0.0
      %1602 = vmatpush1.msra.mxu0 0.0
      %1603 = vmatprep.subr.mxu0 0.0
      %1604 = vmatpush1.msra.mxu0 0.0
      %1605 = vmatprep.subr.mxu0 0.0
      %1606 = vmatpush1.msra.mxu0 0.0
      %1607 = vmatprep.subr.mxu0 0.0
      %1608 = vmatpush1.msra.mxu0 0.0
      %1609 = vmatprep.subr.mxu0 0.0
      %1610 = vmatpush1.msra.mxu0 0.0
      %1611 = vmatprep.subr.mxu0 0.0
      %1612 = vmatpush1.msra.mxu0 0.0
      %1613 = vmatprep.subr.mxu0 0.0
      %1614 = vmatpush1.msra.mxu0 0.0
      %1615 = vmatprep.mubr.f32.mxu0 0.0
      %1616 = vmatmul.mubr.f32.gmra.mrb[0].mxu0 %v1478
      %v1617 = vpop.f32.mrb[0].mxu0
      %v1618 = vadd.f32 0.0, %v1617
      %v1619 = vpop.f32.mrb[0].mxu0
      %v1620 = vadd.f32 0.0, %v1619
      %1621 = vdwg.mxu0
      %1622 = vmatprep.subr.mxu0 %v1450
      %1623 = vmatpush1.msra.mxu0 %v1449
      %1624 = vmatprep.subr.mxu0 %v1458
      %1625 = vmatpush1.msra.mxu0 %v1457
      %1626 = vmatprep.subr.mxu0 0.0
      %1627 = vmatpush1.msra.mxu0 0.0
      %1628 = vmatprep.subr.mxu0 0.0
      %1629 = vmatpush1.msra.mxu0 0.0
      %1630 = vmatprep.subr.mxu0 0.0
      %1631 = vmatpush1.msra.mxu0 0.0
      %1632 = vmatprep.subr.mxu0 0.0
      %1633 = vmatpush1.msra.mxu0 0.0
      %1634 = vmatprep.subr.mxu0 0.0
      %1635 = vmatpush1.msra.mxu0 0.0
      %1636 = vmatprep.subr.mxu0 0.0
      %1637 = vmatpush1.msra.mxu0 0.0
      %1638 = vmatprep.subr.mxu0 0.0
      %1639 = vmatpush1.msra.mxu0 0.0
      %1640 = vmatprep.subr.mxu0 0.0
      %1641 = vmatpush1.msra.mxu0 0.0
      %1642 = vmatprep.subr.mxu0 0.0
      %1643 = vmatpush1.msra.mxu0 0.0
      %1644 = vmatprep.subr.mxu0 0.0
      %1645 = vmatpush1.msra.mxu0 0.0
      %1646 = vmatprep.subr.mxu0 0.0
      %1647 = vmatpush1.msra.mxu0 0.0
      %1648 = vmatprep.subr.mxu0 0.0
      %1649 = vmatpush1.msra.mxu0 0.0
      %1650 = vmatprep.subr.mxu0 0.0
      %1651 = vmatpush1.msra.mxu0 0.0
      %1652 = vmatprep.subr.mxu0 0.0
      %1653 = vmatpush1.msra.mxu0 0.0
      %1654 = vmatprep.subr.mxu0 0.0
      %1655 = vmatpush1.msra.mxu0 0.0
      %1656 = vmatprep.subr.mxu0 0.0
      %1657 = vmatpush1.msra.mxu0 0.0
      %1658 = vmatprep.subr.mxu0 0.0
      %1659 = vmatpush1.msra.mxu0 0.0
      %1660 = vmatprep.subr.mxu0 0.0
      %1661 = vmatpush1.msra.mxu0 0.0
      %1662 = vmatprep.subr.mxu0 0.0
      %1663 = vmatpush1.msra.mxu0 0.0
      %1664 = vmatprep.subr.mxu0 0.0
      %1665 = vmatpush1.msra.mxu0 0.0
      %1666 = vmatprep.subr.mxu0 0.0
      %1667 = vmatpush1.msra.mxu0 0.0
      %1668 = vmatprep.subr.mxu0 0.0
      %1669 = vmatpush1.msra.mxu0 0.0
      %1670 = vmatprep.subr.mxu0 0.0
      %1671 = vmatpush1.msra.mxu0 0.0
      %1672 = vmatprep.subr.mxu0 0.0
      %1673 = vmatpush1.msra.mxu0 0.0
      %1674 = vmatprep.subr.mxu0 0.0
      %1675 = vmatpush1.msra.mxu0 0.0
      %1676 = vmatprep.subr.mxu0 0.0
      %1677 = vmatpush1.msra.mxu0 0.0
      %1678 = vmatprep.subr.mxu0 0.0
      %1679 = vmatpush1.msra.mxu0 0.0
      %1680 = vmatprep.subr.mxu0 0.0
      %1681 = vmatpush1.msra.mxu0 0.0
      %1682 = vmatprep.subr.mxu0 0.0
      %1683 = vmatpush1.msra.mxu0 0.0
      %1684 = vmatprep.subr.mxu0 0.0
      %1685 = vmatpush1.msra.mxu0 0.0
      %1686 = vmatprep.mubr.f32.mxu0 0.0
      %1687 = vmatmul.mubr.f32.gmra.mrb[0].mxu0 %v1478
      %v1688 = vpop.f32.mrb[0].mxu0
      %v1689 = vadd.f32 0.0, %v1688
      %v1690 = vpop.f32.mrb[0].mxu0
      %v1691 = vadd.f32 0.0, %v1690
      %1692 = vdwg.mxu0
      %1693 = vmatprep.subr.mxu0 %v1452
      %1694 = vmatpush1.msra.mxu0 %v1451
      %1695 = vmatprep.subr.mxu0 %v1460
      %1696 = vmatpush1.msra.mxu0 %v1459
      %1697 = vmatprep.subr.mxu0 0.0
      %1698 = vmatpush1.msra.mxu0 0.0
      %1699 = vmatprep.subr.mxu0 0.0
      %1700 = vmatpush1.msra.mxu0 0.0
      %1701 = vmatprep.subr.mxu0 0.0
      %1702 = vmatpush1.msra.mxu0 0.0
      %1703 = vmatprep.subr.mxu0 0.0
      %1704 = vmatpush1.msra.mxu0 0.0
      %1705 = vmatprep.subr.mxu0 0.0
      %1706 = vmatpush1.msra.mxu0 0.0
      %1707 = vmatprep.subr.mxu0 0.0
      %1708 = vmatpush1.msra.mxu0 0.0
      %1709 = vmatprep.subr.mxu0 0.0
      %1710 = vmatpush1.msra.mxu0 0.0
      %1711 = vmatprep.subr.mxu0 0.0
      %1712 = vmatpush1.msra.mxu0 0.0
      %1713 = vmatprep.subr.mxu0 0.0
      %1714 = vmatpush1.msra.mxu0 0.0
      %1715 = vmatprep.subr.mxu0 0.0
      %1716 = vmatpush1.msra.mxu0 0.0
      %1717 = vmatprep.subr.mxu0 0.0
      %1718 = vmatpush1.msra.mxu0 0.0
      %1719 = vmatprep.subr.mxu0 0.0
      %1720 = vmatpush1.msra.mxu0 0.0
      %1721 = vmatprep.subr.mxu0 0.0
      %1722 = vmatpush1.msra.mxu0 0.0
      %1723 = vmatprep.subr.mxu0 0.0
      %1724 = vmatpush1.msra.mxu0 0.0
      %1725 = vmatprep.subr.mxu0 0.0
      %1726 = vmatpush1.msra.mxu0 0.0
      %1727 = vmatprep.subr.mxu0 0.0
      %1728 = vmatpush1.msra.mxu0 0.0
      %1729 = vmatprep.subr.mxu0 0.0
      %1730 = vmatpush1.msra.mxu0 0.0
      %1731 = vmatprep.subr.mxu0 0.0
      %1732 = vmatpush1.msra.mxu0 0.0
      %1733 = vmatprep.subr.mxu0 0.0
      %1734 = vmatpush1.msra.mxu0 0.0
      %1735 = vmatprep.subr.mxu0 0.0
      %1736 = vmatpush1.msra.mxu0 0.0
      %1737 = vmatprep.subr.mxu0 0.0
      %1738 = vmatpush1.msra.mxu0 0.0
      %1739 = vmatprep.subr.mxu0 0.0
      %1740 = vmatpush1.msra.mxu0 0.0
      %1741 = vmatprep.subr.mxu0 0.0
      %1742 = vmatpush1.msra.mxu0 0.0
      %1743 = vmatprep.subr.mxu0 0.0
      %1744 = vmatpush1.msra.mxu0 0.0
      %1745 = vmatprep.subr.mxu0 0.0
      %1746 = vmatpush1.msra.mxu0 0.0
      %1747 = vmatprep.subr.mxu0 0.0
      %1748 = vmatpush1.msra.mxu0 0.0
      %1749 = vmatprep.subr.mxu0 0.0
      %1750 = vmatpush1.msra.mxu0 0.0
      %1751 = vmatprep.subr.mxu0 0.0
      %1752 = vmatpush1.msra.mxu0 0.0
      %1753 = vmatprep.subr.mxu0 0.0
      %1754 = vmatpush1.msra.mxu0 0.0
      %1755 = vmatprep.subr.mxu0 0.0
      %1756 = vmatpush1.msra.mxu0 0.0
      %1757 = vmatprep.mubr.f32.mxu0 0.0
      %1758 = vmatmul.mubr.f32.gmra.mrb[0].mxu0 %v1478
      %v1759 = vpop.f32.mrb[0].mxu0
      %v1760 = vadd.f32 0.0, %v1759
      %v1761 = vpop.f32.mrb[0].mxu0
      %v1762 = vadd.f32 0.0, %v1761
      %1763 = vdwg.mxu0
      %v1764 = vmul.f32 %v1547, %v535
      %v1765 = vmul.f32 %v1549, %v539
      %v1766 = vmul.f32 %v1618, %v543
      %v1767 = vmul.f32 %v1620, %v547
      %v1768 = vmul.f32 %v1689, %v551
      %v1769 = vmul.f32 %v1691, %v555
      %v1770 = vmul.f32 %v1760, %v559
      %v1771 = vmul.f32 %v1762, %v563
      %v1772 = vadd.f32 %v1398, %v1764
      %v1773 = vadd.f32 %v1399, %v1765
      %v1774 = vadd.f32 %v1400, %v1766
      %v1775 = vadd.f32 %v1401, %v1767
      %v1776 = vadd.f32 %v1402, %v1768
      %v1777 = vadd.f32 %v1403, %v1769
      %v1778 = vadd.f32 %v1404, %v1770
      %v1779 = vadd.f32 %v1405, %v1771
      %s1780 = scalar_lea.vmem %s1, 32
      %v1781 = vld [vmem:[%s1780] sm:$0xff]
      %1782 = vrot.lane.b32.xlu0 %v588, 95
      %v1783 = vpop.permute.xlu0 %1782
      %1784 = vrot.lane.b32.xlu0 %v589, 95
      %v1785 = vpop.permute.xlu0 %1784
      %1786 = vrot.lane.b32.xlu0 %v590, 95
      %v1787 = vpop.permute.xlu0 %1786
      %1788 = vrot.lane.b32.xlu0 %v591, 95
      %v1789 = vpop.permute.xlu0 %1788
      %1790 = vrot.lane.b32.xlu0 %v592, 95
      %v1791 = vpop.permute.xlu0 %1790
      %1792 = vrot.lane.b32.xlu0 %v593, 95
      %v1793 = vpop.permute.xlu0 %1792
      %1794 = vrot.lane.b32.xlu0 %v594, 95
      %v1795 = vpop.permute.xlu0 %1794
      %1796 = vrot.lane.b32.xlu0 %v595, 95
      %v1797 = vpop.permute.xlu0 %1796
      %1798 = vrot.lane.b32.xlu0 %v596, 95
      %v1799 = vpop.permute.xlu0 %1798
      %1800 = vrot.lane.b32.xlu0 %v597, 95
      %v1801 = vpop.permute.xlu0 %1800
      %1802 = vrot.lane.b32.xlu0 %v598, 95
      %v1803 = vpop.permute.xlu0 %1802
      %1804 = vrot.lane.b32.xlu0 %v599, 95
      %v1805 = vpop.permute.xlu0 %1804
      %1806 = vrot.lane.b32.xlu0 %v600, 95
      %v1807 = vpop.permute.xlu0 %1806
      %1808 = vrot.lane.b32.xlu0 %v601, 95
      %v1809 = vpop.permute.xlu0 %1808
      %1810 = vrot.lane.b32.xlu0 %v602, 95
      %v1811 = vpop.permute.xlu0 %1810
      %1812 = vrot.lane.b32.xlu0 %v603, 95
      %v1813 = vpop.permute.xlu0 %1812
      %1814 = vrot.lane.b32.xlu0 %v604, 95
      %v1815 = vpop.permute.xlu0 %1814
      %1816 = vrot.lane.b32.xlu0 %v605, 95
      %v1817 = vpop.permute.xlu0 %1816
      %vm1818 = vcmask 777216
      %v1819 = vsel %vm1818, %v1783, %v1785
      %v1820 = vsel %vm1818, %v1785, %v1787
      %v1821 = vsel %vm1818, %v1787, %v1789
      %v1822 = vsel %vm1818, %v1789, %v1791
      %v1823 = vsel %vm1818, %v1791, %v1793
      %v1824 = vsel %vm1818, %v1793, %v1795
      %v1825 = vsel %vm1818, %v1795, %v1797
      %v1826 = vsel %vm1818, %v1797, %v1799
      %v1827 = vsel %vm1818, %v1801, %v1803
      %v1828 = vsel %vm1818, %v1803, %v1805
      %v1829 = vsel %vm1818, %v1805, %v1807
      %v1830 = vsel %vm1818, %v1807, %v1809
      %v1831 = vsel %vm1818, %v1809, %v1811
      %v1832 = vsel %vm1818, %v1811, %v1813
      %v1833 = vsel %vm1818, %v1813, %v1815
      %v1834 = vsel %vm1818, %v1815, %v1817
      %v1852 = vsel %vm242, %v1781, 0
      %1854 = vmatprep.subr.mxu0 %v1820
      %1855 = vmatpush1.msra.mxu0 %v1819
      %1856 = vmatprep.subr.mxu0 %v1828
      %1857 = vmatpush1.msra.mxu0 %v1827
      %1858 = vmatprep.subr.mxu0 0.0
      %1859 = vmatpush1.msra.mxu0 0.0
      %1860 = vmatprep.subr.mxu0 0.0
      %1861 = vmatpush1.msra.mxu0 0.0
      %1862 = vmatprep.subr.mxu0 0.0
      %1863 = vmatpush1.msra.mxu0 0.0
      %1864 = vmatprep.subr.mxu0 0.0
      %1865 = vmatpush1.msra.mxu0 0.0
      %1866 = vmatprep.subr.mxu0 0.0
      %1867 = vmatpush1.msra.mxu0 0.0
      %1868 = vmatprep.subr.mxu0 0.0
      %1869 = vmatpush1.msra.mxu0 0.0
      %1870 = vmatprep.subr.mxu0 0.0
      %1871 = vmatpush1.msra.mxu0 0.0
      %1872 = vmatprep.subr.mxu0 0.0
      %1873 = vmatpush1.msra.mxu0 0.0
      %1874 = vmatprep.subr.mxu0 0.0
      %1875 = vmatpush1.msra.mxu0 0.0
      %1876 = vmatprep.subr.mxu0 0.0
      %1877 = vmatpush1.msra.mxu0 0.0
      %1878 = vmatprep.subr.mxu0 0.0
      %1879 = vmatpush1.msra.mxu0 0.0
      %1880 = vmatprep.subr.mxu0 0.0
      %1881 = vmatpush1.msra.mxu0 0.0
      %1882 = vmatprep.subr.mxu0 0.0
      %1883 = vmatpush1.msra.mxu0 0.0
      %1884 = vmatprep.subr.mxu0 0.0
      %1885 = vmatpush1.msra.mxu0 0.0
      %1886 = vmatprep.subr.mxu0 0.0
      %1887 = vmatpush1.msra.mxu0 0.0
      %1888 = vmatprep.subr.mxu0 0.0
      %1889 = vmatpush1.msra.mxu0 0.0
      %1890 = vmatprep.subr.mxu0 0.0
      %1891 = vmatpush1.msra.mxu0 0.0
      %1892 = vmatprep.subr.mxu0 0.0
      %1893 = vmatpush1.msra.mxu0 0.0
      %1894 = vmatprep.subr.mxu0 0.0
      %1895 = vmatpush1.msra.mxu0 0.0
      %1896 = vmatprep.subr.mxu0 0.0
      %1897 = vmatpush1.msra.mxu0 0.0
      %1898 = vmatprep.subr.mxu0 0.0
      %1899 = vmatpush1.msra.mxu0 0.0
      %1900 = vmatprep.subr.mxu0 0.0
      %1901 = vmatpush1.msra.mxu0 0.0
      %1902 = vmatprep.subr.mxu0 0.0
      %1903 = vmatpush1.msra.mxu0 0.0
      %1904 = vmatprep.subr.mxu0 0.0
      %1905 = vmatpush1.msra.mxu0 0.0
      %1906 = vmatprep.subr.mxu0 0.0
      %1907 = vmatpush1.msra.mxu0 0.0
      %1908 = vmatprep.subr.mxu0 0.0
      %1909 = vmatpush1.msra.mxu0 0.0
      %1910 = vmatprep.subr.mxu0 0.0
      %1911 = vmatpush1.msra.mxu0 0.0
      %1912 = vmatprep.subr.mxu0 0.0
      %1913 = vmatpush1.msra.mxu0 0.0
      %1914 = vmatprep.subr.mxu0 0.0
      %1915 = vmatpush1.msra.mxu0 0.0
      %1916 = vmatprep.subr.mxu0 0.0
      %1917 = vmatpush1.msra.mxu0 0.0
      %1918 = vmatprep.mubr.f32.mxu0 0.0
      %1919 = vmatmul.mubr.f32.gmra.mrb[0].mxu0 %v1852
      %v1920 = vpop.f32.mrb[0].mxu0
      %v1921 = vadd.f32 0.0, %v1920
      %v1922 = vpop.f32.mrb[0].mxu0
      %v1923 = vadd.f32 0.0, %v1922
      %1924 = vdwg.mxu0
      %1925 = vmatprep.subr.mxu0 %v1822
      %1926 = vmatpush1.msra.mxu0 %v1821
      %1927 = vmatprep.subr.mxu0 %v1830
      %1928 = vmatpush1.msra.mxu0 %v1829
      %1929 = vmatprep.subr.mxu0 0.0
      %1930 = vmatpush1.msra.mxu0 0.0
      %1931 = vmatprep.subr.mxu0 0.0
      %1932 = vmatpush1.msra.mxu0 0.0
      %1933 = vmatprep.subr.mxu0 0.0
      %1934 = vmatpush1.msra.mxu0 0.0
      %1935 = vmatprep.subr.mxu0 0.0
      %1936 = vmatpush1.msra.mxu0 0.0
      %1937 = vmatprep.subr.mxu0 0.0
      %1938 = vmatpush1.msra.mxu0 0.0
      %1939 = vmatprep.subr.mxu0 0.0
      %1940 = vmatpush1.msra.mxu0 0.0
      %1941 = vmatprep.subr.mxu0 0.0
      %1942 = vmatpush1.msra.mxu0 0.0
      %1943 = vmatprep.subr.mxu0 0.0
      %1944 = vmatpush1.msra.mxu0 0.0
      %1945 = vmatprep.subr.mxu0 0.0
      %1946 = vmatpush1.msra.mxu0 0.0
      %1947 = vmatprep.subr.mxu0 0.0
      %1948 = vmatpush1.msra.mxu0 0.0
      %1949 = vmatprep.subr.mxu0 0.0
      %1950 = vmatpush1.msra.mxu0 0.0
      %1951 = vmatprep.subr.mxu0 0.0
      %1952 = vmatpush1.msra.mxu0 0.0
      %1953 = vmatprep.subr.mxu0 0.0
      %1954 = vmatpush1.msra.mxu0 0.0
      %1955 = vmatprep.subr.mxu0 0.0
      %1956 = vmatpush1.msra.mxu0 0.0
      %1957 = vmatprep.subr.mxu0 0.0
      %1958 = vmatpush1.msra.mxu0 0.0
      %1959 = vmatprep.subr.mxu0 0.0
      %1960 = vmatpush1.msra.mxu0 0.0
      %1961 = vmatprep.subr.mxu0 0.0
      %1962 = vmatpush1.msra.mxu0 0.0
      %1963 = vmatprep.subr.mxu0 0.0
      %1964 = vmatpush1.msra.mxu0 0.0
      %1965 = vmatprep.subr.mxu0 0.0
      %1966 = vmatpush1.msra.mxu0 0.0
      %1967 = vmatprep.subr.mxu0 0.0
      %1968 = vmatpush1.msra.mxu0 0.0
      %1969 = vmatprep.subr.mxu0 0.0
      %1970 = vmatpush1.msra.mxu0 0.0
      %1971 = vmatprep.subr.mxu0 0.0
      %1972 = vmatpush1.msra.mxu0 0.0
      %1973 = vmatprep.subr.mxu0 0.0
      %1974 = vmatpush1.msra.mxu0 0.0
      %1975 = vmatprep.subr.mxu0 0.0
      %1976 = vmatpush1.msra.mxu0 0.0
      %1977 = vmatprep.subr.mxu0 0.0
      %1978 = vmatpush1.msra.mxu0 0.0
      %1979 = vmatprep.subr.mxu0 0.0
      %1980 = vmatpush1.msra.mxu0 0.0
      %1981 = vmatprep.subr.mxu0 0.0
      %1982 = vmatpush1.msra.mxu0 0.0
      %1983 = vmatprep.subr.mxu0 0.0
      %1984 = vmatpush1.msra.mxu0 0.0
      %1985 = vmatprep.subr.mxu0 0.0
      %1986 = vmatpush1.msra.mxu0 0.0
      %1987 = vmatprep.subr.mxu0 0.0
      %1988 = vmatpush1.msra.mxu0 0.0
      %1989 = vmatprep.mubr.f32.mxu0 0.0
      %1990 = vmatmul.mubr.f32.gmra.mrb[0].mxu0 %v1852
      %v1991 = vpop.f32.mrb[0].mxu0
      %v1992 = vadd.f32 0.0, %v1991
      %v1993 = vpop.f32.mrb[0].mxu0
      %v1994 = vadd.f32 0.0, %v1993
      %1995 = vdwg.mxu0
      %1996 = vmatprep.subr.mxu0 %v1824
      %1997 = vmatpush1.msra.mxu0 %v1823
      %1998 = vmatprep.subr.mxu0 %v1832
      %1999 = vmatpush1.msra.mxu0 %v1831
      %2000 = vmatprep.subr.mxu0 0.0
      %2001 = vmatpush1.msra.mxu0 0.0
      %2002 = vmatprep.subr.mxu0 0.0
      %2003 = vmatpush1.msra.mxu0 0.0
      %2004 = vmatprep.subr.mxu0 0.0
      %2005 = vmatpush1.msra.mxu0 0.0
      %2006 = vmatprep.subr.mxu0 0.0
      %2007 = vmatpush1.msra.mxu0 0.0
      %2008 = vmatprep.subr.mxu0 0.0
      %2009 = vmatpush1.msra.mxu0 0.0
      %2010 = vmatprep.subr.mxu0 0.0
      %2011 = vmatpush1.msra.mxu0 0.0
      %2012 = vmatprep.subr.mxu0 0.0
      %2013 = vmatpush1.msra.mxu0 0.0
      %2014 = vmatprep.subr.mxu0 0.0
      %2015 = vmatpush1.msra.mxu0 0.0
      %2016 = vmatprep.subr.mxu0 0.0
      %2017 = vmatpush1.msra.mxu0 0.0
      %2018 = vmatprep.subr.mxu0 0.0
      %2019 = vmatpush1.msra.mxu0 0.0
      %2020 = vmatprep.subr.mxu0 0.0
      %2021 = vmatpush1.msra.mxu0 0.0
      %2022 = vmatprep.subr.mxu0 0.0
      %2023 = vmatpush1.msra.mxu0 0.0
      %2024 = vmatprep.subr.mxu0 0.0
      %2025 = vmatpush1.msra.mxu0 0.0
      %2026 = vmatprep.subr.mxu0 0.0
      %2027 = vmatpush1.msra.mxu0 0.0
      %2028 = vmatprep.subr.mxu0 0.0
      %2029 = vmatpush1.msra.mxu0 0.0
      %2030 = vmatprep.subr.mxu0 0.0
      %2031 = vmatpush1.msra.mxu0 0.0
      %2032 = vmatprep.subr.mxu0 0.0
      %2033 = vmatpush1.msra.mxu0 0.0
      %2034 = vmatprep.subr.mxu0 0.0
      %2035 = vmatpush1.msra.mxu0 0.0
      %2036 = vmatprep.subr.mxu0 0.0
      %2037 = vmatpush1.msra.mxu0 0.0
      %2038 = vmatprep.subr.mxu0 0.0
      %2039 = vmatpush1.msra.mxu0 0.0
      %2040 = vmatprep.subr.mxu0 0.0
      %2041 = vmatpush1.msra.mxu0 0.0
      %2042 = vmatprep.subr.mxu0 0.0
      %2043 = vmatpush1.msra.mxu0 0.0
      %2044 = vmatprep.subr.mxu0 0.0
      %2045 = vmatpush1.msra.mxu0 0.0
      %2046 = vmatprep.subr.mxu0 0.0
      %2047 = vmatpush1.msra.mxu0 0.0
      %2048 = vmatprep.subr.mxu0 0.0
      %2049 = vmatpush1.msra.mxu0 0.0
      %2050 = vmatprep.subr.mxu0 0.0
      %2051 = vmatpush1.msra.mxu0 0.0
      %2052 = vmatprep.subr.mxu0 0.0
      %2053 = vmatpush1.msra.mxu0 0.0
      %2054 = vmatprep.subr.mxu0 0.0
      %2055 = vmatpush1.msra.mxu0 0.0
      %2056 = vmatprep.subr.mxu0 0.0
      %2057 = vmatpush1.msra.mxu0 0.0
      %2058 = vmatprep.subr.mxu0 0.0
      %2059 = vmatpush1.msra.mxu0 0.0
      %2060 = vmatprep.mubr.f32.mxu0 0.0
      %2061 = vmatmul.mubr.f32.gmra.mrb[0].mxu0 %v1852
      %v2062 = vpop.f32.mrb[0].mxu0
      %v2063 = vadd.f32 0.0, %v2062
      %v2064 = vpop.f32.mrb[0].mxu0
      %v2065 = vadd.f32 0.0, %v2064
      %2066 = vdwg.mxu0
      %2067 = vmatprep.subr.mxu0 %v1826
      %2068 = vmatpush1.msra.mxu0 %v1825
      %2069 = vmatprep.subr.mxu0 %v1834
      %2070 = vmatpush1.msra.mxu0 %v1833
      %2071 = vmatprep.subr.mxu0 0.0
      %2072 = vmatpush1.msra.mxu0 0.0
      %2073 = vmatprep.subr.mxu0 0.0
      %2074 = vmatpush1.msra.mxu0 0.0
      %2075 = vmatprep.subr.mxu0 0.0
      %2076 = vmatpush1.msra.mxu0 0.0
      %2077 = vmatprep.subr.mxu0 0.0
      %2078 = vmatpush1.msra.mxu0 0.0
      %2079 = vmatprep.subr.mxu0 0.0
      %2080 = vmatpush1.msra.mxu0 0.0
      %2081 = vmatprep.subr.mxu0 0.0
      %2082 = vmatpush1.msra.mxu0 0.0
      %2083 = vmatprep.subr.mxu0 0.0
      %2084 = vmatpush1.msra.mxu0 0.0
      %2085 = vmatprep.subr.mxu0 0.0
      %2086 = vmatpush1.msra.mxu0 0.0
      %2087 = vmatprep.subr.mxu0 0.0
      %2088 = vmatpush1.msra.mxu0 0.0
      %2089 = vmatprep.subr.mxu0 0.0
      %2090 = vmatpush1.msra.mxu0 0.0
      %2091 = vmatprep.subr.mxu0 0.0
      %2092 = vmatpush1.msra.mxu0 0.0
      %2093 = vmatprep.subr.mxu0 0.0
      %2094 = vmatpush1.msra.mxu0 0.0
      %2095 = vmatprep.subr.mxu0 0.0
      %2096 = vmatpush1.msra.mxu0 0.0
      %2097 = vmatprep.subr.mxu0 0.0
      %2098 = vmatpush1.msra.mxu0 0.0
      %2099 = vmatprep.subr.mxu0 0.0
      %2100 = vmatpush1.msra.mxu0 0.0
      %2101 = vmatprep.subr.mxu0 0.0
      %2102 = vmatpush1.msra.mxu0 0.0
      %2103 = vmatprep.subr.mxu0 0.0
      %2104 = vmatpush1.msra.mxu0 0.0
      %2105 = vmatprep.subr.mxu0 0.0
      %2106 = vmatpush1.msra.mxu0 0.0
      %2107 = vmatprep.subr.mxu0 0.0
      %2108 = vmatpush1.msra.mxu0 0.0
      %2109 = vmatprep.subr.mxu0 0.0
      %2110 = vmatpush1.msra.mxu0 0.0
      %2111 = vmatprep.subr.mxu0 0.0
      %2112 = vmatpush1.msra.mxu0 0.0
      %2113 = vmatprep.subr.mxu0 0.0
      %2114 = vmatpush1.msra.mxu0 0.0
      %2115 = vmatprep.subr.mxu0 0.0
      %2116 = vmatpush1.msra.mxu0 0.0
      %2117 = vmatprep.subr.mxu0 0.0
      %2118 = vmatpush1.msra.mxu0 0.0
      %2119 = vmatprep.subr.mxu0 0.0
      %2120 = vmatpush1.msra.mxu0 0.0
      %2121 = vmatprep.subr.mxu0 0.0
      %2122 = vmatpush1.msra.mxu0 0.0
      %2123 = vmatprep.subr.mxu0 0.0
      %2124 = vmatpush1.msra.mxu0 0.0
      %2125 = vmatprep.subr.mxu0 0.0
      %2126 = vmatpush1.msra.mxu0 0.0
      %2127 = vmatprep.subr.mxu0 0.0
      %2128 = vmatpush1.msra.mxu0 0.0
      %2129 = vmatprep.subr.mxu0 0.0
      %2130 = vmatpush1.msra.mxu0 0.0
      %2131 = vmatprep.mubr.f32.mxu0 0.0
      %2132 = vmatmul.mubr.f32.gmra.mrb[0].mxu0 %v1852
      %v2133 = vpop.f32.mrb[0].mxu0
      %v2134 = vadd.f32 0.0, %v2133
      %v2135 = vpop.f32.mrb[0].mxu0
      %v2136 = vadd.f32 0.0, %v2135
      %2137 = vdwg.mxu0
      %v2138 = vadd.f32 %v1772, %v1921
      %v2139 = vadd.f32 %v1773, %v1923
      %v2140 = vadd.f32 %v1774, %v1992
      %v2141 = vadd.f32 %v1775, %v1994
      %v2142 = vadd.f32 %v1776, %v2063
      %v2143 = vadd.f32 %v1777, %v2065
      %v2144 = vadd.f32 %v1778, %v2134
      %v2145 = vadd.f32 %v1779, %v2136
      %s2146 = scalar_lea.vmem %s1, 40
      %v2147 = vld [vmem:[%s2146] sm:$0xff]
      %2148 = vrot.lane.b32.xlu0 %v588, 94
      %v2149 = vpop.permute.xlu0 %2148
      %2150 = vrot.lane.b32.xlu0 %v589, 94
      %v2151 = vpop.permute.xlu0 %2150
      %2152 = vrot.lane.b32.xlu0 %v590, 94
      %v2153 = vpop.permute.xlu0 %2152
      %2154 = vrot.lane.b32.xlu0 %v591, 94
      %v2155 = vpop.permute.xlu0 %2154
      %2156 = vrot.lane.b32.xlu0 %v592, 94
      %v2157 = vpop.permute.xlu0 %2156
      %2158 = vrot.lane.b32.xlu0 %v593, 94
      %v2159 = vpop.permute.xlu0 %2158
      %2160 = vrot.lane.b32.xlu0 %v594, 94
      %v2161 = vpop.permute.xlu0 %2160
      %2162 = vrot.lane.b32.xlu0 %v595, 94
      %v2163 = vpop.permute.xlu0 %2162
      %2164 = vrot.lane.b32.xlu0 %v596, 94
      %v2165 = vpop.permute.xlu0 %2164
      %2166 = vrot.lane.b32.xlu0 %v597, 94
      %v2167 = vpop.permute.xlu0 %2166
      %2168 = vrot.lane.b32.xlu0 %v598, 94
      %v2169 = vpop.permute.xlu0 %2168
      %2170 = vrot.lane.b32.xlu0 %v599, 94
      %v2171 = vpop.permute.xlu0 %2170
      %2172 = vrot.lane.b32.xlu0 %v600, 94
      %v2173 = vpop.permute.xlu0 %2172
      %2174 = vrot.lane.b32.xlu0 %v601, 94
      %v2175 = vpop.permute.xlu0 %2174
      %2176 = vrot.lane.b32.xlu0 %v602, 94
      %v2177 = vpop.permute.xlu0 %2176
      %2178 = vrot.lane.b32.xlu0 %v603, 94
      %v2179 = vpop.permute.xlu0 %2178
      %2180 = vrot.lane.b32.xlu0 %v604, 94
      %v2181 = vpop.permute.xlu0 %2180
      %2182 = vrot.lane.b32.xlu0 %v605, 94
      %v2183 = vpop.permute.xlu0 %2182
      %vm2184 = vcmask 769024
      %v2185 = vsel %vm2184, %v2149, %v2151
      %v2186 = vsel %vm2184, %v2151, %v2153
      %v2187 = vsel %vm2184, %v2153, %v2155
      %v2188 = vsel %vm2184, %v2155, %v2157
      %v2189 = vsel %vm2184, %v2157, %v2159
      %v2190 = vsel %vm2184, %v2159, %v2161
      %v2191 = vsel %vm2184, %v2161, %v2163
      %v2192 = vsel %vm2184, %v2163, %v2165
      %v2193 = vsel %vm2184, %v2167, %v2169
      %v2194 = vsel %vm2184, %v2169, %v2171
      %v2195 = vsel %vm2184, %v2171, %v2173
      %v2196 = vsel %vm2184, %v2173, %v2175
      %v2197 = vsel %vm2184, %v2175, %v2177
      %v2198 = vsel %vm2184, %v2177, %v2179
      %v2199 = vsel %vm2184, %v2179, %v2181
      %v2200 = vsel %vm2184, %v2181, %v2183
      %v2218 = vsel %vm242, %v2147, 0
      %2220 = vmatprep.subr.mxu0 %v2186
      %2221 = vmatpush1.msra.mxu0 %v2185
      %2222 = vmatprep.subr.mxu0 %v2194
      %2223 = vmatpush1.msra.mxu0 %v2193
      %2224 = vmatprep.subr.mxu0 0.0
      %2225 = vmatpush1.msra.mxu0 0.0
      %2226 = vmatprep.subr.mxu0 0.0
      %2227 = vmatpush1.msra.mxu0 0.0
      %2228 = vmatprep.subr.mxu0 0.0
      %2229 = vmatpush1.msra.mxu0 0.0
      %2230 = vmatprep.subr.mxu0 0.0
      %2231 = vmatpush1.msra.mxu0 0.0
      %2232 = vmatprep.subr.mxu0 0.0
      %2233 = vmatpush1.msra.mxu0 0.0
      %2234 = vmatprep.subr.mxu0 0.0
      %2235 = vmatpush1.msra.mxu0 0.0
      %2236 = vmatprep.subr.mxu0 0.0
      %2237 = vmatpush1.msra.mxu0 0.0
      %2238 = vmatprep.subr.mxu0 0.0
      %2239 = vmatpush1.msra.mxu0 0.0
      %2240 = vmatprep.subr.mxu0 0.0
      %2241 = vmatpush1.msra.mxu0 0.0
      %2242 = vmatprep.subr.mxu0 0.0
      %2243 = vmatpush1.msra.mxu0 0.0
      %2244 = vmatprep.subr.mxu0 0.0
      %2245 = vmatpush1.msra.mxu0 0.0
      %2246 = vmatprep.subr.mxu0 0.0
      %2247 = vmatpush1.msra.mxu0 0.0
      %2248 = vmatprep.subr.mxu0 0.0
      %2249 = vmatpush1.msra.mxu0 0.0
      %2250 = vmatprep.subr.mxu0 0.0
      %2251 = vmatpush1.msra.mxu0 0.0
      %2252 = vmatprep.subr.mxu0 0.0
      %2253 = vmatpush1.msra.mxu0 0.0
      %2254 = vmatprep.subr.mxu0 0.0
      %2255 = vmatpush1.msra.mxu0 0.0
      %2256 = vmatprep.subr.mxu0 0.0
      %2257 = vmatpush1.msra.mxu0 0.0
      %2258 = vmatprep.subr.mxu0 0.0
      %2259 = vmatpush1.msra.mxu0 0.0
      %2260 = vmatprep.subr.mxu0 0.0
      %2261 = vmatpush1.msra.mxu0 0.0
      %2262 = vmatprep.subr.mxu0 0.0
      %2263 = vmatpush1.msra.mxu0 0.0
      %2264 = vmatprep.subr.mxu0 0.0
      %2265 = vmatpush1.msra.mxu0 0.0
      %2266 = vmatprep.subr.mxu0 0.0
      %2267 = vmatpush1.msra.mxu0 0.0
      %2268 = vmatprep.subr.mxu0 0.0
      %2269 = vmatpush1.msra.mxu0 0.0
      %2270 = vmatprep.subr.mxu0 0.0
      %2271 = vmatpush1.msra.mxu0 0.0
      %2272 = vmatprep.subr.mxu0 0.0
      %2273 = vmatpush1.msra.mxu0 0.0
      %2274 = vmatprep.subr.mxu0 0.0
      %2275 = vmatpush1.msra.mxu0 0.0
      %2276 = vmatprep.subr.mxu0 0.0
      %2277 = vmatpush1.msra.mxu0 0.0
      %2278 = vmatprep.subr.mxu0 0.0
      %2279 = vmatpush1.msra.mxu0 0.0
      %2280 = vmatprep.subr.mxu0 0.0
      %2281 = vmatpush1.msra.mxu0 0.0
      %2282 = vmatprep.subr.mxu0 0.0
      %2283 = vmatpush1.msra.mxu0 0.0
      %2284 = vmatprep.mubr.f32.mxu0 0.0
      %2285 = vmatmul.mubr.f32.gmra.mrb[0].mxu0 %v2218
      %v2286 = vpop.f32.mrb[0].mxu0
      %v2287 = vadd.f32 0.0, %v2286
      %v2288 = vpop.f32.mrb[0].mxu0
      %v2289 = vadd.f32 0.0, %v2288
      %2290 = vdwg.mxu0
      %2291 = vmatprep.subr.mxu0 %v2188
      %2292 = vmatpush1.msra.mxu0 %v2187
      %2293 = vmatprep.subr.mxu0 %v2196
      %2294 = vmatpush1.msra.mxu0 %v2195
      %2295 = vmatprep.subr.mxu0 0.0
      %2296 = vmatpush1.msra.mxu0 0.0
      %2297 = vmatprep.subr.mxu0 0.0
      %2298 = vmatpush1.msra.mxu0 0.0
      %2299 = vmatprep.subr.mxu0 0.0
      %2300 = vmatpush1.msra.mxu0 0.0
      %2301 = vmatprep.subr.mxu0 0.0
      %2302 = vmatpush1.msra.mxu0 0.0
      %2303 = vmatprep.subr.mxu0 0.0
      %2304 = vmatpush1.msra.mxu0 0.0
      %2305 = vmatprep.subr.mxu0 0.0
      %2306 = vmatpush1.msra.mxu0 0.0
      %2307 = vmatprep.subr.mxu0 0.0
      %2308 = vmatpush1.msra.mxu0 0.0
      %2309 = vmatprep.subr.mxu0 0.0
      %2310 = vmatpush1.msra.mxu0 0.0
      %2311 = vmatprep.subr.mxu0 0.0
      %2312 = vmatpush1.msra.mxu0 0.0
      %2313 = vmatprep.subr.mxu0 0.0
      %2314 = vmatpush1.msra.mxu0 0.0
      %2315 = vmatprep.subr.mxu0 0.0
      %2316 = vmatpush1.msra.mxu0 0.0
      %2317 = vmatprep.subr.mxu0 0.0
      %2318 = vmatpush1.msra.mxu0 0.0
      %2319 = vmatprep.subr.mxu0 0.0
      %2320 = vmatpush1.msra.mxu0 0.0
      %2321 = vmatprep.subr.mxu0 0.0
      %2322 = vmatpush1.msra.mxu0 0.0
      %2323 = vmatprep.subr.mxu0 0.0
      %2324 = vmatpush1.msra.mxu0 0.0
      %2325 = vmatprep.subr.mxu0 0.0
      %2326 = vmatpush1.msra.mxu0 0.0
      %2327 = vmatprep.subr.mxu0 0.0
      %2328 = vmatpush1.msra.mxu0 0.0
      %2329 = vmatprep.subr.mxu0 0.0
      %2330 = vmatpush1.msra.mxu0 0.0
      %2331 = vmatprep.subr.mxu0 0.0
      %2332 = vmatpush1.msra.mxu0 0.0
      %2333 = vmatprep.subr.mxu0 0.0
      %2334 = vmatpush1.msra.mxu0 0.0
      %2335 = vmatprep.subr.mxu0 0.0
      %2336 = vmatpush1.msra.mxu0 0.0
      %2337 = vmatprep.subr.mxu0 0.0
      %2338 = vmatpush1.msra.mxu0 0.0
      %2339 = vmatprep.subr.mxu0 0.0
      %2340 = vmatpush1.msra.mxu0 0.0
      %2341 = vmatprep.subr.mxu0 0.0
      %2342 = vmatpush1.msra.mxu0 0.0
      %2343 = vmatprep.subr.mxu0 0.0
      %2344 = vmatpush1.msra.mxu0 0.0
      %2345 = vmatprep.subr.mxu0 0.0
      %2346 = vmatpush1.msra.mxu0 0.0
      %2347 = vmatprep.subr.mxu0 0.0
      %2348 = vmatpush1.msra.mxu0 0.0
      %2349 = vmatprep.subr.mxu0 0.0
      %2350 = vmatpush1.msra.mxu0 0.0
      %2351 = vmatprep.subr.mxu0 0.0
      %2352 = vmatpush1.msra.mxu0 0.0
      %2353 = vmatprep.subr.mxu0 0.0
      %2354 = vmatpush1.msra.mxu0 0.0
      %2355 = vmatprep.mubr.f32.mxu0 0.0
      %2356 = vmatmul.mubr.f32.gmra.mrb[0].mxu0 %v2218
      %v2357 = vpop.f32.mrb[0].mxu0
      %v2358 = vadd.f32 0.0, %v2357
      %v2359 = vpop.f32.mrb[0].mxu0
      %v2360 = vadd.f32 0.0, %v2359
      %2361 = vdwg.mxu0
      %2362 = vmatprep.subr.mxu0 %v2190
      %2363 = vmatpush1.msra.mxu0 %v2189
      %2364 = vmatprep.subr.mxu0 %v2198
      %2365 = vmatpush1.msra.mxu0 %v2197
      %2366 = vmatprep.subr.mxu0 0.0
      %2367 = vmatpush1.msra.mxu0 0.0
      %2368 = vmatprep.subr.mxu0 0.0
      %2369 = vmatpush1.msra.mxu0 0.0
      %2370 = vmatprep.subr.mxu0 0.0
      %2371 = vmatpush1.msra.mxu0 0.0
      %2372 = vmatprep.subr.mxu0 0.0
      %2373 = vmatpush1.msra.mxu0 0.0
      %2374 = vmatprep.subr.mxu0 0.0
      %2375 = vmatpush1.msra.mxu0 0.0
      %2376 = vmatprep.subr.mxu0 0.0
      %2377 = vmatpush1.msra.mxu0 0.0
      %2378 = vmatprep.subr.mxu0 0.0
      %2379 = vmatpush1.msra.mxu0 0.0
      %2380 = vmatprep.subr.mxu0 0.0
      %2381 = vmatpush1.msra.mxu0 0.0
      %2382 = vmatprep.subr.mxu0 0.0
      %2383 = vmatpush1.msra.mxu0 0.0
      %2384 = vmatprep.subr.mxu0 0.0
      %2385 = vmatpush1.msra.mxu0 0.0
      %2386 = vmatprep.subr.mxu0 0.0
      %2387 = vmatpush1.msra.mxu0 0.0
      %2388 = vmatprep.subr.mxu0 0.0
      %2389 = vmatpush1.msra.mxu0 0.0
      %2390 = vmatprep.subr.mxu0 0.0
      %2391 = vmatpush1.msra.mxu0 0.0
      %2392 = vmatprep.subr.mxu0 0.0
      %2393 = vmatpush1.msra.mxu0 0.0
      %2394 = vmatprep.subr.mxu0 0.0
      %2395 = vmatpush1.msra.mxu0 0.0
      %2396 = vmatprep.subr.mxu0 0.0
      %2397 = vmatpush1.msra.mxu0 0.0
      %2398 = vmatprep.subr.mxu0 0.0
      %2399 = vmatpush1.msra.mxu0 0.0
      %2400 = vmatprep.subr.mxu0 0.0
      %2401 = vmatpush1.msra.mxu0 0.0
      %2402 = vmatprep.subr.mxu0 0.0
      %2403 = vmatpush1.msra.mxu0 0.0
      %2404 = vmatprep.subr.mxu0 0.0
      %2405 = vmatpush1.msra.mxu0 0.0
      %2406 = vmatprep.subr.mxu0 0.0
      %2407 = vmatpush1.msra.mxu0 0.0
      %2408 = vmatprep.subr.mxu0 0.0
      %2409 = vmatpush1.msra.mxu0 0.0
      %2410 = vmatprep.subr.mxu0 0.0
      %2411 = vmatpush1.msra.mxu0 0.0
      %2412 = vmatprep.subr.mxu0 0.0
      %2413 = vmatpush1.msra.mxu0 0.0
      %2414 = vmatprep.subr.mxu0 0.0
      %2415 = vmatpush1.msra.mxu0 0.0
      %2416 = vmatprep.subr.mxu0 0.0
      %2417 = vmatpush1.msra.mxu0 0.0
      %2418 = vmatprep.subr.mxu0 0.0
      %2419 = vmatpush1.msra.mxu0 0.0
      %2420 = vmatprep.subr.mxu0 0.0
      %2421 = vmatpush1.msra.mxu0 0.0
      %2422 = vmatprep.subr.mxu0 0.0
      %2423 = vmatpush1.msra.mxu0 0.0
      %2424 = vmatprep.subr.mxu0 0.0
      %2425 = vmatpush1.msra.mxu0 0.0
      %2426 = vmatprep.mubr.f32.mxu0 0.0
      %2427 = vmatmul.mubr.f32.gmra.mrb[0].mxu0 %v2218
      %v2428 = vpop.f32.mrb[0].mxu0
      %v2429 = vadd.f32 0.0, %v2428
      %v2430 = vpop.f32.mrb[0].mxu0
      %v2431 = vadd.f32 0.0, %v2430
      %2432 = vdwg.mxu0
      %2433 = vmatprep.subr.mxu0 %v2192
      %2434 = vmatpush1.msra.mxu0 %v2191
      %2435 = vmatprep.subr.mxu0 %v2200
      %2436 = vmatpush1.msra.mxu0 %v2199
      %2437 = vmatprep.subr.mxu0 0.0
      %2438 = vmatpush1.msra.mxu0 0.0
      %2439 = vmatprep.subr.mxu0 0.0
      %2440 = vmatpush1.msra.mxu0 0.0
      %2441 = vmatprep.subr.mxu0 0.0
      %2442 = vmatpush1.msra.mxu0 0.0
      %2443 = vmatprep.subr.mxu0 0.0
      %2444 = vmatpush1.msra.mxu0 0.0
      %2445 = vmatprep.subr.mxu0 0.0
      %2446 = vmatpush1.msra.mxu0 0.0
      %2447 = vmatprep.subr.mxu0 0.0
      %2448 = vmatpush1.msra.mxu0 0.0
      %2449 = vmatprep.subr.mxu0 0.0
      %2450 = vmatpush1.msra.mxu0 0.0
      %2451 = vmatprep.subr.mxu0 0.0
      %2452 = vmatpush1.msra.mxu0 0.0
      %2453 = vmatprep.subr.mxu0 0.0
      %2454 = vmatpush1.msra.mxu0 0.0
      %2455 = vmatprep.subr.mxu0 0.0
      %2456 = vmatpush1.msra.mxu0 0.0
      %2457 = vmatprep.subr.mxu0 0.0
      %2458 = vmatpush1.msra.mxu0 0.0
      %2459 = vmatprep.subr.mxu0 0.0
      %2460 = vmatpush1.msra.mxu0 0.0
      %2461 = vmatprep.subr.mxu0 0.0
      %2462 = vmatpush1.msra.mxu0 0.0
      %2463 = vmatprep.subr.mxu0 0.0
      %2464 = vmatpush1.msra.mxu0 0.0
      %2465 = vmatprep.subr.mxu0 0.0
      %2466 = vmatpush1.msra.mxu0 0.0
      %2467 = vmatprep.subr.mxu0 0.0
      %2468 = vmatpush1.msra.mxu0 0.0
      %2469 = vmatprep.subr.mxu0 0.0
      %2470 = vmatpush1.msra.mxu0 0.0
      %2471 = vmatprep.subr.mxu0 0.0
      %2472 = vmatpush1.msra.mxu0 0.0
      %2473 = vmatprep.subr.mxu0 0.0
      %2474 = vmatpush1.msra.mxu0 0.0
      %2475 = vmatprep.subr.mxu0 0.0
      %2476 = vmatpush1.msra.mxu0 0.0
      %2477 = vmatprep.subr.mxu0 0.0
      %2478 = vmatpush1.msra.mxu0 0.0
      %2479 = vmatprep.subr.mxu0 0.0
      %2480 = vmatpush1.msra.mxu0 0.0
      %2481 = vmatprep.subr.mxu0 0.0
      %2482 = vmatpush1.msra.mxu0 0.0
      %2483 = vmatprep.subr.mxu0 0.0
      %2484 = vmatpush1.msra.mxu0 0.0
      %2485 = vmatprep.subr.mxu0 0.0
      %2486 = vmatpush1.msra.mxu0 0.0
      %2487 = vmatprep.subr.mxu0 0.0
      %2488 = vmatpush1.msra.mxu0 0.0
      %2489 = vmatprep.subr.mxu0 0.0
      %2490 = vmatpush1.msra.mxu0 0.0
      %2491 = vmatprep.subr.mxu0 0.0
      %2492 = vmatpush1.msra.mxu0 0.0
      %2493 = vmatprep.subr.mxu0 0.0
      %2494 = vmatpush1.msra.mxu0 0.0
      %2495 = vmatprep.subr.mxu0 0.0
      %2496 = vmatpush1.msra.mxu0 0.0
      %2497 = vmatprep.mubr.f32.mxu0 0.0
      %2498 = vmatmul.mubr.f32.gmra.mrb[0].mxu0 %v2218
      %v2499 = vpop.f32.mrb[0].mxu0
      %v2500 = vadd.f32 0.0, %v2499
      %v2501 = vpop.f32.mrb[0].mxu0
      %v2502 = vadd.f32 0.0, %v2501
      %2503 = vdwg.mxu0
      %v2504 = vmul.f32 %v2287, %v1353
      %v2505 = vmul.f32 %v2289, %v1357
      %v2506 = vmul.f32 %v2358, %v1361
      %v2507 = vmul.f32 %v2360, %v1365
      %v2508 = vmul.f32 %v2429, %v1369
      %v2509 = vmul.f32 %v2431, %v1373
      %v2510 = vmul.f32 %v2500, %v1377
      %v2511 = vmul.f32 %v2502, %v1381
      %v2512 = vadd.f32 %v2138, %v2504
      %v2513 = vadd.f32 %v2139, %v2505
      %v2514 = vadd.f32 %v2140, %v2506
      %v2515 = vadd.f32 %v2141, %v2507
      %v2516 = vadd.f32 %v2142, %v2508
      %v2517 = vadd.f32 %v2143, %v2509
      %v2518 = vadd.f32 %v2144, %v2510
      %v2519 = vadd.f32 %v2145, %v2511
      %s2520 = scalar_lea.vmem %s1, 48
      %v2521 = vld [vmem:[%s2520] sm:$0xff]
      %2522 = vrot.lane.b32.xlu0 %v588, 64
      %v2523 = vpop.permute.xlu0 %2522
      %2524 = vrot.lane.b32.xlu0 %v589, 64
      %v2525 = vpop.permute.xlu0 %2524
      %2526 = vrot.lane.b32.xlu0 %v590, 64
      %v2527 = vpop.permute.xlu0 %2526
      %2528 = vrot.lane.b32.xlu0 %v591, 64
      %v2529 = vpop.permute.xlu0 %2528
      %2530 = vrot.lane.b32.xlu0 %v592, 64
      %v2531 = vpop.permute.xlu0 %2530
      %2532 = vrot.lane.b32.xlu0 %v593, 64
      %v2533 = vpop.permute.xlu0 %2532
      %2534 = vrot.lane.b32.xlu0 %v594, 64
      %v2535 = vpop.permute.xlu0 %2534
      %2536 = vrot.lane.b32.xlu0 %v595, 64
      %v2537 = vpop.permute.xlu0 %2536
      %2538 = vrot.lane.b32.xlu0 %v596, 64
      %v2539 = vpop.permute.xlu0 %2538
      %2540 = vrot.lane.b32.xlu0 %v597, 64
      %v2541 = vpop.permute.xlu0 %2540
      %2542 = vrot.lane.b32.xlu0 %v598, 64
      %v2543 = vpop.permute.xlu0 %2542
      %2544 = vrot.lane.b32.xlu0 %v599, 64
      %v2545 = vpop.permute.xlu0 %2544
      %2546 = vrot.lane.b32.xlu0 %v600, 64
      %v2547 = vpop.permute.xlu0 %2546
      %2548 = vrot.lane.b32.xlu0 %v601, 64
      %v2549 = vpop.permute.xlu0 %2548
      %2550 = vrot.lane.b32.xlu0 %v602, 64
      %v2551 = vpop.permute.xlu0 %2550
      %2552 = vrot.lane.b32.xlu0 %v603, 64
      %v2553 = vpop.permute.xlu0 %2552
      %2554 = vrot.lane.b32.xlu0 %v604, 64
      %v2555 = vpop.permute.xlu0 %2554
      %2556 = vrot.lane.b32.xlu0 %v605, 64
      %v2557 = vpop.permute.xlu0 %2556
      %vm2558 = vcmask 523264
      %v2559 = vsel %vm2558, %v2523, %v2525
      %v2560 = vsel %vm2558, %v2525, %v2527
      %v2561 = vsel %vm2558, %v2527, %v2529
      %v2562 = vsel %vm2558, %v2529, %v2531
      %v2563 = vsel %vm2558, %v2531, %v2533
      %v2564 = vsel %vm2558, %v2533, %v2535
      %v2565 = vsel %vm2558, %v2535, %v2537
      %v2566 = vsel %vm2558, %v2537, %v2539
      %v2567 = vsel %vm2558, %v2541, %v2543
      %v2568 = vsel %vm2558, %v2543, %v2545
      %v2569 = vsel %vm2558, %v2545, %v2547
      %v2570 = vsel %vm2558, %v2547, %v2549
      %v2571 = vsel %vm2558, %v2549, %v2551
      %v2572 = vsel %vm2558, %v2551, %v2553
      %v2573 = vsel %vm2558, %v2553, %v2555
      %v2574 = vsel %vm2558, %v2555, %v2557
      %v2592 = vsel %vm242, %v2521, 0
      %2594 = vmatprep.subr.mxu0 %v2560
      %2595 = vmatpush1.msra.mxu0 %v2559
      %2596 = vmatprep.subr.mxu0 %v2568
      %2597 = vmatpush1.msra.mxu0 %v2567
      %2598 = vmatprep.subr.mxu0 0.0
      %2599 = vmatpush1.msra.mxu0 0.0
      %2600 = vmatprep.subr.mxu0 0.0
      %2601 = vmatpush1.msra.mxu0 0.0
      %2602 = vmatprep.subr.mxu0 0.0
      %2603 = vmatpush1.msra.mxu0 0.0
      %2604 = vmatprep.subr.mxu0 0.0
      %2605 = vmatpush1.msra.mxu0 0.0
      %2606 = vmatprep.subr.mxu0 0.0
      %2607 = vmatpush1.msra.mxu0 0.0
      %2608 = vmatprep.subr.mxu0 0.0
      %2609 = vmatpush1.msra.mxu0 0.0
      %2610 = vmatprep.subr.mxu0 0.0
      %2611 = vmatpush1.msra.mxu0 0.0
      %2612 = vmatprep.subr.mxu0 0.0
      %2613 = vmatpush1.msra.mxu0 0.0
      %2614 = vmatprep.subr.mxu0 0.0
      %2615 = vmatpush1.msra.mxu0 0.0
      %2616 = vmatprep.subr.mxu0 0.0
      %2617 = vmatpush1.msra.mxu0 0.0
      %2618 = vmatprep.subr.mxu0 0.0
      %2619 = vmatpush1.msra.mxu0 0.0
      %2620 = vmatprep.subr.mxu0 0.0
      %2621 = vmatpush1.msra.mxu0 0.0
      %2622 = vmatprep.subr.mxu0 0.0
      %2623 = vmatpush1.msra.mxu0 0.0
      %2624 = vmatprep.subr.mxu0 0.0
      %2625 = vmatpush1.msra.mxu0 0.0
      %2626 = vmatprep.subr.mxu0 0.0
      %2627 = vmatpush1.msra.mxu0 0.0
      %2628 = vmatprep.subr.mxu0 0.0
      %2629 = vmatpush1.msra.mxu0 0.0
      %2630 = vmatprep.subr.mxu0 0.0
      %2631 = vmatpush1.msra.mxu0 0.0
      %2632 = vmatprep.subr.mxu0 0.0
      %2633 = vmatpush1.msra.mxu0 0.0
      %2634 = vmatprep.subr.mxu0 0.0
      %2635 = vmatpush1.msra.mxu0 0.0
      %2636 = vmatprep.subr.mxu0 0.0
      %2637 = vmatpush1.msra.mxu0 0.0
      %2638 = vmatprep.subr.mxu0 0.0
      %2639 = vmatpush1.msra.mxu0 0.0
      %2640 = vmatprep.subr.mxu0 0.0
      %2641 = vmatpush1.msra.mxu0 0.0
      %2642 = vmatprep.subr.mxu0 0.0
      %2643 = vmatpush1.msra.mxu0 0.0
      %2644 = vmatprep.subr.mxu0 0.0
      %2645 = vmatpush1.msra.mxu0 0.0
      %2646 = vmatprep.subr.mxu0 0.0
      %2647 = vmatpush1.msra.mxu0 0.0
      %2648 = vmatprep.subr.mxu0 0.0
      %2649 = vmatpush1.msra.mxu0 0.0
      %2650 = vmatprep.subr.mxu0 0.0
      %2651 = vmatpush1.msra.mxu0 0.0
      %2652 = vmatprep.subr.mxu0 0.0
      %2653 = vmatpush1.msra.mxu0 0.0
      %2654 = vmatprep.subr.mxu0 0.0
      %2655 = vmatpush1.msra.mxu0 0.0
      %2656 = vmatprep.subr.mxu0 0.0
      %2657 = vmatpush1.msra.mxu0 0.0
      %2658 = vmatprep.mubr.f32.mxu0 0.0
      %2659 = vmatmul.mubr.f32.gmra.mrb[0].mxu0 %v2592
      %v2660 = vpop.f32.mrb[0].mxu0
      %v2661 = vadd.f32 0.0, %v2660
      %v2662 = vpop.f32.mrb[0].mxu0
      %v2663 = vadd.f32 0.0, %v2662
      %2664 = vdwg.mxu0
      %2665 = vmatprep.subr.mxu0 %v2562
      %2666 = vmatpush1.msra.mxu0 %v2561
      %2667 = vmatprep.subr.mxu0 %v2570
      %2668 = vmatpush1.msra.mxu0 %v2569
      %2669 = vmatprep.subr.mxu0 0.0
      %2670 = vmatpush1.msra.mxu0 0.0
      %2671 = vmatprep.subr.mxu0 0.0
      %2672 = vmatpush1.msra.mxu0 0.0
      %2673 = vmatprep.subr.mxu0 0.0
      %2674 = vmatpush1.msra.mxu0 0.0
      %2675 = vmatprep.subr.mxu0 0.0
      %2676 = vmatpush1.msra.mxu0 0.0
      %2677 = vmatprep.subr.mxu0 0.0
      %2678 = vmatpush1.msra.mxu0 0.0
      %2679 = vmatprep.subr.mxu0 0.0
      %2680 = vmatpush1.msra.mxu0 0.0
      %2681 = vmatprep.subr.mxu0 0.0
      %2682 = vmatpush1.msra.mxu0 0.0
      %2683 = vmatprep.subr.mxu0 0.0
      %2684 = vmatpush1.msra.mxu0 0.0
      %2685 = vmatprep.subr.mxu0 0.0
      %2686 = vmatpush1.msra.mxu0 0.0
      %2687 = vmatprep.subr.mxu0 0.0
      %2688 = vmatpush1.msra.mxu0 0.0
      %2689 = vmatprep.subr.mxu0 0.0
      %2690 = vmatpush1.msra.mxu0 0.0
      %2691 = vmatprep.subr.mxu0 0.0
      %2692 = vmatpush1.msra.mxu0 0.0
      %2693 = vmatprep.subr.mxu0 0.0
      %2694 = vmatpush1.msra.mxu0 0.0
      %2695 = vmatprep.subr.mxu0 0.0
      %2696 = vmatpush1.msra.mxu0 0.0
      %2697 = vmatprep.subr.mxu0 0.0
      %2698 = vmatpush1.msra.mxu0 0.0
      %2699 = vmatprep.subr.mxu0 0.0
      %2700 = vmatpush1.msra.mxu0 0.0
      %2701 = vmatprep.subr.mxu0 0.0
      %2702 = vmatpush1.msra.mxu0 0.0
      %2703 = vmatprep.subr.mxu0 0.0
      %2704 = vmatpush1.msra.mxu0 0.0
      %2705 = vmatprep.subr.mxu0 0.0
      %2706 = vmatpush1.msra.mxu0 0.0
      %2707 = vmatprep.subr.mxu0 0.0
      %2708 = vmatpush1.msra.mxu0 0.0
      %2709 = vmatprep.subr.mxu0 0.0
      %2710 = vmatpush1.msra.mxu0 0.0
      %2711 = vmatprep.subr.mxu0 0.0
      %2712 = vmatpush1.msra.mxu0 0.0
      %2713 = vmatprep.subr.mxu0 0.0
      %2714 = vmatpush1.msra.mxu0 0.0
      %2715 = vmatprep.subr.mxu0 0.0
      %2716 = vmatpush1.msra.mxu0 0.0
      %2717 = vmatprep.subr.mxu0 0.0
      %2718 = vmatpush1.msra.mxu0 0.0
      %2719 = vmatprep.subr.mxu0 0.0
      %2720 = vmatpush1.msra.mxu0 0.0
      %2721 = vmatprep.subr.mxu0 0.0
      %2722 = vmatpush1.msra.mxu0 0.0
      %2723 = vmatprep.subr.mxu0 0.0
      %2724 = vmatpush1.msra.mxu0 0.0
      %2725 = vmatprep.subr.mxu0 0.0
      %2726 = vmatpush1.msra.mxu0 0.0
      %2727 = vmatprep.subr.mxu0 0.0
      %2728 = vmatpush1.msra.mxu0 0.0
      %2729 = vmatprep.mubr.f32.mxu0 0.0
      %2730 = vmatmul.mubr.f32.gmra.mrb[0].mxu0 %v2592
      %v2731 = vpop.f32.mrb[0].mxu0
      %v2732 = vadd.f32 0.0, %v2731
      %v2733 = vpop.f32.mrb[0].mxu0
      %v2734 = vadd.f32 0.0, %v2733
      %2735 = vdwg.mxu0
      %2736 = vmatprep.subr.mxu0 %v2564
      %2737 = vmatpush1.msra.mxu0 %v2563
      %2738 = vmatprep.subr.mxu0 %v2572
      %2739 = vmatpush1.msra.mxu0 %v2571
      %2740 = vmatprep.subr.mxu0 0.0
      %2741 = vmatpush1.msra.mxu0 0.0
      %2742 = vmatprep.subr.mxu0 0.0
      %2743 = vmatpush1.msra.mxu0 0.0
      %2744 = vmatprep.subr.mxu0 0.0
      %2745 = vmatpush1.msra.mxu0 0.0
      %2746 = vmatprep.subr.mxu0 0.0
      %2747 = vmatpush1.msra.mxu0 0.0
      %2748 = vmatprep.subr.mxu0 0.0
      %2749 = vmatpush1.msra.mxu0 0.0
      %2750 = vmatprep.subr.mxu0 0.0
      %2751 = vmatpush1.msra.mxu0 0.0
      %2752 = vmatprep.subr.mxu0 0.0
      %2753 = vmatpush1.msra.mxu0 0.0
      %2754 = vmatprep.subr.mxu0 0.0
      %2755 = vmatpush1.msra.mxu0 0.0
      %2756 = vmatprep.subr.mxu0 0.0
      %2757 = vmatpush1.msra.mxu0 0.0
      %2758 = vmatprep.subr.mxu0 0.0
      %2759 = vmatpush1.msra.mxu0 0.0
      %2760 = vmatprep.subr.mxu0 0.0
      %2761 = vmatpush1.msra.mxu0 0.0
      %2762 = vmatprep.subr.mxu0 0.0
      %2763 = vmatpush1.msra.mxu0 0.0
      %2764 = vmatprep.subr.mxu0 0.0
      %2765 = vmatpush1.msra.mxu0 0.0
      %2766 = vmatprep.subr.mxu0 0.0
      %2767 = vmatpush1.msra.mxu0 0.0
      %2768 = vmatprep.subr.mxu0 0.0
      %2769 = vmatpush1.msra.mxu0 0.0
      %2770 = vmatprep.subr.mxu0 0.0
      %2771 = vmatpush1.msra.mxu0 0.0
      %2772 = vmatprep.subr.mxu0 0.0
      %2773 = vmatpush1.msra.mxu0 0.0
      %2774 = vmatprep.subr.mxu0 0.0
      %2775 = vmatpush1.msra.mxu0 0.0
      %2776 = vmatprep.subr.mxu0 0.0
      %2777 = vmatpush1.msra.mxu0 0.0
      %2778 = vmatprep.subr.mxu0 0.0
      %2779 = vmatpush1.msra.mxu0 0.0
      %2780 = vmatprep.subr.mxu0 0.0
      %2781 = vmatpush1.msra.mxu0 0.0
      %2782 = vmatprep.subr.mxu0 0.0
      %2783 = vmatpush1.msra.mxu0 0.0
      %2784 = vmatprep.subr.mxu0 0.0
      %2785 = vmatpush1.msra.mxu0 0.0
      %2786 = vmatprep.subr.mxu0 0.0
      %2787 = vmatpush1.msra.mxu0 0.0
      %2788 = vmatprep.subr.mxu0 0.0
      %2789 = vmatpush1.msra.mxu0 0.0
      %2790 = vmatprep.subr.mxu0 0.0
      %2791 = vmatpush1.msra.mxu0 0.0
      %2792 = vmatprep.subr.mxu0 0.0
      %2793 = vmatpush1.msra.mxu0 0.0
      %2794 = vmatprep.subr.mxu0 0.0
      %2795 = vmatpush1.msra.mxu0 0.0
      %2796 = vmatprep.subr.mxu0 0.0
      %2797 = vmatpush1.msra.mxu0 0.0
      %2798 = vmatprep.subr.mxu0 0.0
      %2799 = vmatpush1.msra.mxu0 0.0
      %2800 = vmatprep.mubr.f32.mxu0 0.0
      %2801 = vmatmul.mubr.f32.gmra.mrb[0].mxu0 %v2592
      %v2802 = vpop.f32.mrb[0].mxu0
      %v2803 = vadd.f32 0.0, %v2802
      %v2804 = vpop.f32.mrb[0].mxu0
      %v2805 = vadd.f32 0.0, %v2804
      %2806 = vdwg.mxu0
      %2807 = vmatprep.subr.mxu0 %v2566
      %2808 = vmatpush1.msra.mxu0 %v2565
      %2809 = vmatprep.subr.mxu0 %v2574
      %2810 = vmatpush1.msra.mxu0 %v2573
      %2811 = vmatprep.subr.mxu0 0.0
      %2812 = vmatpush1.msra.mxu0 0.0
      %2813 = vmatprep.subr.mxu0 0.0
      %2814 = vmatpush1.msra.mxu0 0.0
      %2815 = vmatprep.subr.mxu0 0.0
      %2816 = vmatpush1.msra.mxu0 0.0
      %2817 = vmatprep.subr.mxu0 0.0
      %2818 = vmatpush1.msra.mxu0 0.0
      %2819 = vmatprep.subr.mxu0 0.0
      %2820 = vmatpush1.msra.mxu0 0.0
      %2821 = vmatprep.subr.mxu0 0.0
      %2822 = vmatpush1.msra.mxu0 0.0
      %2823 = vmatprep.subr.mxu0 0.0
      %2824 = vmatpush1.msra.mxu0 0.0
      %2825 = vmatprep.subr.mxu0 0.0
      %2826 = vmatpush1.msra.mxu0 0.0
      %2827 = vmatprep.subr.mxu0 0.0
      %2828 = vmatpush1.msra.mxu0 0.0
      %2829 = vmatprep.subr.mxu0 0.0
      %2830 = vmatpush1.msra.mxu0 0.0
      %2831 = vmatprep.subr.mxu0 0.0
      %2832 = vmatpush1.msra.mxu0 0.0
      %2833 = vmatprep.subr.mxu0 0.0
      %2834 = vmatpush1.msra.mxu0 0.0
      %2835 = vmatprep.subr.mxu0 0.0
      %2836 = vmatpush1.msra.mxu0 0.0
      %2837 = vmatprep.subr.mxu0 0.0
      %2838 = vmatpush1.msra.mxu0 0.0
      %2839 = vmatprep.subr.mxu0 0.0
      %2840 = vmatpush1.msra.mxu0 0.0
      %2841 = vmatprep.subr.mxu0 0.0
      %2842 = vmatpush1.msra.mxu0 0.0
      %2843 = vmatprep.subr.mxu0 0.0
      %2844 = vmatpush1.msra.mxu0 0.0
      %2845 = vmatprep.subr.mxu0 0.0
      %2846 = vmatpush1.msra.mxu0 0.0
      %2847 = vmatprep.subr.mxu0 0.0
      %2848 = vmatpush1.msra.mxu0 0.0
      %2849 = vmatprep.subr.mxu0 0.0
      %2850 = vmatpush1.msra.mxu0 0.0
      %2851 = vmatprep.subr.mxu0 0.0
      %2852 = vmatpush1.msra.mxu0 0.0
      %2853 = vmatprep.subr.mxu0 0.0
      %2854 = vmatpush1.msra.mxu0 0.0
      %2855 = vmatprep.subr.mxu0 0.0
      %2856 = vmatpush1.msra.mxu0 0.0
      %2857 = vmatprep.subr.mxu0 0.0
      %2858 = vmatpush1.msra.mxu0 0.0
      %2859 = vmatprep.subr.mxu0 0.0
      %2860 = vmatpush1.msra.mxu0 0.0
      %2861 = vmatprep.subr.mxu0 0.0
      %2862 = vmatpush1.msra.mxu0 0.0
      %2863 = vmatprep.subr.mxu0 0.0
      %2864 = vmatpush1.msra.mxu0 0.0
      %2865 = vmatprep.subr.mxu0 0.0
      %2866 = vmatpush1.msra.mxu0 0.0
      %2867 = vmatprep.subr.mxu0 0.0
      %2868 = vmatpush1.msra.mxu0 0.0
      %2869 = vmatprep.subr.mxu0 0.0
      %2870 = vmatpush1.msra.mxu0 0.0
      %2871 = vmatprep.mubr.f32.mxu0 0.0
      %2872 = vmatmul.mubr.f32.gmra.mrb[0].mxu0 %v2592
      %v2873 = vpop.f32.mrb[0].mxu0
      %v2874 = vadd.f32 0.0, %v2873
      %v2875 = vpop.f32.mrb[0].mxu0
      %v2876 = vadd.f32 0.0, %v2875
      %2877 = vdwg.mxu0
      %v2878 = vmul.f32 %v2661, %v535
      %v2879 = vmul.f32 %v2663, %v539
      %v2880 = vmul.f32 %v2732, %v543
      %v2881 = vmul.f32 %v2734, %v547
      %v2882 = vmul.f32 %v2803, %v551
      %v2883 = vmul.f32 %v2805, %v555
      %v2884 = vmul.f32 %v2874, %v559
      %v2885 = vmul.f32 %v2876, %v563
      %v2886 = vadd.f32 %v2512, %v2878
      %v2887 = vadd.f32 %v2513, %v2879
      %v2888 = vadd.f32 %v2514, %v2880
      %v2889 = vadd.f32 %v2515, %v2881
      %v2890 = vadd.f32 %v2516, %v2882
      %v2891 = vadd.f32 %v2517, %v2883
      %v2892 = vadd.f32 %v2518, %v2884
      %v2893 = vadd.f32 %v2519, %v2885
      %s2894 = scalar_lea.vmem %s1, 56
      %v2895 = vld [vmem:[%s2894] sm:$0xff]
      %2896 = vrot.lane.b32.xlu0 %v588, 63
      %v2897 = vpop.permute.xlu0 %2896
      %2898 = vrot.lane.b32.xlu0 %v589, 63
      %v2899 = vpop.permute.xlu0 %2898
      %2900 = vrot.lane.b32.xlu0 %v590, 63
      %v2901 = vpop.permute.xlu0 %2900
      %2902 = vrot.lane.b32.xlu0 %v591, 63
      %v2903 = vpop.permute.xlu0 %2902
      %2904 = vrot.lane.b32.xlu0 %v592, 63
      %v2905 = vpop.permute.xlu0 %2904
      %2906 = vrot.lane.b32.xlu0 %v593, 63
      %v2907 = vpop.permute.xlu0 %2906
      %2908 = vrot.lane.b32.xlu0 %v594, 63
      %v2909 = vpop.permute.xlu0 %2908
      %2910 = vrot.lane.b32.xlu0 %v595, 63
      %v2911 = vpop.permute.xlu0 %2910
      %2912 = vrot.lane.b32.xlu0 %v596, 63
      %v2913 = vpop.permute.xlu0 %2912
      %2914 = vrot.lane.b32.xlu0 %v597, 63
      %v2915 = vpop.permute.xlu0 %2914
      %2916 = vrot.lane.b32.xlu0 %v598, 63
      %v2917 = vpop.permute.xlu0 %2916
      %2918 = vrot.lane.b32.xlu0 %v599, 63
      %v2919 = vpop.permute.xlu0 %2918
      %2920 = vrot.lane.b32.xlu0 %v600, 63
      %v2921 = vpop.permute.xlu0 %2920
      %2922 = vrot.lane.b32.xlu0 %v601, 63
      %v2923 = vpop.permute.xlu0 %2922
      %2924 = vrot.lane.b32.xlu0 %v602, 63
      %v2925 = vpop.permute.xlu0 %2924
      %2926 = vrot.lane.b32.xlu0 %v603, 63
      %v2927 = vpop.permute.xlu0 %2926
      %2928 = vrot.lane.b32.xlu0 %v604, 63
      %v2929 = vpop.permute.xlu0 %2928
      %2930 = vrot.lane.b32.xlu0 %v605, 63
      %v2931 = vpop.permute.xlu0 %2930
      %vm2932 = vcmask 515072
      %v2933 = vsel %vm2932, %v2897, %v2899
      %v2934 = vsel %vm2932, %v2899, %v2901
      %v2935 = vsel %vm2932, %v2901, %v2903
      %v2936 = vsel %vm2932, %v2903, %v2905
      %v2937 = vsel %vm2932, %v2905, %v2907
      %v2938 = vsel %vm2932, %v2907, %v2909
      %v2939 = vsel %vm2932, %v2909, %v2911
      %v2940 = vsel %vm2932, %v2911, %v2913
      %v2941 = vsel %vm2932, %v2915, %v2917
      %v2942 = vsel %vm2932, %v2917, %v2919
      %v2943 = vsel %vm2932, %v2919, %v2921
      %v2944 = vsel %vm2932, %v2921, %v2923
      %v2945 = vsel %vm2932, %v2923, %v2925
      %v2946 = vsel %vm2932, %v2925, %v2927
      %v2947 = vsel %vm2932, %v2927, %v2929
      %v2948 = vsel %vm2932, %v2929, %v2931
      %v2966 = vsel %vm242, %v2895, 0
      %2968 = vmatprep.subr.mxu0 %v2934
      %2969 = vmatpush1.msra.mxu0 %v2933
      %2970 = vmatprep.subr.mxu0 %v2942
      %2971 = vmatpush1.msra.mxu0 %v2941
      %2972 = vmatprep.subr.mxu0 0.0
      %2973 = vmatpush1.msra.mxu0 0.0
      %2974 = vmatprep.subr.mxu0 0.0
      %2975 = vmatpush1.msra.mxu0 0.0
      %2976 = vmatprep.subr.mxu0 0.0
      %2977 = vmatpush1.msra.mxu0 0.0
      %2978 = vmatprep.subr.mxu0 0.0
      %2979 = vmatpush1.msra.mxu0 0.0
      %2980 = vmatprep.subr.mxu0 0.0
      %2981 = vmatpush1.msra.mxu0 0.0
      %2982 = vmatprep.subr.mxu0 0.0
      %2983 = vmatpush1.msra.mxu0 0.0
      %2984 = vmatprep.subr.mxu0 0.0
      %2985 = vmatpush1.msra.mxu0 0.0
      %2986 = vmatprep.subr.mxu0 0.0
      %2987 = vmatpush1.msra.mxu0 0.0
      %2988 = vmatprep.subr.mxu0 0.0
      %2989 = vmatpush1.msra.mxu0 0.0
      %2990 = vmatprep.subr.mxu0 0.0
      %2991 = vmatpush1.msra.mxu0 0.0
      %2992 = vmatprep.subr.mxu0 0.0
      %2993 = vmatpush1.msra.mxu0 0.0
      %2994 = vmatprep.subr.mxu0 0.0
      %2995 = vmatpush1.msra.mxu0 0.0
      %2996 = vmatprep.subr.mxu0 0.0
      %2997 = vmatpush1.msra.mxu0 0.0
      %2998 = vmatprep.subr.mxu0 0.0
      %2999 = vmatpush1.msra.mxu0 0.0
      %3000 = vmatprep.subr.mxu0 0.0
      %3001 = vmatpush1.msra.mxu0 0.0
      %3002 = vmatprep.subr.mxu0 0.0
      %3003 = vmatpush1.msra.mxu0 0.0
      %3004 = vmatprep.subr.mxu0 0.0
      %3005 = vmatpush1.msra.mxu0 0.0
      %3006 = vmatprep.subr.mxu0 0.0
      %3007 = vmatpush1.msra.mxu0 0.0
      %3008 = vmatprep.subr.mxu0 0.0
      %3009 = vmatpush1.msra.mxu0 0.0
      %3010 = vmatprep.subr.mxu0 0.0
      %3011 = vmatpush1.msra.mxu0 0.0
      %3012 = vmatprep.subr.mxu0 0.0
      %3013 = vmatpush1.msra.mxu0 0.0
      %3014 = vmatprep.subr.mxu0 0.0
      %3015 = vmatpush1.msra.mxu0 0.0
      %3016 = vmatprep.subr.mxu0 0.0
      %3017 = vmatpush1.msra.mxu0 0.0
      %3018 = vmatprep.subr.mxu0 0.0
      %3019 = vmatpush1.msra.mxu0 0.0
      %3020 = vmatprep.subr.mxu0 0.0
      %3021 = vmatpush1.msra.mxu0 0.0
      %3022 = vmatprep.subr.mxu0 0.0
      %3023 = vmatpush1.msra.mxu0 0.0
      %3024 = vmatprep.subr.mxu0 0.0
      %3025 = vmatpush1.msra.mxu0 0.0
      %3026 = vmatprep.subr.mxu0 0.0
      %3027 = vmatpush1.msra.mxu0 0.0
      %3028 = vmatprep.subr.mxu0 0.0
      %3029 = vmatpush1.msra.mxu0 0.0
      %3030 = vmatprep.subr.mxu0 0.0
      %3031 = vmatpush1.msra.mxu0 0.0
      %3032 = vmatprep.mubr.f32.mxu0 0.0
      %3033 = vmatmul.mubr.f32.gmra.mrb[0].mxu0 %v2966
      %v3034 = vpop.f32.mrb[0].mxu0
      %v3035 = vadd.f32 0.0, %v3034
      %v3036 = vpop.f32.mrb[0].mxu0
      %v3037 = vadd.f32 0.0, %v3036
      %3038 = vdwg.mxu0
      %3039 = vmatprep.subr.mxu0 %v2936
      %3040 = vmatpush1.msra.mxu0 %v2935
      %3041 = vmatprep.subr.mxu0 %v2944
      %3042 = vmatpush1.msra.mxu0 %v2943
      %3043 = vmatprep.subr.mxu0 0.0
      %3044 = vmatpush1.msra.mxu0 0.0
      %3045 = vmatprep.subr.mxu0 0.0
      %3046 = vmatpush1.msra.mxu0 0.0
      %3047 = vmatprep.subr.mxu0 0.0
      %3048 = vmatpush1.msra.mxu0 0.0
      %3049 = vmatprep.subr.mxu0 0.0
      %3050 = vmatpush1.msra.mxu0 0.0
      %3051 = vmatprep.subr.mxu0 0.0
      %3052 = vmatpush1.msra.mxu0 0.0
      %3053 = vmatprep.subr.mxu0 0.0
      %3054 = vmatpush1.msra.mxu0 0.0
      %3055 = vmatprep.subr.mxu0 0.0
      %3056 = vmatpush1.msra.mxu0 0.0
      %3057 = vmatprep.subr.mxu0 0.0
      %3058 = vmatpush1.msra.mxu0 0.0
      %3059 = vmatprep.subr.mxu0 0.0
      %3060 = vmatpush1.msra.mxu0 0.0
      %3061 = vmatprep.subr.mxu0 0.0
      %3062 = vmatpush1.msra.mxu0 0.0
      %3063 = vmatprep.subr.mxu0 0.0
      %3064 = vmatpush1.msra.mxu0 0.0
      %3065 = vmatprep.subr.mxu0 0.0
      %3066 = vmatpush1.msra.mxu0 0.0
      %3067 = vmatprep.subr.mxu0 0.0
      %3068 = vmatpush1.msra.mxu0 0.0
      %3069 = vmatprep.subr.mxu0 0.0
      %3070 = vmatpush1.msra.mxu0 0.0
      %3071 = vmatprep.subr.mxu0 0.0
      %3072 = vmatpush1.msra.mxu0 0.0
      %3073 = vmatprep.subr.mxu0 0.0
      %3074 = vmatpush1.msra.mxu0 0.0
      %3075 = vmatprep.subr.mxu0 0.0
      %3076 = vmatpush1.msra.mxu0 0.0
      %3077 = vmatprep.subr.mxu0 0.0
      %3078 = vmatpush1.msra.mxu0 0.0
      %3079 = vmatprep.subr.mxu0 0.0
      %3080 = vmatpush1.msra.mxu0 0.0
      %3081 = vmatprep.subr.mxu0 0.0
      %3082 = vmatpush1.msra.mxu0 0.0
      %3083 = vmatprep.subr.mxu0 0.0
      %3084 = vmatpush1.msra.mxu0 0.0
      %3085 = vmatprep.subr.mxu0 0.0
      %3086 = vmatpush1.msra.mxu0 0.0
      %3087 = vmatprep.subr.mxu0 0.0
      %3088 = vmatpush1.msra.mxu0 0.0
      %3089 = vmatprep.subr.mxu0 0.0
      %3090 = vmatpush1.msra.mxu0 0.0
      %3091 = vmatprep.subr.mxu0 0.0
      %3092 = vmatpush1.msra.mxu0 0.0
      %3093 = vmatprep.subr.mxu0 0.0
      %3094 = vmatpush1.msra.mxu0 0.0
      %3095 = vmatprep.subr.mxu0 0.0
      %3096 = vmatpush1.msra.mxu0 0.0
      %3097 = vmatprep.subr.mxu0 0.0
      %3098 = vmatpush1.msra.mxu0 0.0
      %3099 = vmatprep.subr.mxu0 0.0
      %3100 = vmatpush1.msra.mxu0 0.0
      %3101 = vmatprep.subr.mxu0 0.0
      %3102 = vmatpush1.msra.mxu0 0.0
      %3103 = vmatprep.mubr.f32.mxu0 0.0
      %3104 = vmatmul.mubr.f32.gmra.mrb[0].mxu0 %v2966
      %v3105 = vpop.f32.mrb[0].mxu0
      %v3106 = vadd.f32 0.0, %v3105
      %v3107 = vpop.f32.mrb[0].mxu0
      %v3108 = vadd.f32 0.0, %v3107
      %3109 = vdwg.mxu0
      %3110 = vmatprep.subr.mxu0 %v2938
      %3111 = vmatpush1.msra.mxu0 %v2937
      %3112 = vmatprep.subr.mxu0 %v2946
      %3113 = vmatpush1.msra.mxu0 %v2945
      %3114 = vmatprep.subr.mxu0 0.0
      %3115 = vmatpush1.msra.mxu0 0.0
      %3116 = vmatprep.subr.mxu0 0.0
      %3117 = vmatpush1.msra.mxu0 0.0
      %3118 = vmatprep.subr.mxu0 0.0
      %3119 = vmatpush1.msra.mxu0 0.0
      %3120 = vmatprep.subr.mxu0 0.0
      %3121 = vmatpush1.msra.mxu0 0.0
      %3122 = vmatprep.subr.mxu0 0.0
      %3123 = vmatpush1.msra.mxu0 0.0
      %3124 = vmatprep.subr.mxu0 0.0
      %3125 = vmatpush1.msra.mxu0 0.0
      %3126 = vmatprep.subr.mxu0 0.0
      %3127 = vmatpush1.msra.mxu0 0.0
      %3128 = vmatprep.subr.mxu0 0.0
      %3129 = vmatpush1.msra.mxu0 0.0
      %3130 = vmatprep.subr.mxu0 0.0
      %3131 = vmatpush1.msra.mxu0 0.0
      %3132 = vmatprep.subr.mxu0 0.0
      %3133 = vmatpush1.msra.mxu0 0.0
      %3134 = vmatprep.subr.mxu0 0.0
      %3135 = vmatpush1.msra.mxu0 0.0
      %3136 = vmatprep.subr.mxu0 0.0
      %3137 = vmatpush1.msra.mxu0 0.0
      %3138 = vmatprep.subr.mxu0 0.0
      %3139 = vmatpush1.msra.mxu0 0.0
      %3140 = vmatprep.subr.mxu0 0.0
      %3141 = vmatpush1.msra.mxu0 0.0
      %3142 = vmatprep.subr.mxu0 0.0
      %3143 = vmatpush1.msra.mxu0 0.0
      %3144 = vmatprep.subr.mxu0 0.0
      %3145 = vmatpush1.msra.mxu0 0.0
      %3146 = vmatprep.subr.mxu0 0.0
      %3147 = vmatpush1.msra.mxu0 0.0
      %3148 = vmatprep.subr.mxu0 0.0
      %3149 = vmatpush1.msra.mxu0 0.0
      %3150 = vmatprep.subr.mxu0 0.0
      %3151 = vmatpush1.msra.mxu0 0.0
      %3152 = vmatprep.subr.mxu0 0.0
      %3153 = vmatpush1.msra.mxu0 0.0
      %3154 = vmatprep.subr.mxu0 0.0
      %3155 = vmatpush1.msra.mxu0 0.0
      %3156 = vmatprep.subr.mxu0 0.0
      %3157 = vmatpush1.msra.mxu0 0.0
      %3158 = vmatprep.subr.mxu0 0.0
      %3159 = vmatpush1.msra.mxu0 0.0
      %3160 = vmatprep.subr.mxu0 0.0
      %3161 = vmatpush1.msra.mxu0 0.0
      %3162 = vmatprep.subr.mxu0 0.0
      %3163 = vmatpush1.msra.mxu0 0.0
      %3164 = vmatprep.subr.mxu0 0.0
      %3165 = vmatpush1.msra.mxu0 0.0
      %3166 = vmatprep.subr.mxu0 0.0
      %3167 = vmatpush1.msra.mxu0 0.0
      %3168 = vmatprep.subr.mxu0 0.0
      %3169 = vmatpush1.msra.mxu0 0.0
      %3170 = vmatprep.subr.mxu0 0.0
      %3171 = vmatpush1.msra.mxu0 0.0
      %3172 = vmatprep.subr.mxu0 0.0
      %3173 = vmatpush1.msra.mxu0 0.0
      %3174 = vmatprep.mubr.f32.mxu0 0.0
      %3175 = vmatmul.mubr.f32.gmra.mrb[0].mxu0 %v2966
      %v3176 = vpop.f32.mrb[0].mxu0
      %v3177 = vadd.f32 0.0, %v3176
      %v3178 = vpop.f32.mrb[0].mxu0
      %v3179 = vadd.f32 0.0, %v3178
      %3180 = vdwg.mxu0
      %3181 = vmatprep.subr.mxu0 %v2940
      %3182 = vmatpush1.msra.mxu0 %v2939
      %3183 = vmatprep.subr.mxu0 %v2948
      %3184 = vmatpush1.msra.mxu0 %v2947
      %3185 = vmatprep.subr.mxu0 0.0
      %3186 = vmatpush1.msra.mxu0 0.0
      %3187 = vmatprep.subr.mxu0 0.0
      %3188 = vmatpush1.msra.mxu0 0.0
      %3189 = vmatprep.subr.mxu0 0.0
      %3190 = vmatpush1.msra.mxu0 0.0
      %3191 = vmatprep.subr.mxu0 0.0
      %3192 = vmatpush1.msra.mxu0 0.0
      %3193 = vmatprep.subr.mxu0 0.0
      %3194 = vmatpush1.msra.mxu0 0.0
      %3195 = vmatprep.subr.mxu0 0.0
      %3196 = vmatpush1.msra.mxu0 0.0
      %3197 = vmatprep.subr.mxu0 0.0
      %3198 = vmatpush1.msra.mxu0 0.0
      %3199 = vmatprep.subr.mxu0 0.0
      %3200 = vmatpush1.msra.mxu0 0.0
      %3201 = vmatprep.subr.mxu0 0.0
      %3202 = vmatpush1.msra.mxu0 0.0
      %3203 = vmatprep.subr.mxu0 0.0
      %3204 = vmatpush1.msra.mxu0 0.0
      %3205 = vmatprep.subr.mxu0 0.0
      %3206 = vmatpush1.msra.mxu0 0.0
      %3207 = vmatprep.subr.mxu0 0.0
      %3208 = vmatpush1.msra.mxu0 0.0
      %3209 = vmatprep.subr.mxu0 0.0
      %3210 = vmatpush1.msra.mxu0 0.0
      %3211 = vmatprep.subr.mxu0 0.0
      %3212 = vmatpush1.msra.mxu0 0.0
      %3213 = vmatprep.subr.mxu0 0.0
      %3214 = vmatpush1.msra.mxu0 0.0
      %3215 = vmatprep.subr.mxu0 0.0
      %3216 = vmatpush1.msra.mxu0 0.0
      %3217 = vmatprep.subr.mxu0 0.0
      %3218 = vmatpush1.msra.mxu0 0.0
      %3219 = vmatprep.subr.mxu0 0.0
      %3220 = vmatpush1.msra.mxu0 0.0
      %3221 = vmatprep.subr.mxu0 0.0
      %3222 = vmatpush1.msra.mxu0 0.0
      %3223 = vmatprep.subr.mxu0 0.0
      %3224 = vmatpush1.msra.mxu0 0.0
      %3225 = vmatprep.subr.mxu0 0.0
      %3226 = vmatpush1.msra.mxu0 0.0
      %3227 = vmatprep.subr.mxu0 0.0
      %3228 = vmatpush1.msra.mxu0 0.0
      %3229 = vmatprep.subr.mxu0 0.0
      %3230 = vmatpush1.msra.mxu0 0.0
      %3231 = vmatprep.subr.mxu0 0.0
      %3232 = vmatpush1.msra.mxu0 0.0
      %3233 = vmatprep.subr.mxu0 0.0
      %3234 = vmatpush1.msra.mxu0 0.0
      %3235 = vmatprep.subr.mxu0 0.0
      %3236 = vmatpush1.msra.mxu0 0.0
      %3237 = vmatprep.subr.mxu0 0.0
      %3238 = vmatpush1.msra.mxu0 0.0
      %3239 = vmatprep.subr.mxu0 0.0
      %3240 = vmatpush1.msra.mxu0 0.0
      %3241 = vmatprep.subr.mxu0 0.0
      %3242 = vmatpush1.msra.mxu0 0.0
      %3243 = vmatprep.subr.mxu0 0.0
      %3244 = vmatpush1.msra.mxu0 0.0
      %3245 = vmatprep.mubr.f32.mxu0 0.0
      %3246 = vmatmul.mubr.f32.gmra.mrb[0].mxu0 %v2966
      %v3247 = vpop.f32.mrb[0].mxu0
      %v3248 = vadd.f32 0.0, %v3247
      %v3249 = vpop.f32.mrb[0].mxu0
      %v3250 = vadd.f32 0.0, %v3249
      %3251 = vdwg.mxu0
      %v3252 = vadd.f32 %v2886, %v3035
      %v3253 = vadd.f32 %v2887, %v3037
      %v3254 = vadd.f32 %v2888, %v3106
      %v3255 = vadd.f32 %v2889, %v3108
      %v3256 = vadd.f32 %v2890, %v3177
      %v3257 = vadd.f32 %v2891, %v3179
      %v3258 = vadd.f32 %v2892, %v3248
      %v3259 = vadd.f32 %v2893, %v3250
      %s3260 = scalar_lea.vmem %s1, 64
      %v3261 = vld [vmem:[%s3260] sm:$0xff]
      %3262 = vrot.lane.b32.xlu0 %v588, 62
      %v3263 = vpop.permute.xlu0 %3262
      %3264 = vrot.lane.b32.xlu0 %v589, 62
      %v3265 = vpop.permute.xlu0 %3264
      %3266 = vrot.lane.b32.xlu0 %v590, 62
      %v3267 = vpop.permute.xlu0 %3266
      %3268 = vrot.lane.b32.xlu0 %v591, 62
      %v3269 = vpop.permute.xlu0 %3268
      %3270 = vrot.lane.b32.xlu0 %v592, 62
      %v3271 = vpop.permute.xlu0 %3270
      %3272 = vrot.lane.b32.xlu0 %v593, 62
      %v3273 = vpop.permute.xlu0 %3272
      %3274 = vrot.lane.b32.xlu0 %v594, 62
      %v3275 = vpop.permute.xlu0 %3274
      %3276 = vrot.lane.b32.xlu0 %v595, 62
      %v3277 = vpop.permute.xlu0 %3276
      %3278 = vrot.lane.b32.xlu0 %v596, 62
      %v3279 = vpop.permute.xlu0 %3278
      %3280 = vrot.lane.b32.xlu0 %v597, 62
      %v3281 = vpop.permute.xlu0 %3280
      %3282 = vrot.lane.b32.xlu0 %v598, 62
      %v3283 = vpop.permute.xlu0 %3282
      %3284 = vrot.lane.b32.xlu0 %v599, 62
      %v3285 = vpop.permute.xlu0 %3284
      %3286 = vrot.lane.b32.xlu0 %v600, 62
      %v3287 = vpop.permute.xlu0 %3286
      %3288 = vrot.lane.b32.xlu0 %v601, 62
      %v3289 = vpop.permute.xlu0 %3288
      %3290 = vrot.lane.b32.xlu0 %v602, 62
      %v3291 = vpop.permute.xlu0 %3290
      %3292 = vrot.lane.b32.xlu0 %v603, 62
      %v3293 = vpop.permute.xlu0 %3292
      %3294 = vrot.lane.b32.xlu0 %v604, 62
      %v3295 = vpop.permute.xlu0 %3294
      %3296 = vrot.lane.b32.xlu0 %v605, 62
      %v3297 = vpop.permute.xlu0 %3296
      %vm3298 = vcmask 506880
      %v3299 = vsel %vm3298, %v3263, %v3265
      %v3300 = vsel %vm3298, %v3265, %v3267
      %v3301 = vsel %vm3298, %v3267, %v3269
      %v3302 = vsel %vm3298, %v3269, %v3271
      %v3303 = vsel %vm3298, %v3271, %v3273
      %v3304 = vsel %vm3298, %v3273, %v3275
      %v3305 = vsel %vm3298, %v3275, %v3277
      %v3306 = vsel %vm3298, %v3277, %v3279
      %v3307 = vsel %vm3298, %v3281, %v3283
      %v3308 = vsel %vm3298, %v3283, %v3285
      %v3309 = vsel %vm3298, %v3285, %v3287
      %v3310 = vsel %vm3298, %v3287, %v3289
      %v3311 = vsel %vm3298, %v3289, %v3291
      %v3312 = vsel %vm3298, %v3291, %v3293
      %v3313 = vsel %vm3298, %v3293, %v3295
      %v3314 = vsel %vm3298, %v3295, %v3297
      %v3332 = vsel %vm242, %v3261, 0
      %3334 = vmatprep.subr.mxu0 %v3300
      %3335 = vmatpush1.msra.mxu0 %v3299
      %3336 = vmatprep.subr.mxu0 %v3308
      %3337 = vmatpush1.msra.mxu0 %v3307
      %3338 = vmatprep.subr.mxu0 0.0
      %3339 = vmatpush1.msra.mxu0 0.0
      %3340 = vmatprep.subr.mxu0 0.0
      %3341 = vmatpush1.msra.mxu0 0.0
      %3342 = vmatprep.subr.mxu0 0.0
      %3343 = vmatpush1.msra.mxu0 0.0
      %3344 = vmatprep.subr.mxu0 0.0
      %3345 = vmatpush1.msra.mxu0 0.0
      %3346 = vmatprep.subr.mxu0 0.0
      %3347 = vmatpush1.msra.mxu0 0.0
      %3348 = vmatprep.subr.mxu0 0.0
      %3349 = vmatpush1.msra.mxu0 0.0
      %3350 = vmatprep.subr.mxu0 0.0
      %3351 = vmatpush1.msra.mxu0 0.0
      %3352 = vmatprep.subr.mxu0 0.0
      %3353 = vmatpush1.msra.mxu0 0.0
      %3354 = vmatprep.subr.mxu0 0.0
      %3355 = vmatpush1.msra.mxu0 0.0
      %3356 = vmatprep.subr.mxu0 0.0
      %3357 = vmatpush1.msra.mxu0 0.0
      %3358 = vmatprep.subr.mxu0 0.0
      %3359 = vmatpush1.msra.mxu0 0.0
      %3360 = vmatprep.subr.mxu0 0.0
      %3361 = vmatpush1.msra.mxu0 0.0
      %3362 = vmatprep.subr.mxu0 0.0
      %3363 = vmatpush1.msra.mxu0 0.0
      %3364 = vmatprep.subr.mxu0 0.0
      %3365 = vmatpush1.msra.mxu0 0.0
      %3366 = vmatprep.subr.mxu0 0.0
      %3367 = vmatpush1.msra.mxu0 0.0
      %3368 = vmatprep.subr.mxu0 0.0
      %3369 = vmatpush1.msra.mxu0 0.0
      %3370 = vmatprep.subr.mxu0 0.0
      %3371 = vmatpush1.msra.mxu0 0.0
      %3372 = vmatprep.subr.mxu0 0.0
      %3373 = vmatpush1.msra.mxu0 0.0
      %3374 = vmatprep.subr.mxu0 0.0
      %3375 = vmatpush1.msra.mxu0 0.0
      %3376 = vmatprep.subr.mxu0 0.0
      %3377 = vmatpush1.msra.mxu0 0.0
      %3378 = vmatprep.subr.mxu0 0.0
      %3379 = vmatpush1.msra.mxu0 0.0
      %3380 = vmatprep.subr.mxu0 0.0
      %3381 = vmatpush1.msra.mxu0 0.0
      %3382 = vmatprep.subr.mxu0 0.0
      %3383 = vmatpush1.msra.mxu0 0.0
      %3384 = vmatprep.subr.mxu0 0.0
      %3385 = vmatpush1.msra.mxu0 0.0
      %3386 = vmatprep.subr.mxu0 0.0
      %3387 = vmatpush1.msra.mxu0 0.0
      %3388 = vmatprep.subr.mxu0 0.0
      %3389 = vmatpush1.msra.mxu0 0.0
      %3390 = vmatprep.subr.mxu0 0.0
      %3391 = vmatpush1.msra.mxu0 0.0
      %3392 = vmatprep.subr.mxu0 0.0
      %3393 = vmatpush1.msra.mxu0 0.0
      %3394 = vmatprep.subr.mxu0 0.0
      %3395 = vmatpush1.msra.mxu0 0.0
      %3396 = vmatprep.subr.mxu0 0.0
      %3397 = vmatpush1.msra.mxu0 0.0
      %3398 = vmatprep.mubr.f32.mxu0 0.0
      %3399 = vmatmul.mubr.f32.gmra.mrb[0].mxu0 %v3332
      %v3400 = vpop.f32.mrb[0].mxu0
      %v3401 = vadd.f32 0.0, %v3400
      %v3402 = vpop.f32.mrb[0].mxu0
      %v3403 = vadd.f32 0.0, %v3402
      %3404 = vdwg.mxu0
      %3405 = vmatprep.subr.mxu0 %v3302
      %3406 = vmatpush1.msra.mxu0 %v3301
      %3407 = vmatprep.subr.mxu0 %v3310
      %3408 = vmatpush1.msra.mxu0 %v3309
      %3409 = vmatprep.subr.mxu0 0.0
      %3410 = vmatpush1.msra.mxu0 0.0
      %3411 = vmatprep.subr.mxu0 0.0
      %3412 = vmatpush1.msra.mxu0 0.0
      %3413 = vmatprep.subr.mxu0 0.0
      %3414 = vmatpush1.msra.mxu0 0.0
      %3415 = vmatprep.subr.mxu0 0.0
      %3416 = vmatpush1.msra.mxu0 0.0
      %3417 = vmatprep.subr.mxu0 0.0
      %3418 = vmatpush1.msra.mxu0 0.0
      %3419 = vmatprep.subr.mxu0 0.0
      %3420 = vmatpush1.msra.mxu0 0.0
      %3421 = vmatprep.subr.mxu0 0.0
      %3422 = vmatpush1.msra.mxu0 0.0
      %3423 = vmatprep.subr.mxu0 0.0
      %3424 = vmatpush1.msra.mxu0 0.0
      %3425 = vmatprep.subr.mxu0 0.0
      %3426 = vmatpush1.msra.mxu0 0.0
      %3427 = vmatprep.subr.mxu0 0.0
      %3428 = vmatpush1.msra.mxu0 0.0
      %3429 = vmatprep.subr.mxu0 0.0
      %3430 = vmatpush1.msra.mxu0 0.0
      %3431 = vmatprep.subr.mxu0 0.0
      %3432 = vmatpush1.msra.mxu0 0.0
      %3433 = vmatprep.subr.mxu0 0.0
      %3434 = vmatpush1.msra.mxu0 0.0
      %3435 = vmatprep.subr.mxu0 0.0
      %3436 = vmatpush1.msra.mxu0 0.0
      %3437 = vmatprep.subr.mxu0 0.0
      %3438 = vmatpush1.msra.mxu0 0.0
      %3439 = vmatprep.subr.mxu0 0.0
      %3440 = vmatpush1.msra.mxu0 0.0
      %3441 = vmatprep.subr.mxu0 0.0
      %3442 = vmatpush1.msra.mxu0 0.0
      %3443 = vmatprep.subr.mxu0 0.0
      %3444 = vmatpush1.msra.mxu0 0.0
      %3445 = vmatprep.subr.mxu0 0.0
      %3446 = vmatpush1.msra.mxu0 0.0
      %3447 = vmatprep.subr.mxu0 0.0
      %3448 = vmatpush1.msra.mxu0 0.0
      %3449 = vmatprep.subr.mxu0 0.0
      %3450 = vmatpush1.msra.mxu0 0.0
      %3451 = vmatprep.subr.mxu0 0.0
      %3452 = vmatpush1.msra.mxu0 0.0
      %3453 = vmatprep.subr.mxu0 0.0
      %3454 = vmatpush1.msra.mxu0 0.0
      %3455 = vmatprep.subr.mxu0 0.0
      %3456 = vmatpush1.msra.mxu0 0.0
      %3457 = vmatprep.subr.mxu0 0.0
      %3458 = vmatpush1.msra.mxu0 0.0
      %3459 = vmatprep.subr.mxu0 0.0
      %3460 = vmatpush1.msra.mxu0 0.0
      %3461 = vmatprep.subr.mxu0 0.0
      %3462 = vmatpush1.msra.mxu0 0.0
      %3463 = vmatprep.subr.mxu0 0.0
      %3464 = vmatpush1.msra.mxu0 0.0
      %3465 = vmatprep.subr.mxu0 0.0
      %3466 = vmatpush1.msra.mxu0 0.0
      %3467 = vmatprep.subr.mxu0 0.0
      %3468 = vmatpush1.msra.mxu0 0.0
      %3469 = vmatprep.mubr.f32.mxu0 0.0
      %3470 = vmatmul.mubr.f32.gmra.mrb[0].mxu0 %v3332
      %v3471 = vpop.f32.mrb[0].mxu0
      %v3472 = vadd.f32 0.0, %v3471
      %v3473 = vpop.f32.mrb[0].mxu0
      %v3474 = vadd.f32 0.0, %v3473
      %3475 = vdwg.mxu0
      %3476 = vmatprep.subr.mxu0 %v3304
      %3477 = vmatpush1.msra.mxu0 %v3303
      %3478 = vmatprep.subr.mxu0 %v3312
      %3479 = vmatpush1.msra.mxu0 %v3311
      %3480 = vmatprep.subr.mxu0 0.0
      %3481 = vmatpush1.msra.mxu0 0.0
      %3482 = vmatprep.subr.mxu0 0.0
      %3483 = vmatpush1.msra.mxu0 0.0
      %3484 = vmatprep.subr.mxu0 0.0
      %3485 = vmatpush1.msra.mxu0 0.0
      %3486 = vmatprep.subr.mxu0 0.0
      %3487 = vmatpush1.msra.mxu0 0.0
      %3488 = vmatprep.subr.mxu0 0.0
      %3489 = vmatpush1.msra.mxu0 0.0
      %3490 = vmatprep.subr.mxu0 0.0
      %3491 = vmatpush1.msra.mxu0 0.0
      %3492 = vmatprep.subr.mxu0 0.0
      %3493 = vmatpush1.msra.mxu0 0.0
      %3494 = vmatprep.subr.mxu0 0.0
      %3495 = vmatpush1.msra.mxu0 0.0
      %3496 = vmatprep.subr.mxu0 0.0
      %3497 = vmatpush1.msra.mxu0 0.0
      %3498 = vmatprep.subr.mxu0 0.0
      %3499 = vmatpush1.msra.mxu0 0.0
      %3500 = vmatprep.subr.mxu0 0.0
      %3501 = vmatpush1.msra.mxu0 0.0
      %3502 = vmatprep.subr.mxu0 0.0
      %3503 = vmatpush1.msra.mxu0 0.0
      %3504 = vmatprep.subr.mxu0 0.0
      %3505 = vmatpush1.msra.mxu0 0.0
      %3506 = vmatprep.subr.mxu0 0.0
      %3507 = vmatpush1.msra.mxu0 0.0
      %3508 = vmatprep.subr.mxu0 0.0
      %3509 = vmatpush1.msra.mxu0 0.0
      %3510 = vmatprep.subr.mxu0 0.0
      %3511 = vmatpush1.msra.mxu0 0.0
      %3512 = vmatprep.subr.mxu0 0.0
      %3513 = vmatpush1.msra.mxu0 0.0
      %3514 = vmatprep.subr.mxu0 0.0
      %3515 = vmatpush1.msra.mxu0 0.0
      %3516 = vmatprep.subr.mxu0 0.0
      %3517 = vmatpush1.msra.mxu0 0.0
      %3518 = vmatprep.subr.mxu0 0.0
      %3519 = vmatpush1.msra.mxu0 0.0
      %3520 = vmatprep.subr.mxu0 0.0
      %3521 = vmatpush1.msra.mxu0 0.0
      %3522 = vmatprep.subr.mxu0 0.0
      %3523 = vmatpush1.msra.mxu0 0.0
      %3524 = vmatprep.subr.mxu0 0.0
      %3525 = vmatpush1.msra.mxu0 0.0
      %3526 = vmatprep.subr.mxu0 0.0
      %3527 = vmatpush1.msra.mxu0 0.0
      %3528 = vmatprep.subr.mxu0 0.0
      %3529 = vmatpush1.msra.mxu0 0.0
      %3530 = vmatprep.subr.mxu0 0.0
      %3531 = vmatpush1.msra.mxu0 0.0
      %3532 = vmatprep.subr.mxu0 0.0
      %3533 = vmatpush1.msra.mxu0 0.0
      %3534 = vmatprep.subr.mxu0 0.0
      %3535 = vmatpush1.msra.mxu0 0.0
      %3536 = vmatprep.subr.mxu0 0.0
      %3537 = vmatpush1.msra.mxu0 0.0
      %3538 = vmatprep.subr.mxu0 0.0
      %3539 = vmatpush1.msra.mxu0 0.0
      %3540 = vmatprep.mubr.f32.mxu0 0.0
      %3541 = vmatmul.mubr.f32.gmra.mrb[0].mxu0 %v3332
      %v3542 = vpop.f32.mrb[0].mxu0
      %v3543 = vadd.f32 0.0, %v3542
      %v3544 = vpop.f32.mrb[0].mxu0
      %v3545 = vadd.f32 0.0, %v3544
      %3546 = vdwg.mxu0
      %3547 = vmatprep.subr.mxu0 %v3306
      %3548 = vmatpush1.msra.mxu0 %v3305
      %3549 = vmatprep.subr.mxu0 %v3314
      %3550 = vmatpush1.msra.mxu0 %v3313
      %3551 = vmatprep.subr.mxu0 0.0
      %3552 = vmatpush1.msra.mxu0 0.0
      %3553 = vmatprep.subr.mxu0 0.0
      %3554 = vmatpush1.msra.mxu0 0.0
      %3555 = vmatprep.subr.mxu0 0.0
      %3556 = vmatpush1.msra.mxu0 0.0
      %3557 = vmatprep.subr.mxu0 0.0
      %3558 = vmatpush1.msra.mxu0 0.0
      %3559 = vmatprep.subr.mxu0 0.0
      %3560 = vmatpush1.msra.mxu0 0.0
      %3561 = vmatprep.subr.mxu0 0.0
      %3562 = vmatpush1.msra.mxu0 0.0
      %3563 = vmatprep.subr.mxu0 0.0
      %3564 = vmatpush1.msra.mxu0 0.0
      %3565 = vmatprep.subr.mxu0 0.0
      %3566 = vmatpush1.msra.mxu0 0.0
      %3567 = vmatprep.subr.mxu0 0.0
      %3568 = vmatpush1.msra.mxu0 0.0
      %3569 = vmatprep.subr.mxu0 0.0
      %3570 = vmatpush1.msra.mxu0 0.0
      %3571 = vmatprep.subr.mxu0 0.0
      %3572 = vmatpush1.msra.mxu0 0.0
      %3573 = vmatprep.subr.mxu0 0.0
      %3574 = vmatpush1.msra.mxu0 0.0
      %3575 = vmatprep.subr.mxu0 0.0
      %3576 = vmatpush1.msra.mxu0 0.0
      %3577 = vmatprep.subr.mxu0 0.0
      %3578 = vmatpush1.msra.mxu0 0.0
      %3579 = vmatprep.subr.mxu0 0.0
      %3580 = vmatpush1.msra.mxu0 0.0
      %3581 = vmatprep.subr.mxu0 0.0
      %3582 = vmatpush1.msra.mxu0 0.0
      %3583 = vmatprep.subr.mxu0 0.0
      %3584 = vmatpush1.msra.mxu0 0.0
      %3585 = vmatprep.subr.mxu0 0.0
      %3586 = vmatpush1.msra.mxu0 0.0
      %3587 = vmatprep.subr.mxu0 0.0
      %3588 = vmatpush1.msra.mxu0 0.0
      %3589 = vmatprep.subr.mxu0 0.0
      %3590 = vmatpush1.msra.mxu0 0.0
      %3591 = vmatprep.subr.mxu0 0.0
      %3592 = vmatpush1.msra.mxu0 0.0
      %3593 = vmatprep.subr.mxu0 0.0
      %3594 = vmatpush1.msra.mxu0 0.0
      %3595 = vmatprep.subr.mxu0 0.0
      %3596 = vmatpush1.msra.mxu0 0.0
      %3597 = vmatprep.subr.mxu0 0.0
      %3598 = vmatpush1.msra.mxu0 0.0
      %3599 = vmatprep.subr.mxu0 0.0
      %3600 = vmatpush1.msra.mxu0 0.0
      %3601 = vmatprep.subr.mxu0 0.0
      %3602 = vmatpush1.msra.mxu0 0.0
      %3603 = vmatprep.subr.mxu0 0.0
      %3604 = vmatpush1.msra.mxu0 0.0
      %3605 = vmatprep.subr.mxu0 0.0
      %3606 = vmatpush1.msra.mxu0 0.0
      %3607 = vmatprep.subr.mxu0 0.0
      %3608 = vmatpush1.msra.mxu0 0.0
      %3609 = vmatprep.subr.mxu0 0.0
      %3610 = vmatpush1.msra.mxu0 0.0
      %3611 = vmatprep.mubr.f32.mxu0 0.0
      %3612 = vmatmul.mubr.f32.gmra.mrb[0].mxu0 %v3332
      %v3613 = vpop.f32.mrb[0].mxu0
      %v3614 = vadd.f32 0.0, %v3613
      %v3615 = vpop.f32.mrb[0].mxu0
      %v3616 = vadd.f32 0.0, %v3615
      %3617 = vdwg.mxu0
      %v3618 = vmul.f32 %v3401, %v1353
      %v3619 = vmul.f32 %v3403, %v1357
      %v3620 = vmul.f32 %v3472, %v1361
      %v3621 = vmul.f32 %v3474, %v1365
      %v3622 = vmul.f32 %v3543, %v1369
      %v3623 = vmul.f32 %v3545, %v1373
      %v3624 = vmul.f32 %v3614, %v1377
      %v3625 = vmul.f32 %v3616, %v1381
      %v3626 = vadd.f32 %v3252, %v3618
      %v3627 = vadd.f32 %v3253, %v3619
      %v3628 = vadd.f32 %v3254, %v3620
      %v3629 = vadd.f32 %v3255, %v3621
      %v3630 = vadd.f32 %v3256, %v3622
      %v3631 = vadd.f32 %v3257, %v3623
      %v3632 = vadd.f32 %v3258, %v3624
      %v3633 = vadd.f32 %v3259, %v3625
      %v3634 = vld [vmem:[%s2] sm:$0xff]
      %3636 = vset.pattern.permute.xlu0 0
      %3637 = vperm.xlu0 %3636, %v3634
      %v3638 = vpop.permute.xlu0 %3637
      %v3640 = vadd.f32 %v3626, %v3638
      %v3641 = vadd.f32 %v3627, %v3638
      %v3642 = vadd.f32 %v3628, %v3638
      %v3643 = vadd.f32 %v3629, %v3638
      %v3644 = vadd.f32 %v3630, %v3638
      %v3645 = vadd.f32 %v3631, %v3638
      %v3646 = vadd.f32 %v3632, %v3638
      %v3647 = vadd.f32 %v3633, %v3638
      %3648 = vst [vmem:[%s224] sm:$0xff] %v3640
      %3649 = vst [vmem:[%s224 + $0x8] sm:$0xff] %v3641
      %3650 = vst [vmem:[%s224 + $0x10] sm:$0xff] %v3642
      %3651 = vst [vmem:[%s224 + $0x18] sm:$0xff] %v3643
      %3652 = vst [vmem:[%s224 + $0x20] sm:$0xff] %v3644
      %3653 = vst [vmem:[%s224 + $0x28] sm:$0xff] %v3645
      %3654 = vst [vmem:[%s224 + $0x30] sm:$0xff] %v3646
      %3655 = vst [vmem:[%s224 + $0x38] sm:$0xff] %v3647
      %p3656 = scmp.lt.s32.totalorder %s16, 1
      %s3657 = scalar_select %p3656, %s16, 1
      %s3658 = smul.addr %s3657, 8
      %s3659 = smul.addr %s3658, 8
      %s3660 = scalar_lea.vmem %s5, %s3659
      // Predicated region
      $region41: #{h_synthesis_transform.3} parent=39 // pred_check
        %p3661 = pneg %p144
      $region42: #{h_synthesis_transform.3} parent=39 // pred_check_branch
        %3663 = sbr.rel (%p3661) target = $region44
      $region43: #{h_synthesis_transform.3} parent=39 // pred_region
        _
      $region44: #{h_synthesis_transform.3} parent=39 // pred_fallthru
        _
    $region40: #{h_synthesis_transform.3} parent=5 // pred_fallthru
      _
    %p3664 = scmp.le.s32.totalorder 2, %s11
    // Predicated region
    $region45: #{h_synthesis_transform.3} parent=5 // pred_check
      %p3665 = pneg %p3664
    $region46: #{h_synthesis_transform.3} parent=5 // pred_check_branch
      %3667 = sbr.rel (%p3665) target = $region48
    $region47: #{h_synthesis_transform.3} parent=5 // pred_region
      %s3668 = ssub.s32 %s11, 2
      // Predicated region
      $region49: #{h_synthesis_transform.3} parent=47 // pred_check
        %p3669 = pneg %p150
      $region50: #{h_synthesis_transform.3} parent=47 // pred_check_branch
        %3671 = sbr.rel (%p3669) target = $region52
      $region51: #{h_synthesis_transform.3} parent=47 // pred_region
        %p3672 = scmp.lt.s32.totalorder %s17, 1
        %s3673 = scalar_select %p3672, %s17, 1
        %s3674 = smul.addr %s3673, 8
        %s3675 = smul.addr %s3674, 8
        %s3676 = scalar_lea.vmem %s5, %s3675
      $region52: #{h_synthesis_transform.3} parent=47 // pred_fallthru
        _
    $region48: #{h_synthesis_transform.3} parent=5 // pred_fallthru
      _
  $region6: #{h_synthesis_transform.3} parent=0 // loop_footer
    %s15 = sadd.s32 1, %s11
  $region7: #{h_synthesis_transform.3} parent=0 // loop_footer_branch
    %10 = sbr.rel target = $region3
  $region8: #{h_synthesis_transform.3} parent=0 // loop_exit
    _

</llo_original>
